<compile_context>
chip_gen: v5e
topology: v5e:2x2
jax: 0.10.0
libtpu: 0.0.40
codegen_flags: <defaults>
</compile_context>

<pallas_src>
import functools

import jax
import jax.numpy as jnp
from jax.experimental import pallas as pl
from jax.experimental.pallas import tpu as pltpu

NEG_INF = -1e30  # finite mask value (avoids -inf - (-inf) = NaN on fully masked rows)


def _pick_tile(n, pref=128):
    """Largest tile <= pref that divides n (falls back to the full extent)."""
    if n <= pref:
        return n
    for cand in (pref, 64, 32, 16, 8):
        if n % cand == 0:
            return cand
    return n


# ----------------------------------------------------------------------------
# Row-tiled projection: y = x @ W + b, output split into `nsplit` chunks.
# Weights arrive pre-cast to bf16; outputs are emitted in `out_dtype` (bf16 for
# q/k/v and ra/rb to halve HBM traffic of the biggest tensors).
# ----------------------------------------------------------------------------

def _proj_split_kernel(x_ref, w_ref, b_ref, *o_refs, nsplit):
    y = jnp.dot(x_ref[...].astype(jnp.bfloat16), w_ref[...],
                preferred_element_type=jnp.float32) + b_ref[...]
    c = y.shape[1] // nsplit
    for i in range(nsplit):
        o_refs[i][...] = y[:, i * c:(i + 1) * c].astype(o_refs[i].dtype)


def proj_split(x, w, b, nsplit, out_dtype=jnp.bfloat16, row_tile=512):
    n, k = x.shape
    k2, m = w.shape
    assert k == k2 and m % nsplit == 0
    c = m // nsplit
    tm = min(row_tile, n)
    kern = functools.partial(_proj_split_kernel, nsplit=nsplit)
    return pl.pallas_call(
        kern,
        out_shape=tuple(jax.ShapeDtypeStruct((n, c), out_dtype)
                        for _ in range(nsplit)),
        grid=(pl.cdiv(n, tm),),
        in_specs=[
            pl.BlockSpec((tm, k), lambda i: (i, 0)),
            pl.BlockSpec((k, m), lambda i: (0, 0)),
            pl.BlockSpec((1, m), lambda i: (0, 0)),
        ],
        out_specs=tuple(pl.BlockSpec((tm, c), lambda i: (i, 0))
                        for _ in range(nsplit)),
        compiler_params=pltpu.CompilerParams(dimension_semantics=("parallel",)),
    )(x, w, b)


# ----------------------------------------------------------------------------
# Relation-aware attention core: flash-style (batch, q-tile, k-tile) grid with
# online softmax; all heads handled in one lane-dense E block per step.
# ra/rb are query-major: ra[b, i, j, :] is the relation feature for (query=i, key=j),
# which equals the torch module's relation[j, i] (its [src, tgt] swap).
# ----------------------------------------------------------------------------

def _rel_attn_kernel(q_ref, k_ref, v_ref, ra_ref, rb_ref, bias_ref, o_ref,
                     m_ref, l_ref, acc_ref, *, num_heads, scaling):
    kb = pl.program_id(2)

    @pl.when(kb == 0)
    def _():
        m_ref[...] = jnp.full_like(m_ref, NEG_INF)
        l_ref[...] = jnp.zeros_like(l_ref)
        acc_ref[...] = jnp.zeros_like(acc_ref)

    q = q_ref[0]          # (tq, E)   bf16
    k = k_ref[0]          # (tk, E)   bf16
    v = v_ref[0]          # (tk, E)   bf16
    ra = ra_ref[0]        # (tq, tk, E) bf16, indexed [query i, key j]
    rb = rb_ref[0]        # (tq, tk, E) bf16
    bias = bias_ref[0]    # (tq, tk)  f32 additive mask (0 or NEG_INF)

    e = q.shape[-1]
    hd = e // num_heads

    for h in range(num_heads):
        lo = h * hd
        qh = q[:, lo:lo + hd]                              # (tq, hd) bf16
        kh = k[:, lo:lo + hd]                              # (tk, hd) bf16
        vh = v[:, lo:lo + hd]                              # (tk, hd) bf16

        # q @ k^T on the MXU (contract head_dim), f32 accumulation.
        qk = jax.lax.dot_general(
            qh, kh, (((1,), (1,)), ((), ())),
            preferred_element_type=jnp.float32)            # (tq, tk)

        # relation terms:  ra_ij.(k_j + rb_ij) + q_i.rb_ij   (query-major, no transpose)
        qh32 = qh.astype(jnp.float32)
        kh32 = kh.astype(jnp.float32)
        rah = ra[:, :, lo:lo + hd].astype(jnp.float32)     # (tq, tk, hd)
        rbh = rb[:, :, lo:lo + hd].astype(jnp.float32)     # (tq, tk, hd)
        rel = jnp.sum(rah * (kh32[None, :, :] + rbh) + qh32[:, None, :] * rbh,
                      axis=-1)                             # (tq, tk)

        sc = (qk + rel) * scaling + bias                   # (tq, tk)

        # online softmax update for this head
        m_prev = m_ref[h]                                  # (tq, 1)
        m_new = jnp.maximum(m_prev, jnp.max(sc, axis=-1, keepdims=True))
        alpha = jnp.exp(m_prev - m_new)
        p = jnp.exp(sc - m_new)
        l_ref[h] = alpha * l_ref[h] + jnp.sum(p, axis=-1, keepdims=True)
        acc_ref[:, lo:lo + hd] = (
            alpha * acc_ref[:, lo:lo + hd]
            + jnp.dot(p.astype(jnp.bfloat16), vh,
                      preferred_element_type=jnp.float32))
        m_ref[h] = m_new

    @pl.when(kb == pl.num_programs(2) - 1)
    def _():
        for h in range(num_heads):
            lo = h * hd
            inv = pl.reciprocal(l_ref[h], approx=True)     # (tq, 1)
            o_ref[0, :, lo:lo + hd] = (acc_ref[:, lo:lo + hd] * inv
                                       ).astype(o_ref.dtype)


def relation_attention(q, k, v, ra, rb, bias, num_heads, scaling):
    b, t, e = q.shape
    s = k.shape[1]
    tq = _pick_tile(t)
    tk = _pick_tile(s)
    nq, nk = t // tq, s // tk
    kern = functools.partial(_rel_attn_kernel, num_heads=num_heads,
                             scaling=scaling)
    return pl.pallas_call(
        kern,
        out_shape=jax.ShapeDtypeStruct((b, t, e), jnp.float32),
        grid=(b, nq, nk),
        in_specs=[
            pl.BlockSpec((1, tq, e), lambda bi, i, j: (bi, i, 0)),
            pl.BlockSpec((1, tk, e), lambda bi, i, j: (bi, j, 0)),
            pl.BlockSpec((1, tk, e), lambda bi, i, j: (bi, j, 0)),
            pl.BlockSpec((1, tq, tk, e), lambda bi, i, j: (bi, i, j, 0)),
            pl.BlockSpec((1, tq, tk, e), lambda bi, i, j: (bi, i, j, 0)),
            pl.BlockSpec((1, tq, tk), lambda bi, i, j: (bi, i, j)),
        ],
        out_specs=pl.BlockSpec((1, tq, e), lambda bi, i, j: (bi, i, 0)),
        scratch_shapes=[
            pltpu.VMEM((num_heads, tq, 1), jnp.float32),   # running max m
            pltpu.VMEM((num_heads, tq, 1), jnp.float32),   # running denom l
            pltpu.VMEM((tq, e), jnp.float32),              # running weighted sum
        ],
        compiler_params=pltpu.CompilerParams(
            dimension_semantics=("parallel", "parallel", "arbitrary"),
            vmem_limit_bytes=64 << 20),
    )(q, k, v, ra, rb, bias)


# ----------------------------------------------------------------------------
# Fused epilogue (row-tiled): out_proj + residual + LN + FFN + residual + LN
# in one kernel -> one HBM round trip of the (B*T, E) activation per layer.
# ----------------------------------------------------------------------------

def _layernorm(z, g, b, eps=1e-5):
    mu = jnp.mean(z, axis=-1, keepdims=True)
    var = jnp.mean((z - mu) ** 2, axis=-1, keepdims=True)
    return (z - mu) * jax.lax.rsqrt(var + eps) * g + b


def _epilogue_kernel(a_ref, res_ref, wo_ref, bo_ref, g1_ref, be1_ref,
                     w1_ref, b1_ref, w2_ref, b2_ref, g2_ref, be2_ref, o_ref):
    y = jnp.dot(a_ref[...].astype(jnp.bfloat16), wo_ref[...],
                preferred_element_type=jnp.float32) + bo_ref[...]
    x = _layernorm(res_ref[...] + y, g1_ref[...], be1_ref[...])
    h = jnp.dot(x.astype(jnp.bfloat16), w1_ref[...],
                preferred_element_type=jnp.float32) + b1_ref[...]
    h = jnp.maximum(h, 0.0)
    y2 = jnp.dot(h.astype(jnp.bfloat16), w2_ref[...],
                 preferred_element_type=jnp.float32) + b2_ref[...]
    o_ref[...] = _layernorm(x + y2, g2_ref[...], be2_ref[...])


def attn_ffn_epilogue(attn2d, res2d, wo, bo, g1, be1, w1, b1, w2, b2, g2, be2,
                      row_tile=256):
    n, e = attn2d.shape
    ff = w1.shape[1]
    tm = min(row_tile, n)
    return pl.pallas_call(
        _epilogue_kernel,
        out_shape=jax.ShapeDtypeStruct((n, e), jnp.float32),
        grid=(pl.cdiv(n, tm),),
        in_specs=[
            pl.BlockSpec((tm, e), lambda i: (i, 0)),   # attention output
            pl.BlockSpec((tm, e), lambda i: (i, 0)),   # residual (layer input)
            pl.BlockSpec((e, e), lambda i: (0, 0)),    # wo (bf16)
            pl.BlockSpec((1, e), lambda i: (0, 0)),    # bo
            pl.BlockSpec((1, e), lambda i: (0, 0)),    # attn LN gamma
            pl.BlockSpec((1, e), lambda i: (0, 0)),    # attn LN beta
            pl.BlockSpec((e, ff), lambda i: (0, 0)),   # w1 (bf16)
            pl.BlockSpec((1, ff), lambda i: (0, 0)),   # b1
            pl.BlockSpec((ff, e), lambda i: (0, 0)),   # w2 (bf16)
            pl.BlockSpec((1, e), lambda i: (0, 0)),    # b2
            pl.BlockSpec((1, e), lambda i: (0, 0)),    # ff LN gamma
            pl.BlockSpec((1, e), lambda i: (0, 0)),    # ff LN beta
        ],
        out_specs=pl.BlockSpec((tm, e), lambda i: (i, 0)),
        compiler_params=pltpu.CompilerParams(dimension_semantics=("parallel",)),
    )(attn2d, res2d, wo, bo, g1, be1, w1, b1, w2, b2, g2, be2)


# ----------------------------------------------------------------------------
# Parameters / model glue
# ----------------------------------------------------------------------------

def init_params(key, num_layers, embed_dim, ff_embed_dim):
    e, ff = embed_dim, ff_embed_dim
    params = []
    for layer in range(num_layers):
        ks = jax.random.split(jax.random.fold_in(key, layer), 5)
        params.append(dict(
            # matmul weights stored as (in, out) == transposed vs torch Linear.weight,
            # pre-cast to bf16 once (no per-grid-step casts, half the weight VMEM/DMA).
            w_qkv=(0.02 * jax.random.normal(ks[0], (e, 3 * e))).astype(jnp.bfloat16),
            b_qkv=jnp.zeros((1, 3 * e), jnp.float32),
            w_rel=(0.02 * jax.random.normal(ks[1], (e, 2 * e))).astype(jnp.bfloat16),
            b_rel=jnp.zeros((1, 2 * e), jnp.float32),   # relation_in_proj has no bias
            w_out=(0.02 * jax.random.normal(ks[2], (e, e))).astype(jnp.bfloat16),
            b_out=jnp.zeros((1, e), jnp.float32),
            w_fc1=(0.02 * jax.random.normal(ks[3], (e, ff))).astype(jnp.bfloat16),
            b_fc1=jnp.zeros((1, ff), jnp.float32),
            w_fc2=(0.02 * jax.random.normal(ks[4], (ff, e))).astype(jnp.bfloat16),
            b_fc2=jnp.zeros((1, e), jnp.float32),
            g_attn_ln=jnp.ones((1, e), jnp.float32),
            b_attn_ln=jnp.zeros((1, e), jnp.float32),
            g_ff_ln=jnp.ones((1, e), jnp.float32),
            b_ff_ln=jnp.zeros((1, e), jnp.float32),
        ))
    return params


def graph_transformer_layer(x_bt2d, rel2d, bias_bts, p, bsz, t, s, num_heads):
    e = x_bt2d.shape[-1]
    hd = e // num_heads
    scaling = float(hd) ** -0.5

    # QKV projection (row-tiled, bf16 outputs, batch-major layout).
    q2d, k2d, v2d = proj_split(x_bt2d, p["w_qkv"], p["b_qkv"], 3)
    q = q2d.reshape(bsz, t, e)
    k = k2d.reshape(bsz, t, e)
    v = v2d.reshape(bsz, t, e)

    # Relation projection (row-tiled, bf16 outputs, query-major layout).
    ra2d, rb2d = proj_split(rel2d, p["w_rel"], p["b_rel"], 2)
    ra = ra2d.reshape(bsz, t, s, e)
    rb = rb2d.reshape(bsz, t, s, e)

    attn = relation_attention(q, k, v, ra, rb, bias_bts, num_heads, scaling)
    attn2d = attn.reshape(bsz * t, e)

    return attn_ffn_epilogue(attn2d, x_bt2d, p["w_out"], p["b_out"],
                             p["g_attn_ln"], p["b_attn_ln"],
                             p["w_fc1"], p["b_fc1"], p["w_fc2"], p["b_fc2"],
                             p["g_ff_ln"], p["b_ff_ln"])


def graph_transformer_forward(x, relation, params, num_heads,
                              self_padding_mask=None, self_attn_mask=None):
    """x: (T, B, E); relation: (T, S, B, E); self_padding_mask: (S, B) (1.0 = pad);
    self_attn_mask: (T, S) (1.0 = masked).  Returns (T, B, E)."""
    t, bsz, e = x.shape
    s = relation.shape[1]
    assert t == s, "relation-aware self-attention requires tgt_len == src_len"

    # One-time layout transforms shared by every layer.
    x_bt2d = jnp.transpose(x, (1, 0, 2)).reshape(bsz * t, e)
    # Query-major relation layout: rel_qm[b, i, j] == relation[j, i, b] which is exactly the
    # relation feature the torch module uses for attention pair (query=i, key=j).
    # Cast once to bf16 (halves HBM read traffic of the biggest tensor in every layer).
    rel2d = jnp.transpose(relation, (2, 1, 0, 3)).reshape(bsz * t * s, e)
    rel2d = rel2d.astype(jnp.bfloat16)

    # Combined additive mask bias (B, T, S): finite NEG_INF instead of -inf.
    bias = jnp.zeros((bsz, t, s), jnp.float32)
    if self_attn_mask is not None:
        bias = bias + jnp.where(self_attn_mask > 0.5, NEG_INF, 0.0)[None, :, :]
    if self_padding_mask is not None:
        kpm = jnp.transpose(self_padding_mask, (1, 0))            # (B, S)
        bias = bias + jnp.where(kpm > 0.5, NEG_INF, 0.0)[:, None, :]

    for p in params:
        x_bt2d = graph_transformer_layer(x_bt2d, rel2d, bias, p, bsz, t, s,
                                         num_heads)
    return jnp.transpose(x_bt2d.reshape(bsz, t, e), (1, 0, 2))


# ----------------------------------------------------------------------------
# Pure-JAX reference (mirrors the torch module) for a correctness check.
# ----------------------------------------------------------------------------

def _reference_forward(x, relation, params, num_heads,
                       self_padding_mask=None, self_attn_mask=None):
    t, bsz, e = x.shape
    s = relation.shape[1]
    h = num_heads
    hd = e // h
    bh = bsz * h
    scaling = float(hd) ** -0.5

    def layer_norm(z, g, b, eps=1e-5):
        mu = jnp.mean(z, axis=-1, keepdims=True)
        var = jnp.mean((z - mu) ** 2, axis=-1, keepdims=True)
        return (z - mu) * jax.lax.rsqrt(var + eps) * g + b

    for p in params:
        residual2d = x.reshape(t * bsz, e)
        qkv = x.reshape(t * bsz, e) @ p["w_qkv"] + p["b_qkv"]
        q = qkv[:, :e].reshape(t, bh, hd)
        k = qkv[:, e:2 * e].reshape(t, bh, hd)
        v = qkv[:, 2 * e:].reshape(t, bh, hd)

        rarb = relation.reshape(t * s * bsz, e) @ p["w_rel"] + p["b_rel"]
        ra = rarb[:, :e].reshape(t, s, bh, hd).swapaxes(0, 1)   # (s, t, bh, hd)
        rb = rarb[:, e:].reshape(t, s, bh, hd).swapaxes(0, 1)

        qe = (q[:, None] + ra) * scaling
        ke = k[None, :] + rb
        aw = jnp.einsum('ijbn,ijbn->ijb', qe, ke)               # (t, s, bh)
        if self_attn_mask is not None:
            aw = jnp.where(self_attn_mask[:, :, None] > 0.5, NEG_INF, aw)
        if self_padding_mask is not None:
            aw4 = aw.reshape(t, s, bsz, h)
            aw4 = jnp.where(self_padding_mask[None, :, :, None] > 0.5, NEG_INF,
                            aw4)
            aw = aw4.reshape(t, s, bh)
        aw = jax.nn.softmax(aw, axis=1)
        attn = jnp.einsum('ijb,jbn->bin', aw, v)                # (bh, t, hd)
        attn2d = attn.swapaxes(0, 1).reshape(t * bsz, e)
        attn2d = attn2d @ p["w_out"] + p["b_out"]
        x2d = layer_norm(residual2d + attn2d, p["g_attn_ln"], p["b_attn_ln"])
        hact = jnp.maximum(x2d @ p["w_fc1"] + p["b_fc1"], 0.0)
        y = hact @ p["w_fc2"] + p["b_fc2"]
        x = layer_norm(x2d + y, p["g_ff_ln"], p["b_ff_ln"]).reshape(t, bsz, e)
    return x


# ----------------------------------------------------------------------------
# Demo
# ----------------------------------------------------------------------------

if __name__ == "__main__":
    LAYERS = 2
    EMBED_DIM = 32
    FF_EMBED_DIM = 64
    NUM_HEADS = 4
    T = S = 8
    B = 2

    key = jax.random.PRNGKey(0)
    k_x, k_rel, k_param = jax.random.split(key, 3)

    x = jax.random.normal(k_x, (T, B, EMBED_DIM), jnp.float32)
    relation = jax.random.normal(k_rel, (T, S, B, EMBED_DIM), jnp.float32)

    # pad the last source position of batch element 1
    self_padding_mask = jnp.zeros((S, B), jnp.float32).at[S - 1, 1].set(1.0)

    params = init_params(k_param, LAYERS, EMBED_DIM, FF_EMBED_DIM)

    fwd = jax.jit(lambda x_, rel_, prm_, pad_: graph_transformer_forward(
        x_, rel_, prm_, NUM_HEADS, self_padding_mask=pad_))
    out = jax.block_until_ready(fwd(x, relation, params, self_padding_mask))

    assert out.shape == (T, B, EMBED_DIM)
    assert bool(jnp.all(jnp.isfinite(out)))

    ref = _reference_forward(x, relation, params, NUM_HEADS,
                             self_padding_mask=self_padding_mask)
    max_err = float(jnp.max(jnp.abs(out - ref)))
    assert max_err < 5e-2, f"kernel vs reference mismatch: max abs err {max_err}"

    print("KERNEL_OK")
</pallas_src>

<mosaic_0001>
module attributes {stable_mosaic.version = 11 : i64} {
  func.func @_proj_split_kernel(%arg0: i32, %arg1: memref<16x32xf32, #tpu.memory_space<vmem>>, %arg2: memref<32x96xbf16, #tpu.memory_space<vmem>>, %arg3: memref<1x96xf32, #tpu.memory_space<vmem>>, %arg4: memref<16x32xbf16, #tpu.memory_space<vmem>>, %arg5: memref<16x32xbf16, #tpu.memory_space<vmem>>, %arg6: memref<16x32xbf16, #tpu.memory_space<vmem>>) attributes {dimension_semantics = [#tpu.dimension_semantics<parallel>], iteration_bounds = array<i64: 1>, scalar_prefetch = 0 : i64, scratch_operands = 0 : i64, tpu.core_type = #tpu.core_type<tc>, window_params = [{transform_indices = @transform_0, window_bounds = array<i64: 16, 32>}, {pipeline_mode = #tpu.pipeline_mode<synchronous>, transform_indices = @transform_1, window_bounds = array<i64: 32, 96>}, {pipeline_mode = #tpu.pipeline_mode<synchronous>, transform_indices = @transform_2, window_bounds = array<i64: 1, 96>}, {transform_indices = @transform_3, window_bounds = array<i64: 16, 32>}, {transform_indices = @transform_4, window_bounds = array<i64: 16, 32>}, {transform_indices = @transform_5, window_bounds = array<i64: 16, 32>}]} {
    %c0 = arith.constant 0 : index
    %c0_0 = arith.constant 0 : index
    %0 = vector.load %arg1[%c0, %c0_0] : memref<16x32xf32, #tpu.memory_space<vmem>>, vector<16x32xf32>
    %1 = arith.truncf %0 : vector<16x32xf32> to vector<16x32xbf16>
    %c0_1 = arith.constant 0 : index
    %c0_2 = arith.constant 0 : index
    %2 = vector.load %arg2[%c0_1, %c0_2] : memref<32x96xbf16, #tpu.memory_space<vmem>>, vector<32x96xbf16>
    %cst = arith.constant dense<0.000000e+00> : vector<16x96xf32>
    %3 = tpu.matmul %1, %2, %cst {dimension_numbers = #tpu.dot_dimension_numbers<[1], [0], [0], [1], [0, 0, 1, 1], [], []>} : vector<16x32xbf16>, vector<32x96xbf16>, vector<16x96xf32> -> vector<16x96xf32>
    %c0_3 = arith.constant 0 : index
    %c0_4 = arith.constant 0 : index
    %4 = vector.load %arg3[%c0_3, %c0_4] : memref<1x96xf32, #tpu.memory_space<vmem>>, vector<1x96xf32>
    %5 = vector.broadcast %4 : vector<1x96xf32> to vector<16x96xf32>
    %6 = arith.addf %3, %5 : vector<16x96xf32>
    %7 = vector.extract_strided_slice %6 {offsets = [0, 0], sizes = [16, 32], strides = [1, 1]} : vector<16x96xf32> to vector<16x32xf32>
    %8 = arith.truncf %7 : vector<16x32xf32> to vector<16x32xbf16>
    %c0_5 = arith.constant 0 : index
    %c0_6 = arith.constant 0 : index
    %9 = vector.load %arg4[%c0_5, %c0_6] : memref<16x32xbf16, #tpu.memory_space<vmem>>, vector<16x32xbf16>
    tpu.vector_store %arg4[%c0_5, %c0_6], %8 {strides = array<i32>} : memref<16x32xbf16, #tpu.memory_space<vmem>>, vector<16x32xbf16>,
    %10 = vector.extract_strided_slice %6 {offsets = [0, 32], sizes = [16, 32], strides = [1, 1]} : vector<16x96xf32> to vector<16x32xf32>
    %11 = arith.truncf %10 : vector<16x32xf32> to vector<16x32xbf16>
    %c0_7 = arith.constant 0 : index
    %c0_8 = arith.constant 0 : index
    %12 = vector.load %arg5[%c0_7, %c0_8] : memref<16x32xbf16, #tpu.memory_space<vmem>>, vector<16x32xbf16>
    tpu.vector_store %arg5[%c0_7, %c0_8], %11 {strides = array<i32>} : memref<16x32xbf16, #tpu.memory_space<vmem>>, vector<16x32xbf16>,
    %13 = vector.extract_strided_slice %6 {offsets = [0, 64], sizes = [16, 32], strides = [1, 1]} : vector<16x96xf32> to vector<16x32xf32>
    %14 = arith.truncf %13 : vector<16x32xf32> to vector<16x32xbf16>
    %c0_9 = arith.constant 0 : index
    %c0_10 = arith.constant 0 : index
    %15 = vector.load %arg6[%c0_9, %c0_10] : memref<16x32xbf16, #tpu.memory_space<vmem>>, vector<16x32xbf16>
    tpu.vector_store %arg6[%c0_9, %c0_10], %14 {strides = array<i32>} : memref<16x32xbf16, #tpu.memory_space<vmem>>, vector<16x32xbf16>,
    return
  }
  func.func @transform_0(%arg0: i32) -> (i32, i32) {
    %c0_i32 = arith.constant 0 : i32
    %c0_i32_0 = arith.constant 0 : i32
    return %arg0, %c0_i32 : i32, i32
  }
  func.func @transform_1(%arg0: i32) -> (i32, i32) {
    %c0_i32 = arith.constant 0 : i32
    %c0_i32_0 = arith.constant 0 : i32
    %c0_i32_1 = arith.constant 0 : i32
    return %c0_i32, %c0_i32_0 : i32, i32
  }
  func.func @transform_2(%arg0: i32) -> (i32, i32) {
    %c0_i32 = arith.constant 0 : i32
    %c0_i32_0 = arith.constant 0 : i32
    %c0_i32_1 = arith.constant 0 : i32
    return %c0_i32, %c0_i32_0 : i32, i32
  }
  func.func @transform_3(%arg0: i32) -> (i32, i32) {
    %c0_i32 = arith.constant 0 : i32
    %c0_i32_0 = arith.constant 0 : i32
    return %arg0, %c0_i32 : i32, i32
  }
  func.func @transform_4(%arg0: i32) -> (i32, i32) {
    %c0_i32 = arith.constant 0 : i32
    %c0_i32_0 = arith.constant 0 : i32
    return %arg0, %c0_i32 : i32, i32
  }
  func.func @transform_5(%arg0: i32) -> (i32, i32) {
    %c0_i32 = arith.constant 0 : i32
    %c0_i32_0 = arith.constant 0 : i32
    return %arg0, %c0_i32 : i32, i32
  }
}

module attributes {stable_mosaic.version = 11 : i64} {
  func.func @_proj_split_kernel(%arg0: i32, %arg1: memref<128x32xbf16, #tpu.memory_space<vmem>>, %arg2: memref<32x64xbf16, #tpu.memory_space<vmem>>, %arg3: memref<1x64xf32, #tpu.memory_space<vmem>>, %arg4: memref<128x32xbf16, #tpu.memory_space<vmem>>, %arg5: memref<128x32xbf16, #tpu.memory_space<vmem>>) attributes {dimension_semantics = [#tpu.dimension_semantics<parallel>], iteration_bounds = array<i64: 1>, scalar_prefetch = 0 : i64, scratch_operands = 0 : i64, tpu.core_type = #tpu.core_type<tc>, window_params = [{transform_indices = @transform_0, window_bounds = array<i64: 128, 32>}, {pipeline_mode = #tpu.pipeline_mode<synchronous>, transform_indices = @transform_1, window_bounds = array<i64: 32, 64>}, {pipeline_mode = #tpu.pipeline_mode<synchronous>, transform_indices = @transform_2, window_bounds = array<i64: 1, 64>}, {transform_indices = @transform_3, window_bounds = array<i64: 128, 32>}, {transform_indices = @transform_4, window_bounds = array<i64: 128, 32>}]} {
    %c0 = arith.constant 0 : index
    %c0_0 = arith.constant 0 : index
    %0 = vector.load %arg1[%c0, %c0_0] : memref<128x32xbf16, #tpu.memory_space<vmem>>, vector<128x32xbf16>
    %c0_1 = arith.constant 0 : index
    %c0_2 = arith.constant 0 : index
    %1 = vector.load %arg2[%c0_1, %c0_2] : memref<32x64xbf16, #tpu.memory_space<vmem>>, vector<32x64xbf16>
    %cst = arith.constant dense<0.000000e+00> : vector<128x64xf32>
    %2 = tpu.matmul %0, %1, %cst {dimension_numbers = #tpu.dot_dimension_numbers<[1], [0], [0], [1], [0, 0, 1, 1], [], []>} : vector<128x32xbf16>, vector<32x64xbf16>, vector<128x64xf32> -> vector<128x64xf32>
    %c0_3 = arith.constant 0 : index
    %c0_4 = arith.constant 0 : index
    %3 = vector.load %arg3[%c0_3, %c0_4] : memref<1x64xf32, #tpu.memory_space<vmem>>, vector<1x64xf32>
    %4 = vector.broadcast %3 : vector<1x64xf32> to vector<128x64xf32>
    %5 = arith.addf %2, %4 : vector<128x64xf32>
    %6 = vector.extract_strided_slice %5 {offsets = [0, 0], sizes = [128, 32], strides = [1, 1]} : vector<128x64xf32> to vector<128x32xf32>
    %7 = arith.truncf %6 : vector<128x32xf32> to vector<128x32xbf16>
    %c0_5 = arith.constant 0 : index
    %c0_6 = arith.constant 0 : index
    %8 = vector.load %arg4[%c0_5, %c0_6] : memref<128x32xbf16, #tpu.memory_space<vmem>>, vector<128x32xbf16>
    tpu.vector_store %arg4[%c0_5, %c0_6], %7 {strides = array<i32>} : memref<128x32xbf16, #tpu.memory_space<vmem>>, vector<128x32xbf16>,
    %9 = vector.extract_strided_slice %5 {offsets = [0, 32], sizes = [128, 32], strides = [1, 1]} : vector<128x64xf32> to vector<128x32xf32>
    %10 = arith.truncf %9 : vector<128x32xf32> to vector<128x32xbf16>
    %c0_7 = arith.constant 0 : index
    %c0_8 = arith.constant 0 : index
    %11 = vector.load %arg5[%c0_7, %c0_8] : memref<128x32xbf16, #tpu.memory_space<vmem>>, vector<128x32xbf16>
    tpu.vector_store %arg5[%c0_7, %c0_8], %10 {strides = array<i32>} : memref<128x32xbf16, #tpu.memory_space<vmem>>, vector<128x32xbf16>,
    return
  }
  func.func @transform_0(%arg0: i32) -> (i32, i32) {
    %c0_i32 = arith.constant 0 : i32
    %c0_i32_0 = arith.constant 0 : i32
    return %arg0, %c0_i32 : i32, i32
  }
  func.func @transform_1(%arg0: i32) -> (i32, i32) {
    %c0_i32 = arith.constant 0 : i32
    %c0_i32_0 = arith.constant 0 : i32
    %c0_i32_1 = arith.constant 0 : i32
    return %c0_i32, %c0_i32_0 : i32, i32
  }
  func.func @transform_2(%arg0: i32) -> (i32, i32) {
    %c0_i32 = arith.constant 0 : i32
    %c0_i32_0 = arith.constant 0 : i32
    %c0_i32_1 = arith.constant 0 : i32
    return %c0_i32, %c0_i32_0 : i32, i32
  }
  func.func @transform_3(%arg0: i32) -> (i32, i32) {
    %c0_i32 = arith.constant 0 : i32
    %c0_i32_0 = arith.constant 0 : i32
    return %arg0, %c0_i32 : i32, i32
  }
  func.func @transform_4(%arg0: i32) -> (i32, i32) {
    %c0_i32 = arith.constant 0 : i32
    %c0_i32_0 = arith.constant 0 : i32
    return %arg0, %c0_i32 : i32, i32
  }
}

module attributes {stable_mosaic.version = 11 : i64} {
  func.func @_epilogue_kernel(%arg0: i32, %arg1: memref<16x32xf32, #tpu.memory_space<vmem>>, %arg2: memref<16x32xf32, #tpu.memory_space<vmem>>, %arg3: memref<32x32xbf16, #tpu.memory_space<vmem>>, %arg4: memref<1x32xf32, #tpu.memory_space<vmem>>, %arg5: memref<1x32xf32, #tpu.memory_space<vmem>>, %arg6: memref<1x32xf32, #tpu.memory_space<vmem>>, %arg7: memref<32x64xbf16, #tpu.memory_space<vmem>>, %arg8: memref<1x64xf32, #tpu.memory_space<vmem>>, %arg9: memref<64x32xbf16, #tpu.memory_space<vmem>>, %arg10: memref<1x32xf32, #tpu.memory_space<vmem>>, %arg11: memref<1x32xf32, #tpu.memory_space<vmem>>, %arg12: memref<1x32xf32, #tpu.memory_space<vmem>>, %arg13: memref<16x32xf32, #tpu.memory_space<vmem>>) attributes {dimension_semantics = [#tpu.dimension_semantics<parallel>], iteration_bounds = array<i64: 1>, scalar_prefetch = 0 : i64, scratch_operands = 0 : i64, tpu.core_type = #tpu.core_type<tc>, window_params = [{transform_indices = @transform_0, window_bounds = array<i64: 16, 32>}, {transform_indices = @transform_1, window_bounds = array<i64: 16, 32>}, {pipeline_mode = #tpu.pipeline_mode<synchronous>, transform_indices = @transform_2, window_bounds = array<i64: 32, 32>}, {pipeline_mode = #tpu.pipeline_mode<synchronous>, transform_indices = @transform_3, window_bounds = array<i64: 1, 32>}, {pipeline_mode = #tpu.pipeline_mode<synchronous>, transform_indices = @transform_4, window_bounds = array<i64: 1, 32>}, {pipeline_mode = #tpu.pipeline_mode<synchronous>, transform_indices = @transform_5, window_bounds = array<i64: 1, 32>}, {pipeline_mode = #tpu.pipeline_mode<synchronous>, transform_indices = @transform_6, window_bounds = array<i64: 32, 64>}, {pipeline_mode = #tpu.pipeline_mode<synchronous>, transform_indices = @transform_7, window_bounds = array<i64: 1, 64>}, {pipeline_mode = #tpu.pipeline_mode<synchronous>, transform_indices = @transform_8, window_bounds = array<i64: 64, 32>}, {pipeline_mode = #tpu.pipeline_mode<synchronous>, transform_indices = @transform_9, window_bounds = array<i64: 1, 32>}, {pipeline_mode = #tpu.pipeline_mode<synchronous>, transform_indices = @transform_10, window_bounds = array<i64: 1, 32>}, {pipeline_mode = #tpu.pipeline_mode<synchronous>, transform_indices = @transform_11, window_bounds = array<i64: 1, 32>}, {transform_indices = @transform_12, window_bounds = array<i64: 16, 32>}]} {
    %c0 = arith.constant 0 : index
    %c0_0 = arith.constant 0 : index
    %0 = vector.load %arg1[%c0, %c0_0] : memref<16x32xf32, #tpu.memory_space<vmem>>, vector<16x32xf32>
    %1 = arith.truncf %0 : vector<16x32xf32> to vector<16x32xbf16>
    %c0_1 = arith.constant 0 : index
    %c0_2 = arith.constant 0 : index
    %2 = vector.load %arg3[%c0_1, %c0_2] : memref<32x32xbf16, #tpu.memory_space<vmem>>, vector<32x32xbf16>
    %cst = arith.constant dense<0.000000e+00> : vector<16x32xf32>
    %3 = tpu.matmul %1, %2, %cst {dimension_numbers = #tpu.dot_dimension_numbers<[1], [0], [0], [1], [0, 0, 1, 1], [], []>} : vector<16x32xbf16>, vector<32x32xbf16>, vector<16x32xf32> -> vector<16x32xf32>
    %c0_3 = arith.constant 0 : index
    %c0_4 = arith.constant 0 : index
    %4 = vector.load %arg4[%c0_3, %c0_4] : memref<1x32xf32, #tpu.memory_space<vmem>>, vector<1x32xf32>
    %5 = vector.broadcast %4 : vector<1x32xf32> to vector<16x32xf32>
    %6 = arith.addf %3, %5 : vector<16x32xf32>
    %c0_5 = arith.constant 0 : index
    %c0_6 = arith.constant 0 : index
    %7 = vector.load %arg2[%c0_5, %c0_6] : memref<16x32xf32, #tpu.memory_space<vmem>>, vector<16x32xf32>
    %8 = arith.addf %7, %6 : vector<16x32xf32>
    %c0_7 = arith.constant 0 : index
    %c0_8 = arith.constant 0 : index
    %9 = vector.load %arg5[%c0_7, %c0_8] : memref<1x32xf32, #tpu.memory_space<vmem>>, vector<1x32xf32>
    %c0_9 = arith.constant 0 : index
    %c0_10 = arith.constant 0 : index
    %10 = vector.load %arg6[%c0_9, %c0_10] : memref<1x32xf32, #tpu.memory_space<vmem>>, vector<1x32xf32>
    %cst_11 = arith.constant dense<0.000000e+00> : vector<16xf32>
    %11 = vector.multi_reduction <add>, %8, %cst_11 [1] : vector<16x32xf32> to vector<16xf32>
    %12 = vector.shape_cast %11 : vector<16xf32> to vector<16x1xf32>
    %cst_12 = arith.constant 3.200000e+01 : f32
    %13 = vector.broadcast %cst_12 : f32 to vector<16x1xf32>
    %14 = arith.divf %12, %13 : vector<16x1xf32>
    %15 = vector.broadcast %14 : vector<16x1xf32> to vector<16x32xf32>
    %16 = arith.subf %8, %15 : vector<16x32xf32>
    %17 = arith.mulf %16, %16 : vector<16x32xf32>
    %cst_13 = arith.constant dense<0.000000e+00> : vector<16xf32>
    %18 = vector.multi_reduction <add>, %17, %cst_13 [1] : vector<16x32xf32> to vector<16xf32>
    %19 = vector.shape_cast %18 : vector<16xf32> to vector<16x1xf32>
    %cst_14 = arith.constant 3.200000e+01 : f32
    %20 = vector.broadcast %cst_14 : f32 to vector<16x1xf32>
    %21 = arith.divf %19, %20 : vector<16x1xf32>
    %22 = vector.broadcast %14 : vector<16x1xf32> to vector<16x32xf32>
    %23 = arith.subf %8, %22 : vector<16x32xf32>
    %cst_15 = arith.constant 9.99999974E-6 : f32
    %24 = vector.broadcast %cst_15 : f32 to vector<16x1xf32>
    %25 = arith.addf %21, %24 : vector<16x1xf32>
    %26 = math.rsqrt %25 : vector<16x1xf32>
    %27 = vector.broadcast %26 : vector<16x1xf32> to vector<16x32xf32>
    %28 = arith.mulf %23, %27 : vector<16x32xf32>
    %29 = vector.broadcast %9 : vector<1x32xf32> to vector<16x32xf32>
    %30 = arith.mulf %28, %29 : vector<16x32xf32>
    %31 = vector.broadcast %10 : vector<1x32xf32> to vector<16x32xf32>
    %32 = arith.addf %30, %31 : vector<16x32xf32>
    %33 = arith.truncf %32 : vector<16x32xf32> to vector<16x32xbf16>
    %c0_16 = arith.constant 0 : index
    %c0_17 = arith.constant 0 : index
    %34 = vector.load %arg7[%c0_16, %c0_17] : memref<32x64xbf16, #tpu.memory_space<vmem>>, vector<32x64xbf16>
    %cst_18 = arith.constant dense<0.000000e+00> : vector<16x64xf32>
    %35 = tpu.matmul %33, %34, %cst_18 {dimension_numbers = #tpu.dot_dimension_numbers<[1], [0], [0], [1], [0, 0, 1, 1], [], []>} : vector<16x32xbf16>, vector<32x64xbf16>, vector<16x64xf32> -> vector<16x64xf32>
    %c0_19 = arith.constant 0 : index
    %c0_20 = arith.constant 0 : index
    %36 = vector.load %arg8[%c0_19, %c0_20] : memref<1x64xf32, #tpu.memory_space<vmem>>, vector<1x64xf32>
    %37 = vector.broadcast %36 : vector<1x64xf32> to vector<16x64xf32>
    %38 = arith.addf %35, %37 : vector<16x64xf32>
    %cst_21 = arith.constant 0.000000e+00 : f32
    %39 = vector.broadcast %cst_21 : f32 to vector<16x64xf32>
    %40 = arith.maximumf %38, %39 : vector<16x64xf32>
    %41 = arith.truncf %40 : vector<16x64xf32> to vector<16x64xbf16>
    %c0_22 = arith.constant 0 : index
    %c0_23 = arith.constant 0 : index
    %42 = vector.load %arg9[%c0_22, %c0_23] : memref<64x32xbf16, #tpu.memory_space<vmem>>, vector<64x32xbf16>
    %cst_24 = arith.constant dense<0.000000e+00> : vector<16x32xf32>
    %43 = tpu.matmul %41, %42, %cst_24 {dimension_numbers = #tpu.dot_dimension_numbers<[1], [0], [0], [1], [0, 0, 1, 1], [], []>} : vector<16x64xbf16>, vector<64x32xbf16>, vector<16x32xf32> -> vector<16x32xf32>
    %c0_25 = arith.constant 0 : index
    %c0_26 = arith.constant 0 : index
    %44 = vector.load %arg10[%c0_25, %c0_26] : memref<1x32xf32, #tpu.memory_space<vmem>>, vector<1x32xf32>
    %45 = vector.broadcast %44 : vector<1x32xf32> to vector<16x32xf32>
    %46 = arith.addf %43, %45 : vector<16x32xf32>
    %47 = arith.addf %32, %46 : vector<16x32xf32>
    %c0_27 = arith.constant 0 : index
    %c0_28 = arith.constant 0 : index
    %48 = vector.load %arg11[%c0_27, %c0_28] : memref<1x32xf32, #tpu.memory_space<vmem>>, vector<1x32xf32>
    %c0_29 = arith.constant 0 : index
    %c0_30 = arith.constant 0 : index
    %49 = vector.load %arg12[%c0_29, %c0_30] : memref<1x32xf32, #tpu.memory_space<vmem>>, vector<1x32xf32>
    %cst_31 = arith.constant dense<0.000000e+00> : vector<16xf32>
    %50 = vector.multi_reduction <add>, %47, %cst_31 [1] : vector<16x32xf32> to vector<16xf32>
    %51 = vector.shape_cast %50 : vector<16xf32> to vector<16x1xf32>
    %cst_32 = arith.constant 3.200000e+01 : f32
    %52 = vector.broadcast %cst_32 : f32 to vector<16x1xf32>
    %53 = arith.divf %51, %52 : vector<16x1xf32>
    %54 = vector.broadcast %53 : vector<16x1xf32> to vector<16x32xf32>
    %55 = arith.subf %47, %54 : vector<16x32xf32>
    %56 = arith.mulf %55, %55 : vector<16x32xf32>
    %cst_33 = arith.constant dense<0.000000e+00> : vector<16xf32>
    %57 = vector.multi_reduction <add>, %56, %cst_33 [1] : vector<16x32xf32> to vector<16xf32>
    %58 = vector.shape_cast %57 : vector<16xf32> to vector<16x1xf32>
    %cst_34 = arith.constant 3.200000e+01 : f32
    %59 = vector.broadcast %cst_34 : f32 to vector<16x1xf32>
    %60 = arith.divf %58, %59 : vector<16x1xf32>
    %61 = vector.broadcast %53 : vector<16x1xf32> to vector<16x32xf32>
    %62 = arith.subf %47, %61 : vector<16x32xf32>
    %cst_35 = arith.constant 9.99999974E-6 : f32
    %63 = vector.broadcast %cst_35 : f32 to vector<16x1xf32>
    %64 = arith.addf %60, %63 : vector<16x1xf32>
    %65 = math.rsqrt %64 : vector<16x1xf32>
    %66 = vector.broadcast %65 : vector<16x1xf32> to vector<16x32xf32>
    %67 = arith.mulf %62, %66 : vector<16x32xf32>
    %68 = vector.broadcast %48 : vector<1x32xf32> to vector<16x32xf32>
    %69 = arith.mulf %67, %68 : vector<16x32xf32>
    %70 = vector.broadcast %49 : vector<1x32xf32> to vector<16x32xf32>
    %71 = arith.addf %69, %70 : vector<16x32xf32>
    %c0_36 = arith.constant 0 : index
    %c0_37 = arith.constant 0 : index
    %72 = vector.load %arg13[%c0_36, %c0_37] : memref<16x32xf32, #tpu.memory_space<vmem>>, vector<16x32xf32>
    tpu.vector_store %arg13[%c0_36, %c0_37], %71 {strides = array<i32>} : memref<16x32xf32, #tpu.memory_space<vmem>>, vector<16x32xf32>,
    return
  }
  func.func @transform_0(%arg0: i32) -> (i32, i32) {
    %c0_i32 = arith.constant 0 : i32
    %c0_i32_0 = arith.constant 0 : i32
    return %arg0, %c0_i32 : i32, i32
  }
  func.func @transform_1(%arg0: i32) -> (i32, i32) {
    %c0_i32 = arith.constant 0 : i32
    %c0_i32_0 = arith.constant 0 : i32
    return %arg0, %c0_i32 : i32, i32
  }
  func.func @transform_2(%arg0: i32) -> (i32, i32) {
    %c0_i32 = arith.constant 0 : i32
    %c0_i32_0 = arith.constant 0 : i32
    %c0_i32_1 = arith.constant 0 : i32
    return %c0_i32, %c0_i32_0 : i32, i32
  }
  func.func @transform_3(%arg0: i32) -> (i32, i32) {
    %c0_i32 = arith.constant 0 : i32
    %c0_i32_0 = arith.constant 0 : i32
    %c0_i32_1 = arith.constant 0 : i32
    return %c0_i32, %c0_i32_0 : i32, i32
  }
  func.func @transform_4(%arg0: i32) -> (i32, i32) {
    %c0_i32 = arith.constant 0 : i32
    %c0_i32_0 = arith.constant 0 : i32
    %c0_i32_1 = arith.constant 0 : i32
    return %c0_i32, %c0_i32_0 : i32, i32
  }
  func.func @transform_5(%arg0: i32) -> (i32, i32) {
    %c0_i32 = arith.constant 0 : i32
    %c0_i32_0 = arith.constant 0 : i32
    %c0_i32_1 = arith.constant 0 : i32
    return %c0_i32, %c0_i32_0 : i32, i32
  }
  func.func @transform_6(%arg0: i32) -> (i32, i32) {
    %c0_i32 = arith.constant 0 : i32
    %c0_i32_0 = arith.constant 0 : i32
    %c0_i32_1 = arith.constant 0 : i32
    return %c0_i32, %c0_i32_0 : i32, i32
  }
  func.func @transform_7(%arg0: i32) -> (i32, i32) {
    %c0_i32 = arith.constant 0 : i32
    %c0_i32_0 = arith.constant 0 : i32
    %c0_i32_1 = arith.constant 0 : i32
    return %c0_i32, %c0_i32_0 : i32, i32
  }
  func.func @transform_8(%arg0: i32) -> (i32, i32) {
    %c0_i32 = arith.constant 0 : i32
    %c0_i32_0 = arith.constant 0 : i32
    %c0_i32_1 = arith.constant 0 : i32
    return %c0_i32, %c0_i32_0 : i32, i32
  }
  func.func @transform_9(%arg0: i32) -> (i32, i32) {
    %c0_i32 = arith.constant 0 : i32
    %c0_i32_0 = arith.constant 0 : i32
    %c0_i32_1 = arith.constant 0 : i32
    return %c0_i32, %c0_i32_0 : i32, i32
  }
  func.func @transform_10(%arg0: i32) -> (i32, i32) {
    %c0_i32 = arith.constant 0 : i32
    %c0_i32_0 = arith.constant 0 : i32
    %c0_i32_1 = arith.constant 0 : i32
    return %c0_i32, %c0_i32_0 : i32, i32
  }
  func.func @transform_11(%arg0: i32) -> (i32, i32) {
    %c0_i32 = arith.constant 0 : i32
    %c0_i32_0 = arith.constant 0 : i32
    %c0_i32_1 = arith.constant 0 : i32
    return %c0_i32, %c0_i32_0 : i32, i32
  }
  func.func @transform_12(%arg0: i32) -> (i32, i32) {
    %c0_i32 = arith.constant 0 : i32
    %c0_i32_0 = arith.constant 0 : i32
    return %arg0, %c0_i32 : i32, i32
  }
}

module attributes {stable_mosaic.version = 11 : i64} {
  func.func @_rel_attn_kernel(%arg0: i32, %arg1: i32, %arg2: i32, %arg3: memref<1x8x32xbf16, #tpu.memory_space<vmem>>, %arg4: memref<1x8x32xbf16, #tpu.memory_space<vmem>>, %arg5: memref<1x8x32xbf16, #tpu.memory_space<vmem>>, %arg6: memref<1x8x8x32xbf16, #tpu.memory_space<vmem>>, %arg7: memref<1x8x8x32xbf16, #tpu.memory_space<vmem>>, %arg8: memref<1x8x8xf32, #tpu.memory_space<vmem>>, %arg9: memref<1x8x32xf32, #tpu.memory_space<vmem>>, %arg10: memref<4x8x1xf32, #tpu.memory_space<vmem>>, %arg11: memref<4x8x1xf32, #tpu.memory_space<vmem>>, %arg12: memref<8x32xf32, #tpu.memory_space<vmem>>) attributes {dimension_semantics = [#tpu.dimension_semantics<parallel>, #tpu.dimension_semantics<parallel>, #tpu.dimension_semantics<arbitrary>], iteration_bounds = array<i64: 2, 1, 1>, scalar_prefetch = 0 : i64, scratch_operands = 3 : i64, tpu.core_type = #tpu.core_type<tc>, window_params = [{transform_indices = @transform_0, window_bounds = array<i64: 1, 8, 32>}, {transform_indices = @transform_1, window_bounds = array<i64: 1, 8, 32>}, {transform_indices = @transform_2, window_bounds = array<i64: 1, 8, 32>}, {transform_indices = @transform_3, window_bounds = array<i64: 1, 8, 8, 32>}, {transform_indices = @transform_4, window_bounds = array<i64: 1, 8, 8, 32>}, {transform_indices = @transform_5, window_bounds = array<i64: 1, 8, 8>}, {transform_indices = @transform_6, window_bounds = array<i64: 1, 8, 32>}]} {
    %c0_i32 = arith.constant 0 : i32
    %0 = arith.cmpi eq, %arg2, %c0_i32 : i32
    %1 = arith.extui %0 : i1 to i32
    %c0_i32_0 = arith.constant 0 : i32
    %2 = arith.cmpi ne, %1, %c0_i32_0 : i32
    scf.if %2 {
      %cst_103 = arith.constant -1.000000e+30 : f32
      %226 = vector.broadcast %cst_103 : f32 to vector<4x8x1xf32>
      %c0_104 = arith.constant 0 : index
      %c0_105 = arith.constant 0 : index
      %c0_106 = arith.constant 0 : index
      %227 = vector.load %arg10[%c0_104, %c0_105, %c0_106] : memref<4x8x1xf32, #tpu.memory_space<vmem>>, vector<4x8x1xf32>
      tpu.vector_store %arg10[%c0_104, %c0_105, %c0_106], %226 {strides = array<i32>} : memref<4x8x1xf32, #tpu.memory_space<vmem>>, vector<4x8x1xf32>,
      %cst_107 = arith.constant 0.000000e+00 : f32
      %228 = vector.broadcast %cst_107 : f32 to vector<4x8x1xf32>
      %c0_108 = arith.constant 0 : index
      %c0_109 = arith.constant 0 : index
      %c0_110 = arith.constant 0 : index
      %229 = vector.load %arg11[%c0_108, %c0_109, %c0_110] : memref<4x8x1xf32, #tpu.memory_space<vmem>>, vector<4x8x1xf32>
      tpu.vector_store %arg11[%c0_108, %c0_109, %c0_110], %228 {strides = array<i32>} : memref<4x8x1xf32, #tpu.memory_space<vmem>>, vector<4x8x1xf32>,
      %cst_111 = arith.constant 0.000000e+00 : f32
      %230 = vector.broadcast %cst_111 : f32 to vector<8x32xf32>
      %c0_112 = arith.constant 0 : index
      %c0_113 = arith.constant 0 : index
      %231 = vector.load %arg12[%c0_112, %c0_113] : memref<8x32xf32, #tpu.memory_space<vmem>>, vector<8x32xf32>
      tpu.vector_store %arg12[%c0_112, %c0_113], %230 {strides = array<i32>} : memref<8x32xf32, #tpu.memory_space<vmem>>, vector<8x32xf32>,
    } else {
    }
    %c0 = arith.constant 0 : index
    %c0_1 = arith.constant 0 : index
    %c0_2 = arith.constant 0 : index
    %3 = vector.load %arg3[%c0, %c0_1, %c0_2] : memref<1x8x32xbf16, #tpu.memory_space<vmem>>, vector<1x8x32xbf16>
    %4 = vector.shape_cast %3 : vector<1x8x32xbf16> to vector<8x32xbf16>
    %c0_3 = arith.constant 0 : index
    %c0_4 = arith.constant 0 : index
    %c0_5 = arith.constant 0 : index
    %5 = vector.load %arg4[%c0_3, %c0_4, %c0_5] : memref<1x8x32xbf16, #tpu.memory_space<vmem>>, vector<1x8x32xbf16>
    %6 = vector.shape_cast %5 : vector<1x8x32xbf16> to vector<8x32xbf16>
    %c0_6 = arith.constant 0 : index
    %c0_7 = arith.constant 0 : index
    %c0_8 = arith.constant 0 : index
    %7 = vector.load %arg5[%c0_6, %c0_7, %c0_8] : memref<1x8x32xbf16, #tpu.memory_space<vmem>>, vector<1x8x32xbf16>
    %8 = vector.shape_cast %7 : vector<1x8x32xbf16> to vector<8x32xbf16>
    %c0_9 = arith.constant 0 : index
    %c0_10 = arith.constant 0 : index
    %c0_11 = arith.constant 0 : index
    %c0_12 = arith.constant 0 : index
    %9 = vector.load %arg6[%c0_9, %c0_10, %c0_11, %c0_12] : memref<1x8x8x32xbf16, #tpu.memory_space<vmem>>, vector<1x8x8x32xbf16>
    %10 = vector.shape_cast %9 : vector<1x8x8x32xbf16> to vector<8x8x32xbf16>
    %c0_13 = arith.constant 0 : index
    %c0_14 = arith.constant 0 : index
    %c0_15 = arith.constant 0 : index
    %c0_16 = arith.constant 0 : index
    %11 = vector.load %arg7[%c0_13, %c0_14, %c0_15, %c0_16] : memref<1x8x8x32xbf16, #tpu.memory_space<vmem>>, vector<1x8x8x32xbf16>
    %12 = vector.shape_cast %11 : vector<1x8x8x32xbf16> to vector<8x8x32xbf16>
    %c0_17 = arith.constant 0 : index
    %c0_18 = arith.constant 0 : index
    %c0_19 = arith.constant 0 : index
    %13 = vector.load %arg8[%c0_17, %c0_18, %c0_19] : memref<1x8x8xf32, #tpu.memory_space<vmem>>, vector<1x8x8xf32>
    %14 = vector.shape_cast %13 : vector<1x8x8xf32> to vector<8x8xf32>
    %15 = vector.extract_strided_slice %4 {offsets = [0, 0], sizes = [8, 8], strides = [1, 1]} : vector<8x32xbf16> to vector<8x8xbf16>
    %16 = vector.extract_strided_slice %6 {offsets = [0, 0], sizes = [8, 8], strides = [1, 1]} : vector<8x32xbf16> to vector<8x8xbf16>
    %17 = vector.extract_strided_slice %8 {offsets = [0, 0], sizes = [8, 8], strides = [1, 1]} : vector<8x32xbf16> to vector<8x8xbf16>
    %cst = arith.constant dense<0.000000e+00> : vector<8x8xf32>
    %18 = tpu.matmul %15, %16, %cst {dimension_numbers = #tpu.dot_dimension_numbers<[1], [1], [0], [0], [0, 0, 1, 0], [], []>} : vector<8x8xbf16>, vector<8x8xbf16>, vector<8x8xf32> -> vector<8x8xf32>
    %19 = arith.extf %15 : vector<8x8xbf16> to vector<8x8xf32>
    %20 = arith.extf %16 : vector<8x8xbf16> to vector<8x8xf32>
    %21 = vector.extract_strided_slice %10 {offsets = [0, 0, 0], sizes = [8, 8, 8], strides = [1, 1, 1]} : vector<8x8x32xbf16> to vector<8x8x8xbf16>
    %22 = arith.extf %21 : vector<8x8x8xbf16> to vector<8x8x8xf32>
    %23 = vector.extract_strided_slice %12 {offsets = [0, 0, 0], sizes = [8, 8, 8], strides = [1, 1, 1]} : vector<8x8x32xbf16> to vector<8x8x8xbf16>
    %24 = arith.extf %23 : vector<8x8x8xbf16> to vector<8x8x8xf32>
    %25 = vector.shape_cast %20 : vector<8x8xf32> to vector<1x8x8xf32>
    %26 = vector.broadcast %25 : vector<1x8x8xf32> to vector<8x8x8xf32>
    %27 = arith.addf %26, %24 : vector<8x8x8xf32>
    %28 = arith.mulf %22, %27 : vector<8x8x8xf32>
    %29 = vector.shape_cast %19 : vector<8x8xf32> to vector<8x1x8xf32>
    %30 = vector.broadcast %29 : vector<8x1x8xf32> to vector<8x8x8xf32>
    %31 = arith.mulf %30, %24 : vector<8x8x8xf32>
    %32 = arith.addf %28, %31 : vector<8x8x8xf32>
    %cst_20 = arith.constant dense<0.000000e+00> : vector<8x8xf32>
    %33 = vector.multi_reduction <add>, %32, %cst_20 [2] : vector<8x8x8xf32> to vector<8x8xf32>
    %34 = arith.addf %18, %33 : vector<8x8xf32>
    %cst_21 = arith.constant 0.353553385 : f32
    %35 = vector.broadcast %cst_21 : f32 to vector<8x8xf32>
    %36 = arith.mulf %34, %35 : vector<8x8xf32>
    %37 = arith.addf %36, %14 : vector<8x8xf32>
    %c0_22 = arith.constant 0 : index
    %c0_23 = arith.constant 0 : index
    %c0_24 = arith.constant 0 : index
    %38 = vector.load %arg10[%c0_22, %c0_23, %c0_24] : memref<4x8x1xf32, #tpu.memory_space<vmem>>, vector<1x8x1xf32>
    %39 = vector.shape_cast %38 : vector<1x8x1xf32> to vector<8x1xf32>
    %cst_25 = arith.constant dense<0xFF800000> : vector<8xf32>
    %40 = vector.multi_reduction <maximumf>, %37, %cst_25 [1] : vector<8x8xf32> to vector<8xf32>
    %41 = vector.shape_cast %40 : vector<8xf32> to vector<8x1xf32>
    %42 = arith.maximumf %39, %41 : vector<8x1xf32>
    %43 = arith.subf %39, %42 : vector<8x1xf32>
    %44 = math.exp %43 : vector<8x1xf32>
    %45 = vector.broadcast %42 : vector<8x1xf32> to vector<8x8xf32>
    %46 = arith.subf %37, %45 : vector<8x8xf32>
    %47 = math.exp %46 : vector<8x8xf32>
    %c0_26 = arith.constant 0 : index
    %c0_27 = arith.constant 0 : index
    %c0_28 = arith.constant 0 : index
    %48 = vector.load %arg11[%c0_26, %c0_27, %c0_28] : memref<4x8x1xf32, #tpu.memory_space<vmem>>, vector<1x8x1xf32>
    %49 = vector.shape_cast %48 : vector<1x8x1xf32> to vector<8x1xf32>
    %50 = arith.mulf %44, %49 : vector<8x1xf32>
    %cst_29 = arith.constant dense<0.000000e+00> : vector<8xf32>
    %51 = vector.multi_reduction <add>, %47, %cst_29 [1] : vector<8x8xf32> to vector<8xf32>
    %52 = vector.shape_cast %51 : vector<8xf32> to vector<8x1xf32>
    %53 = arith.addf %50, %52 : vector<8x1xf32>
    %c0_30 = arith.constant 0 : index
    %c0_31 = arith.constant 0 : index
    %c0_32 = arith.constant 0 : index
    %54 = vector.load %arg11[%c0_30, %c0_31, %c0_32] : memref<4x8x1xf32, #tpu.memory_space<vmem>>, vector<1x8x1xf32>
    %55 = vector.shape_cast %54 : vector<1x8x1xf32> to vector<8x1xf32>
    %56 = vector.shape_cast %53 : vector<8x1xf32> to vector<1x8x1xf32>
    tpu.vector_store %arg11[%c0_30, %c0_31, %c0_32], %56 {strides = array<i32>} : memref<4x8x1xf32, #tpu.memory_space<vmem>>, vector<1x8x1xf32>,
    %c0_33 = arith.constant 0 : index
    %c0_34 = arith.constant 0 : index
    %57 = vector.load %arg12[%c0_33, %c0_34] : memref<8x32xf32, #tpu.memory_space<vmem>>, vector<8x8xf32>
    %58 = vector.broadcast %44 : vector<8x1xf32> to vector<8x8xf32>
    %59 = arith.mulf %58, %57 : vector<8x8xf32>
    %60 = arith.truncf %47 : vector<8x8xf32> to vector<8x8xbf16>
    %cst_35 = arith.constant dense<0.000000e+00> : vector<8x8xf32>
    %61 = tpu.matmul %60, %17, %cst_35 {dimension_numbers = #tpu.dot_dimension_numbers<[1], [0], [0], [1], [0, 0, 1, 1], [], []>} : vector<8x8xbf16>, vector<8x8xbf16>, vector<8x8xf32> -> vector<8x8xf32>
    %62 = arith.addf %59, %61 : vector<8x8xf32>
    %c0_36 = arith.constant 0 : index
    %c0_37 = arith.constant 0 : index
    %63 = vector.load %arg12[%c0_36, %c0_37] : memref<8x32xf32, #tpu.memory_space<vmem>>, vector<8x8xf32>
    tpu.vector_store %arg12[%c0_36, %c0_37], %62 {strides = array<i32>} : memref<8x32xf32, #tpu.memory_space<vmem>>, vector<8x8xf32>,
    %c0_38 = arith.constant 0 : index
    %c0_39 = arith.constant 0 : index
    %c0_40 = arith.constant 0 : index
    %64 = vector.load %arg10[%c0_38, %c0_39, %c0_40] : memref<4x8x1xf32, #tpu.memory_space<vmem>>, vector<1x8x1xf32>
    %65 = vector.shape_cast %64 : vector<1x8x1xf32> to vector<8x1xf32>
    %66 = vector.shape_cast %42 : vector<8x1xf32> to vector<1x8x1xf32>
    tpu.vector_store %arg10[%c0_38, %c0_39, %c0_40], %66 {strides = array<i32>} : memref<4x8x1xf32, #tpu.memory_space<vmem>>, vector<1x8x1xf32>,
    %67 = vector.extract_strided_slice %4 {offsets = [0, 8], sizes = [8, 8], strides = [1, 1]} : vector<8x32xbf16> to vector<8x8xbf16>
    %68 = vector.extract_strided_slice %6 {offsets = [0, 8], sizes = [8, 8], strides = [1, 1]} : vector<8x32xbf16> to vector<8x8xbf16>
    %69 = vector.extract_strided_slice %8 {offsets = [0, 8], sizes = [8, 8], strides = [1, 1]} : vector<8x32xbf16> to vector<8x8xbf16>
    %cst_41 = arith.constant dense<0.000000e+00> : vector<8x8xf32>
    %70 = tpu.matmul %67, %68, %cst_41 {dimension_numbers = #tpu.dot_dimension_numbers<[1], [1], [0], [0], [0, 0, 1, 0], [], []>} : vector<8x8xbf16>, vector<8x8xbf16>, vector<8x8xf32> -> vector<8x8xf32>
    %71 = arith.extf %67 : vector<8x8xbf16> to vector<8x8xf32>
    %72 = arith.extf %68 : vector<8x8xbf16> to vector<8x8xf32>
    %73 = vector.extract_strided_slice %10 {offsets = [0, 0, 8], sizes = [8, 8, 8], strides = [1, 1, 1]} : vector<8x8x32xbf16> to vector<8x8x8xbf16>
    %74 = arith.extf %73 : vector<8x8x8xbf16> to vector<8x8x8xf32>
    %75 = vector.extract_strided_slice %12 {offsets = [0, 0, 8], sizes = [8, 8, 8], strides = [1, 1, 1]} : vector<8x8x32xbf16> to vector<8x8x8xbf16>
    %76 = arith.extf %75 : vector<8x8x8xbf16> to vector<8x8x8xf32>
    %77 = vector.shape_cast %72 : vector<8x8xf32> to vector<1x8x8xf32>
    %78 = vector.broadcast %77 : vector<1x8x8xf32> to vector<8x8x8xf32>
    %79 = arith.addf %78, %76 : vector<8x8x8xf32>
    %80 = arith.mulf %74, %79 : vector<8x8x8xf32>
    %81 = vector.shape_cast %71 : vector<8x8xf32> to vector<8x1x8xf32>
    %82 = vector.broadcast %81 : vector<8x1x8xf32> to vector<8x8x8xf32>
    %83 = arith.mulf %82, %76 : vector<8x8x8xf32>
    %84 = arith.addf %80, %83 : vector<8x8x8xf32>
    %cst_42 = arith.constant dense<0.000000e+00> : vector<8x8xf32>
    %85 = vector.multi_reduction <add>, %84, %cst_42 [2] : vector<8x8x8xf32> to vector<8x8xf32>
    %86 = arith.addf %70, %85 : vector<8x8xf32>
    %cst_43 = arith.constant 0.353553385 : f32
    %87 = vector.broadcast %cst_43 : f32 to vector<8x8xf32>
    %88 = arith.mulf %86, %87 : vector<8x8xf32>
    %89 = arith.addf %88, %14 : vector<8x8xf32>
    %c1 = arith.constant 1 : index
    %c0_44 = arith.constant 0 : index
    %c0_45 = arith.constant 0 : index
    %90 = vector.load %arg10[%c1, %c0_44, %c0_45] : memref<4x8x1xf32, #tpu.memory_space<vmem>>, vector<1x8x1xf32>
    %91 = vector.shape_cast %90 : vector<1x8x1xf32> to vector<8x1xf32>
    %cst_46 = arith.constant dense<0xFF800000> : vector<8xf32>
    %92 = vector.multi_reduction <maximumf>, %89, %cst_46 [1] : vector<8x8xf32> to vector<8xf32>
    %93 = vector.shape_cast %92 : vector<8xf32> to vector<8x1xf32>
    %94 = arith.maximumf %91, %93 : vector<8x1xf32>
    %95 = arith.subf %91, %94 : vector<8x1xf32>
    %96 = math.exp %95 : vector<8x1xf32>
    %97 = vector.broadcast %94 : vector<8x1xf32> to vector<8x8xf32>
    %98 = arith.subf %89, %97 : vector<8x8xf32>
    %99 = math.exp %98 : vector<8x8xf32>
    %c1_47 = arith.constant 1 : index
    %c0_48 = arith.constant 0 : index
    %c0_49 = arith.constant 0 : index
    %100 = vector.load %arg11[%c1_47, %c0_48, %c0_49] : memref<4x8x1xf32, #tpu.memory_space<vmem>>, vector<1x8x1xf32>
    %101 = vector.shape_cast %100 : vector<1x8x1xf32> to vector<8x1xf32>
    %102 = arith.mulf %96, %101 : vector<8x1xf32>
    %cst_50 = arith.constant dense<0.000000e+00> : vector<8xf32>
    %103 = vector.multi_reduction <add>, %99, %cst_50 [1] : vector<8x8xf32> to vector<8xf32>
    %104 = vector.shape_cast %103 : vector<8xf32> to vector<8x1xf32>
    %105 = arith.addf %102, %104 : vector<8x1xf32>
    %c1_51 = arith.constant 1 : index
    %c0_52 = arith.constant 0 : index
    %c0_53 = arith.constant 0 : index
    %106 = vector.load %arg11[%c1_51, %c0_52, %c0_53] : memref<4x8x1xf32, #tpu.memory_space<vmem>>, vector<1x8x1xf32>
    %107 = vector.shape_cast %106 : vector<1x8x1xf32> to vector<8x1xf32>
    %108 = vector.shape_cast %105 : vector<8x1xf32> to vector<1x8x1xf32>
    tpu.vector_store %arg11[%c1_51, %c0_52, %c0_53], %108 {strides = array<i32>} : memref<4x8x1xf32, #tpu.memory_space<vmem>>, vector<1x8x1xf32>,
    %c0_54 = arith.constant 0 : index
    %c8 = arith.constant 8 : index
    %109 = vector.load %arg12[%c0_54, %c8] : memref<8x32xf32, #tpu.memory_space<vmem>>, vector<8x8xf32>
    %110 = vector.broadcast %96 : vector<8x1xf32> to vector<8x8xf32>
    %111 = arith.mulf %110, %109 : vector<8x8xf32>
    %112 = arith.truncf %99 : vector<8x8xf32> to vector<8x8xbf16>
    %cst_55 = arith.constant dense<0.000000e+00> : vector<8x8xf32>
    %113 = tpu.matmul %112, %69, %cst_55 {dimension_numbers = #tpu.dot_dimension_numbers<[1], [0], [0], [1], [0, 0, 1, 1], [], []>} : vector<8x8xbf16>, vector<8x8xbf16>, vector<8x8xf32> -> vector<8x8xf32>
    %114 = arith.addf %111, %113 : vector<8x8xf32>
    %c0_56 = arith.constant 0 : index
    %c8_57 = arith.constant 8 : index
    %115 = vector.load %arg12[%c0_56, %c8_57] : memref<8x32xf32, #tpu.memory_space<vmem>>, vector<8x8xf32>
    tpu.vector_store %arg12[%c0_56, %c8_57], %114 {strides = array<i32>} : memref<8x32xf32, #tpu.memory_space<vmem>>, vector<8x8xf32>,
    %c1_58 = arith.constant 1 : index
    %c0_59 = arith.constant 0 : index
    %c0_60 = arith.constant 0 : index
    %116 = vector.load %arg10[%c1_58, %c0_59, %c0_60] : memref<4x8x1xf32, #tpu.memory_space<vmem>>, vector<1x8x1xf32>
    %117 = vector.shape_cast %116 : vector<1x8x1xf32> to vector<8x1xf32>
    %118 = vector.shape_cast %94 : vector<8x1xf32> to vector<1x8x1xf32>
    tpu.vector_store %arg10[%c1_58, %c0_59, %c0_60], %118 {strides = array<i32>} : memref<4x8x1xf32, #tpu.memory_space<vmem>>, vector<1x8x1xf32>,
    %119 = vector.extract_strided_slice %4 {offsets = [0, 16], sizes = [8, 8], strides = [1, 1]} : vector<8x32xbf16> to vector<8x8xbf16>
    %120 = vector.extract_strided_slice %6 {offsets = [0, 16], sizes = [8, 8], strides = [1, 1]} : vector<8x32xbf16> to vector<8x8xbf16>
    %121 = vector.extract_strided_slice %8 {offsets = [0, 16], sizes = [8, 8], strides = [1, 1]} : vector<8x32xbf16> to vector<8x8xbf16>
    %cst_61 = arith.constant dense<0.000000e+00> : vector<8x8xf32>
    %122 = tpu.matmul %119, %120, %cst_61 {dimension_numbers = #tpu.dot_dimension_numbers<[1], [1], [0], [0], [0, 0, 1, 0], [], []>} : vector<8x8xbf16>, vector<8x8xbf16>, vector<8x8xf32> -> vector<8x8xf32>
    %123 = arith.extf %119 : vector<8x8xbf16> to vector<8x8xf32>
    %124 = arith.extf %120 : vector<8x8xbf16> to vector<8x8xf32>
    %125 = vector.extract_strided_slice %10 {offsets = [0, 0, 16], sizes = [8, 8, 8], strides = [1, 1, 1]} : vector<8x8x32xbf16> to vector<8x8x8xbf16>
    %126 = arith.extf %125 : vector<8x8x8xbf16> to vector<8x8x8xf32>
    %127 = vector.extract_strided_slice %12 {offsets = [0, 0, 16], sizes = [8, 8, 8], strides = [1, 1, 1]} : vector<8x8x32xbf16> to vector<8x8x8xbf16>
    %128 = arith.extf %127 : vector<8x8x8xbf16> to vector<8x8x8xf32>
    %129 = vector.shape_cast %124 : vector<8x8xf32> to vector<1x8x8xf32>
    %130 = vector.broadcast %129 : vector<1x8x8xf32> to vector<8x8x8xf32>
    %131 = arith.addf %130, %128 : vector<8x8x8xf32>
    %132 = arith.mulf %126, %131 : vector<8x8x8xf32>
    %133 = vector.shape_cast %123 : vector<8x8xf32> to vector<8x1x8xf32>
    %134 = vector.broadcast %133 : vector<8x1x8xf32> to vector<8x8x8xf32>
    %135 = arith.mulf %134, %128 : vector<8x8x8xf32>
    %136 = arith.addf %132, %135 : vector<8x8x8xf32>
    %cst_62 = arith.constant dense<0.000000e+00> : vector<8x8xf32>
    %137 = vector.multi_reduction <add>, %136, %cst_62 [2] : vector<8x8x8xf32> to vector<8x8xf32>
    %138 = arith.addf %122, %137 : vector<8x8xf32>
    %cst_63 = arith.constant 0.353553385 : f32
    %139 = vector.broadcast %cst_63 : f32 to vector<8x8xf32>
    %140 = arith.mulf %138, %139 : vector<8x8xf32>
    %141 = arith.addf %140, %14 : vector<8x8xf32>
    %c2 = arith.constant 2 : index
    %c0_64 = arith.constant 0 : index
    %c0_65 = arith.constant 0 : index
    %142 = vector.load %arg10[%c2, %c0_64, %c0_65] : memref<4x8x1xf32, #tpu.memory_space<vmem>>, vector<1x8x1xf32>
    %143 = vector.shape_cast %142 : vector<1x8x1xf32> to vector<8x1xf32>
    %cst_66 = arith.constant dense<0xFF800000> : vector<8xf32>
    %144 = vector.multi_reduction <maximumf>, %141, %cst_66 [1] : vector<8x8xf32> to vector<8xf32>
    %145 = vector.shape_cast %144 : vector<8xf32> to vector<8x1xf32>
    %146 = arith.maximumf %143, %145 : vector<8x1xf32>
    %147 = arith.subf %143, %146 : vector<8x1xf32>
    %148 = math.exp %147 : vector<8x1xf32>
    %149 = vector.broadcast %146 : vector<8x1xf32> to vector<8x8xf32>
    %150 = arith.subf %141, %149 : vector<8x8xf32>
    %151 = math.exp %150 : vector<8x8xf32>
    %c2_67 = arith.constant 2 : index
    %c0_68 = arith.constant 0 : index
    %c0_69 = arith.constant 0 : index
    %152 = vector.load %arg11[%c2_67, %c0_68, %c0_69] : memref<4x8x1xf32, #tpu.memory_space<vmem>>, vector<1x8x1xf32>
    %153 = vector.shape_cast %152 : vector<1x8x1xf32> to vector<8x1xf32>
    %154 = arith.mulf %148, %153 : vector<8x1xf32>
    %cst_70 = arith.constant dense<0.000000e+00> : vector<8xf32>
    %155 = vector.multi_reduction <add>, %151, %cst_70 [1] : vector<8x8xf32> to vector<8xf32>
    %156 = vector.shape_cast %155 : vector<8xf32> to vector<8x1xf32>
    %157 = arith.addf %154, %156 : vector<8x1xf32>
    %c2_71 = arith.constant 2 : index
    %c0_72 = arith.constant 0 : index
    %c0_73 = arith.constant 0 : index
    %158 = vector.load %arg11[%c2_71, %c0_72, %c0_73] : memref<4x8x1xf32, #tpu.memory_space<vmem>>, vector<1x8x1xf32>
    %159 = vector.shape_cast %158 : vector<1x8x1xf32> to vector<8x1xf32>
    %160 = vector.shape_cast %157 : vector<8x1xf32> to vector<1x8x1xf32>
    tpu.vector_store %arg11[%c2_71, %c0_72, %c0_73], %160 {strides = array<i32>} : memref<4x8x1xf32, #tpu.memory_space<vmem>>, vector<1x8x1xf32>,
    %c0_74 = arith.constant 0 : index
    %c16 = arith.constant 16 : index
    %161 = vector.load %arg12[%c0_74, %c16] : memref<8x32xf32, #tpu.memory_space<vmem>>, vector<8x8xf32>
    %162 = vector.broadcast %148 : vector<8x1xf32> to vector<8x8xf32>
    %163 = arith.mulf %162, %161 : vector<8x8xf32>
    %164 = arith.truncf %151 : vector<8x8xf32> to vector<8x8xbf16>
    %cst_75 = arith.constant dense<0.000000e+00> : vector<8x8xf32>
    %165 = tpu.matmul %164, %121, %cst_75 {dimension_numbers = #tpu.dot_dimension_numbers<[1], [0], [0], [1], [0, 0, 1, 1], [], []>} : vector<8x8xbf16>, vector<8x8xbf16>, vector<8x8xf32> -> vector<8x8xf32>
    %166 = arith.addf %163, %165 : vector<8x8xf32>
    %c0_76 = arith.constant 0 : index
    %c16_77 = arith.constant 16 : index
    %167 = vector.load %arg12[%c0_76, %c16_77] : memref<8x32xf32, #tpu.memory_space<vmem>>, vector<8x8xf32>
    tpu.vector_store %arg12[%c0_76, %c16_77], %166 {strides = array<i32>} : memref<8x32xf32, #tpu.memory_space<vmem>>, vector<8x8xf32>,
    %c2_78 = arith.constant 2 : index
    %c0_79 = arith.constant 0 : index
    %c0_80 = arith.constant 0 : index
    %168 = vector.load %arg10[%c2_78, %c0_79, %c0_80] : memref<4x8x1xf32, #tpu.memory_space<vmem>>, vector<1x8x1xf32>
    %169 = vector.shape_cast %168 : vector<1x8x1xf32> to vector<8x1xf32>
    %170 = vector.shape_cast %146 : vector<8x1xf32> to vector<1x8x1xf32>
    tpu.vector_store %arg10[%c2_78, %c0_79, %c0_80], %170 {strides = array<i32>} : memref<4x8x1xf32, #tpu.memory_space<vmem>>, vector<1x8x1xf32>,
    %171 = vector.extract_strided_slice %4 {offsets = [0, 24], sizes = [8, 8], strides = [1, 1]} : vector<8x32xbf16> to vector<8x8xbf16>
    %172 = vector.extract_strided_slice %6 {offsets = [0, 24], sizes = [8, 8], strides = [1, 1]} : vector<8x32xbf16> to vector<8x8xbf16>
    %173 = vector.extract_strided_slice %8 {offsets = [0, 24], sizes = [8, 8], strides = [1, 1]} : vector<8x32xbf16> to vector<8x8xbf16>
    %cst_81 = arith.constant dense<0.000000e+00> : vector<8x8xf32>
    %174 = tpu.matmul %171, %172, %cst_81 {dimension_numbers = #tpu.dot_dimension_numbers<[1], [1], [0], [0], [0, 0, 1, 0], [], []>} : vector<8x8xbf16>, vector<8x8xbf16>, vector<8x8xf32> -> vector<8x8xf32>
    %175 = arith.extf %171 : vector<8x8xbf16> to vector<8x8xf32>
    %176 = arith.extf %172 : vector<8x8xbf16> to vector<8x8xf32>
    %177 = vector.extract_strided_slice %10 {offsets = [0, 0, 24], sizes = [8, 8, 8], strides = [1, 1, 1]} : vector<8x8x32xbf16> to vector<8x8x8xbf16>
    %178 = arith.extf %177 : vector<8x8x8xbf16> to vector<8x8x8xf32>
    %179 = vector.extract_strided_slice %12 {offsets = [0, 0, 24], sizes = [8, 8, 8], strides = [1, 1, 1]} : vector<8x8x32xbf16> to vector<8x8x8xbf16>
    %180 = arith.extf %179 : vector<8x8x8xbf16> to vector<8x8x8xf32>
    %181 = vector.shape_cast %176 : vector<8x8xf32> to vector<1x8x8xf32>
    %182 = vector.broadcast %181 : vector<1x8x8xf32> to vector<8x8x8xf32>
    %183 = arith.addf %182, %180 : vector<8x8x8xf32>
    %184 = arith.mulf %178, %183 : vector<8x8x8xf32>
    %185 = vector.shape_cast %175 : vector<8x8xf32> to vector<8x1x8xf32>
    %186 = vector.broadcast %185 : vector<8x1x8xf32> to vector<8x8x8xf32>
    %187 = arith.mulf %186, %180 : vector<8x8x8xf32>
    %188 = arith.addf %184, %187 : vector<8x8x8xf32>
    %cst_82 = arith.constant dense<0.000000e+00> : vector<8x8xf32>
    %189 = vector.multi_reduction <add>, %188, %cst_82 [2] : vector<8x8x8xf32> to vector<8x8xf32>
    %190 = arith.addf %174, %189 : vector<8x8xf32>
    %cst_83 = arith.constant 0.353553385 : f32
    %191 = vector.broadcast %cst_83 : f32 to vector<8x8xf32>
    %192 = arith.mulf %190, %191 : vector<8x8xf32>
    %193 = arith.addf %192, %14 : vector<8x8xf32>
    %c3 = arith.constant 3 : index
    %c0_84 = arith.constant 0 : index
    %c0_85 = arith.constant 0 : index
    %194 = vector.load %arg10[%c3, %c0_84, %c0_85] : memref<4x8x1xf32, #tpu.memory_space<vmem>>, vector<1x8x1xf32>
    %195 = vector.shape_cast %194 : vector<1x8x1xf32> to vector<8x1xf32>
    %cst_86 = arith.constant dense<0xFF800000> : vector<8xf32>
    %196 = vector.multi_reduction <maximumf>, %193, %cst_86 [1] : vector<8x8xf32> to vector<8xf32>
    %197 = vector.shape_cast %196 : vector<8xf32> to vector<8x1xf32>
    %198 = arith.maximumf %195, %197 : vector<8x1xf32>
    %199 = arith.subf %195, %198 : vector<8x1xf32>
    %200 = math.exp %199 : vector<8x1xf32>
    %201 = vector.broadcast %198 : vector<8x1xf32> to vector<8x8xf32>
    %202 = arith.subf %193, %201 : vector<8x8xf32>
    %203 = math.exp %202 : vector<8x8xf32>
    %c3_87 = arith.constant 3 : index
    %c0_88 = arith.constant 0 : index
    %c0_89 = arith.constant 0 : index
    %204 = vector.load %arg11[%c3_87, %c0_88, %c0_89] : memref<4x8x1xf32, #tpu.memory_space<vmem>>, vector<1x8x1xf32>
    %205 = vector.shape_cast %204 : vector<1x8x1xf32> to vector<8x1xf32>
    %206 = arith.mulf %200, %205 : vector<8x1xf32>
    %cst_90 = arith.constant dense<0.000000e+00> : vector<8xf32>
    %207 = vector.multi_reduction <add>, %203, %cst_90 [1] : vector<8x8xf32> to vector<8xf32>
    %208 = vector.shape_cast %207 : vector<8xf32> to vector<8x1xf32>
    %209 = arith.addf %206, %208 : vector<8x1xf32>
    %c3_91 = arith.constant 3 : index
    %c0_92 = arith.constant 0 : index
    %c0_93 = arith.constant 0 : index
    %210 = vector.load %arg11[%c3_91, %c0_92, %c0_93] : memref<4x8x1xf32, #tpu.memory_space<vmem>>, vector<1x8x1xf32>
    %211 = vector.shape_cast %210 : vector<1x8x1xf32> to vector<8x1xf32>
    %212 = vector.shape_cast %209 : vector<8x1xf32> to vector<1x8x1xf32>
    tpu.vector_store %arg11[%c3_91, %c0_92, %c0_93], %212 {strides = array<i32>} : memref<4x8x1xf32, #tpu.memory_space<vmem>>, vector<1x8x1xf32>,
    %c0_94 = arith.constant 0 : index
    %c24 = arith.constant 24 : index
    %213 = vector.load %arg12[%c0_94, %c24] : memref<8x32xf32, #tpu.memory_space<vmem>>, vector<8x8xf32>
    %214 = vector.broadcast %200 : vector<8x1xf32> to vector<8x8xf32>
    %215 = arith.mulf %214, %213 : vector<8x8xf32>
    %216 = arith.truncf %203 : vector<8x8xf32> to vector<8x8xbf16>
    %cst_95 = arith.constant dense<0.000000e+00> : vector<8x8xf32>
    %217 = tpu.matmul %216, %173, %cst_95 {dimension_numbers = #tpu.dot_dimension_numbers<[1], [0], [0], [1], [0, 0, 1, 1], [], []>} : vector<8x8xbf16>, vector<8x8xbf16>, vector<8x8xf32> -> vector<8x8xf32>
    %218 = arith.addf %215, %217 : vector<8x8xf32>
    %c0_96 = arith.constant 0 : index
    %c24_97 = arith.constant 24 : index
    %219 = vector.load %arg12[%c0_96, %c24_97] : memref<8x32xf32, #tpu.memory_space<vmem>>, vector<8x8xf32>
    tpu.vector_store %arg12[%c0_96, %c24_97], %218 {strides = array<i32>} : memref<8x32xf32, #tpu.memory_space<vmem>>, vector<8x8xf32>,
    %c3_98 = arith.constant 3 : index
    %c0_99 = arith.constant 0 : index
    %c0_100 = arith.constant 0 : index
    %220 = vector.load %arg10[%c3_98, %c0_99, %c0_100] : memref<4x8x1xf32, #tpu.memory_space<vmem>>, vector<1x8x1xf32>
    %221 = vector.shape_cast %220 : vector<1x8x1xf32> to vector<8x1xf32>
    %222 = vector.shape_cast %198 : vector<8x1xf32> to vector<1x8x1xf32>
    tpu.vector_store %arg10[%c3_98, %c0_99, %c0_100], %222 {strides = array<i32>} : memref<4x8x1xf32, #tpu.memory_space<vmem>>, vector<1x8x1xf32>,
    %c0_i32_101 = arith.constant 0 : i32
    %223 = arith.cmpi eq, %arg2, %c0_i32_101 : i32
    %224 = arith.extui %223 : i1 to i32
    %c0_i32_102 = arith.constant 0 : i32
    %225 = arith.cmpi ne, %224, %c0_i32_102 : i32
    scf.if %225 {
      %c0_103 = arith.constant 0 : index
      %c0_104 = arith.constant 0 : index
      %c0_105 = arith.constant 0 : index
      %226 = vector.load %arg11[%c0_103, %c0_104, %c0_105] : memref<4x8x1xf32, #tpu.memory_space<vmem>>, vector<1x8x1xf32>
      %227 = vector.shape_cast %226 : vector<1x8x1xf32> to vector<8x1xf32>
      %228 = tpu.reciprocal %227 {approx = true} : vector<8x1xf32> -> vector<8x1xf32>
      %c0_106 = arith.constant 0 : index
      %c0_107 = arith.constant 0 : index
      %229 = vector.load %arg12[%c0_106, %c0_107] : memref<8x32xf32, #tpu.memory_space<vmem>>, vector<8x8xf32>
      %230 = vector.broadcast %228 : vector<8x1xf32> to vector<8x8xf32>
      %231 = arith.mulf %229, %230 : vector<8x8xf32>
      %c0_108 = arith.constant 0 : index
      %c0_109 = arith.constant 0 : index
      %c0_110 = arith.constant 0 : index
      %232 = vector.load %arg9[%c0_108, %c0_109, %c0_110] : memref<1x8x32xf32, #tpu.memory_space<vmem>>, vector<1x8x8xf32>
      %233 = vector.shape_cast %232 : vector<1x8x8xf32> to vector<8x8xf32>
      %234 = vector.shape_cast %231 : vector<8x8xf32> to vector<1x8x8xf32>
      tpu.vector_store %arg9[%c0_108, %c0_109, %c0_110], %234 {strides = array<i32>} : memref<1x8x32xf32, #tpu.memory_space<vmem>>, vector<1x8x8xf32>,
      %c1_111 = arith.constant 1 : index
      %c0_112 = arith.constant 0 : index
      %c0_113 = arith.constant 0 : index
      %235 = vector.load %arg11[%c1_111, %c0_112, %c0_113] : memref<4x8x1xf32, #tpu.memory_space<vmem>>, vector<1x8x1xf32>
      %236 = vector.shape_cast %235 : vector<1x8x1xf32> to vector<8x1xf32>
      %237 = tpu.reciprocal %236 {approx = true} : vector<8x1xf32> -> vector<8x1xf32>
      %c0_114 = arith.constant 0 : index
      %c8_115 = arith.constant 8 : index
      %238 = vector.load %arg12[%c0_114, %c8_115] : memref<8x32xf32, #tpu.memory_space<vmem>>, vector<8x8xf32>
      %239 = vector.broadcast %237 : vector<8x1xf32> to vector<8x8xf32>
      %240 = arith.mulf %238, %239 : vector<8x8xf32>
      %c0_116 = arith.constant 0 : index
      %c0_117 = arith.constant 0 : index
      %c8_118 = arith.constant 8 : index
      %241 = vector.load %arg9[%c0_116, %c0_117, %c8_118] : memref<1x8x32xf32, #tpu.memory_space<vmem>>, vector<1x8x8xf32>
      %242 = vector.shape_cast %241 : vector<1x8x8xf32> to vector<8x8xf32>
      %243 = vector.shape_cast %240 : vector<8x8xf32> to vector<1x8x8xf32>
      tpu.vector_store %arg9[%c0_116, %c0_117, %c8_118], %243 {strides = array<i32>} : memref<1x8x32xf32, #tpu.memory_space<vmem>>, vector<1x8x8xf32>,
      %c2_119 = arith.constant 2 : index
      %c0_120 = arith.constant 0 : index
      %c0_121 = arith.constant 0 : index
      %244 = vector.load %arg11[%c2_119, %c0_120, %c0_121] : memref<4x8x1xf32, #tpu.memory_space<vmem>>, vector<1x8x1xf32>
      %245 = vector.shape_cast %244 : vector<1x8x1xf32> to vector<8x1xf32>
      %246 = tpu.reciprocal %245 {approx = true} : vector<8x1xf32> -> vector<8x1xf32>
      %c0_122 = arith.constant 0 : index
      %c16_123 = arith.constant 16 : index
      %247 = vector.load %arg12[%c0_122, %c16_123] : memref<8x32xf32, #tpu.memory_space<vmem>>, vector<8x8xf32>
      %248 = vector.broadcast %246 : vector<8x1xf32> to vector<8x8xf32>
      %249 = arith.mulf %247, %248 : vector<8x8xf32>
      %c0_124 = arith.constant 0 : index
      %c0_125 = arith.constant 0 : index
      %c16_126 = arith.constant 16 : index
      %250 = vector.load %arg9[%c0_124, %c0_125, %c16_126] : memref<1x8x32xf32, #tpu.memory_space<vmem>>, vector<1x8x8xf32>
      %251 = vector.shape_cast %250 : vector<1x8x8xf32> to vector<8x8xf32>
      %252 = vector.shape_cast %249 : vector<8x8xf32> to vector<1x8x8xf32>
      tpu.vector_store %arg9[%c0_124, %c0_125, %c16_126], %252 {strides = array<i32>} : memref<1x8x32xf32, #tpu.memory_space<vmem>>, vector<1x8x8xf32>,
      %c3_127 = arith.constant 3 : index
      %c0_128 = arith.constant 0 : index
      %c0_129 = arith.constant 0 : index
      %253 = vector.load %arg11[%c3_127, %c0_128, %c0_129] : memref<4x8x1xf32, #tpu.memory_space<vmem>>, vector<1x8x1xf32>
      %254 = vector.shape_cast %253 : vector<1x8x1xf32> to vector<8x1xf32>
      %255 = tpu.reciprocal %254 {approx = true} : vector<8x1xf32> -> vector<8x1xf32>
      %c0_130 = arith.constant 0 : index
      %c24_131 = arith.constant 24 : index
      %256 = vector.load %arg12[%c0_130, %c24_131] : memref<8x32xf32, #tpu.memory_space<vmem>>, vector<8x8xf32>
      %257 = vector.broadcast %255 : vector<8x1xf32> to vector<8x8xf32>
      %258 = arith.mulf %256, %257 : vector<8x8xf32>
      %c0_132 = arith.constant 0 : index
      %c0_133 = arith.constant 0 : index
      %c24_134 = arith.constant 24 : index
      %259 = vector.load %arg9[%c0_132, %c0_133, %c24_134] : memref<1x8x32xf32, #tpu.memory_space<vmem>>, vector<1x8x8xf32>
      %260 = vector.shape_cast %259 : vector<1x8x8xf32> to vector<8x8xf32>
      %261 = vector.shape_cast %258 : vector<8x8xf32> to vector<1x8x8xf32>
      tpu.vector_store %arg9[%c0_132, %c0_133, %c24_134], %261 {strides = array<i32>} : memref<1x8x32xf32, #tpu.memory_space<vmem>>, vector<1x8x8xf32>,
    } else {
    }
    return
  }
  func.func @transform_0(%arg0: i32, %arg1: i32, %arg2: i32) -> (i32, i32, i32) {
    %c0_i32 = arith.constant 0 : i32
    %c0_i32_0 = arith.constant 0 : i32
    return %arg0, %arg1, %c0_i32 : i32, i32, i32
  }
  func.func @transform_1(%arg0: i32, %arg1: i32, %arg2: i32) -> (i32, i32, i32) {
    %c0_i32 = arith.constant 0 : i32
    %c0_i32_0 = arith.constant 0 : i32
    return %arg0, %arg2, %c0_i32 : i32, i32, i32
  }
  func.func @transform_2(%arg0: i32, %arg1: i32, %arg2: i32) -> (i32, i32, i32) {
    %c0_i32 = arith.constant 0 : i32
    %c0_i32_0 = arith.constant 0 : i32
    return %arg0, %arg2, %c0_i32 : i32, i32, i32
  }
  func.func @transform_3(%arg0: i32, %arg1: i32, %arg2: i32) -> (i32, i32, i32, i32) {
    %c0_i32 = arith.constant 0 : i32
    %c0_i32_0 = arith.constant 0 : i32
    return %arg0, %arg1, %arg2, %c0_i32 : i32, i32, i32, i32
  }
  func.func @transform_4(%arg0: i32, %arg1: i32, %arg2: i32) -> (i32, i32, i32, i32) {
    %c0_i32 = arith.constant 0 : i32
    %c0_i32_0 = arith.constant 0 : i32
    return %arg0, %arg1, %arg2, %c0_i32 : i32, i32, i32, i32
  }
  func.func @transform_5(%arg0: i32, %arg1: i32, %arg2: i32) -> (i32, i32, i32) {
    %c0_i32 = arith.constant 0 : i32
    return %arg0, %arg1, %arg2 : i32, i32, i32
  }
  func.func @transform_6(%arg0: i32, %arg1: i32, %arg2: i32) -> (i32, i32, i32) {
    %c0_i32 = arith.constant 0 : i32
    %c0_i32_0 = arith.constant 0 : i32
    return %arg0, %arg1, %c0_i32 : i32, i32, i32
  }
}

</mosaic_0001>

<llo_original>
// kernel: _lambda_.9
$region0: #{_lambda_.9}
  #allocation0 [shape = 'u32[]', space=smem, size = 0x4, offset = 0x4, fixed_abs, tag = 'smem constant byte address 0x4 - core index']
  #allocation1 [shape = 'u32[72,128]{1,0:T(1,128)}', space=vmem, size = 0x9000, scoped, tag = 'internal scratch']
  %s0 = inlined_call_operand.vmem [shape: bf16[128,32], index: 0, kind: input, shape index: {}]
  %s1 = inlined_call_operand.vmem [shape: bf16[32,64], index: 1, kind: input, shape index: {}]
  %s2 = inlined_call_operand.vmem [shape: f32[1,64], index: 2, kind: input, shape index: {}]
  %s3 = inlined_call_operand.vmem [shape: bf16[128,32], index: 3, kind: output, shape index: {0}]
  %s4 = inlined_call_operand.vmem [shape: bf16[128,32], index: 4, kind: output, shape index: {1}]
  %5 = xla_tuple %s3, %s4
  %s6 = sld [smem:[#allocation0]]
  $region30: #{_lambda_.9} parent=0
    _
  %s8 = ssub.s32 1, %s6
  %s9 = scalar_select 0, %s8, %s6
  // Predicated region
  $region2: #{_lambda_.9} parent=0 // pred_check
    _
  $region3: #{_lambda_.9} parent=0 // pred_check_branch
    %11 = sbr.rel (0) target = $region5
  $region4: #{_lambda_.9} parent=0 // pred_region
    _
  $region5: #{_lambda_.9} parent=0 // pred_fallthru
    _
  // Predicated region
  $region6: #{_lambda_.9} parent=0 // pred_check
    _
  $region7: #{_lambda_.9} parent=0 // pred_check_branch
    %13 = sbr.rel (0) target = $region9
  $region8: #{_lambda_.9} parent=0 // pred_region
    _
  $region9: #{_lambda_.9} parent=0 // pred_fallthru
    _
  // Predicated region
  $region10: #{_lambda_.9} parent=0 // pred_check
    _
  $region11: #{_lambda_.9} parent=0 // pred_check_branch
    %15 = sbr.rel (0) target = $region13
  $region12: #{_lambda_.9} parent=0 // pred_region
    _
  $region13: #{_lambda_.9} parent=0 // pred_fallthru
    _
  %v17 = vld [vmem:[%s0] sm:$0xf]
  %v18 = vld [vmem:[%s0 + $0x4] sm:$0xf]
  %v19 = vld [vmem:[%s0 + $0x8] sm:$0xf]
  %v20 = vld [vmem:[%s0 + $0xc] sm:$0xf]
  %v21 = vld [vmem:[%s0 + $0x10] sm:$0xf]
  %v22 = vld [vmem:[%s0 + $0x14] sm:$0xf]
  %v23 = vld [vmem:[%s0 + $0x18] sm:$0xf]
  %v24 = vld [vmem:[%s0 + $0x1c] sm:$0xf]
  %v25 = vld [vmem:[%s0 + $0x20] sm:$0xf]
  %v26 = vld [vmem:[%s0 + $0x24] sm:$0xf]
  %v27 = vld [vmem:[%s0 + $0x28] sm:$0xf]
  %v28 = vld [vmem:[%s0 + $0x2c] sm:$0xf]
  %v29 = vld [vmem:[%s0 + $0x30] sm:$0xf]
  %v30 = vld [vmem:[%s0 + $0x34] sm:$0xf]
  %v31 = vld [vmem:[%s0 + $0x38] sm:$0xf]
  %v32 = vld [vmem:[%s0 + $0x3c] sm:$0xf]
  %v33 = vld [vmem:[%s1] sm:$0xf]
  %v34 = vld [vmem:[%s1 + $0x4] sm:$0xf]
  %v35 = vld [vmem:[%s1 + $0x8] sm:$0xf]
  %v36 = vld [vmem:[%s1 + $0xc] sm:$0xf]
  %v37 = vld [vmem:[%s2] sm:$0x1]
  %v39 = vperm.slane %v37, 0
  %v57 = vunpack.c.l.b16 %v17
  %v58 = vunpack.c.l.b16 %v18
  %v59 = vunpack.c.l.b16 %v19
  %v60 = vunpack.c.l.b16 %v20
  %v61 = vunpack.c.l.b16 %v21
  %v62 = vunpack.c.l.b16 %v22
  %v63 = vunpack.c.l.b16 %v23
  %v64 = vunpack.c.l.b16 %v24
  %v65 = vunpack.c.l.b16 %v25
  %v66 = vunpack.c.l.b16 %v26
  %v67 = vunpack.c.l.b16 %v27
  %v68 = vunpack.c.l.b16 %v28
  %v69 = vunpack.c.l.b16 %v29
  %v70 = vunpack.c.l.b16 %v30
  %v71 = vunpack.c.l.b16 %v31
  %v72 = vunpack.c.l.b16 %v32
  %v73 = vpack.c.b16 %v58, %v57
  %v74 = vpack.c.b16 %v60, %v59
  %v75 = vpack.c.b16 %v62, %v61
  %v76 = vpack.c.b16 %v64, %v63
  %v77 = vpack.c.b16 %v66, %v65
  %v78 = vpack.c.b16 %v68, %v67
  %v79 = vpack.c.b16 %v70, %v69
  %v80 = vpack.c.b16 %v72, %v71
  %v85 = vunpack.c.l.b16 %v33
  %v86 = vunpack.c.l.b16 %v34
  %v87 = vunpack.c.l.b16 %v35
  %v88 = vunpack.c.l.b16 %v36
  %v89 = vpack.c.b16 %v86, %v85
  %v90 = vpack.c.b16 %v88, %v87
  %vm93 = vcmask 261120
  %v95 = vsel %vm93, %v73, 0
  %v98 = vsel %vm93, %v74, 0
  %v101 = vsel %vm93, %v75, 0
  %v104 = vsel %vm93, %v76, 0
  %v107 = vsel %vm93, %v77, 0
  %v110 = vsel %vm93, %v78, 0
  %v113 = vsel %vm93, %v79, 0
  %v116 = vsel %vm93, %v80, 0
  %118 = vmatpush.bf16.msra.mxu0 0
  %119 = vmatpush.bf16.msra.mxu0 0
  %120 = vmatpush.bf16.msra.mxu0 0
  %121 = vmatpush.bf16.msra.mxu0 0
  %122 = vmatpush.bf16.msra.mxu0 0
  %123 = vmatpush.bf16.msra.mxu0 0
  %124 = vmatpush.bf16.msra.mxu0 %v90
  %125 = vmatpush.bf16.msra.mxu0 %v89
  %126 = vmatmul.bf16.gmra.mxu0 %v95
  %v127 = vpop.f32.mrf.mxu0
  %v128 = vadd.f32 %v39, %v127
  %v129 = vpop.f32.mrf.mxu0
  %v130 = vadd.f32 %v39, %v129
  %131 = vmatmul.bf16.gmra.mxu0 %v98
  %v132 = vpop.f32.mrf.mxu0
  %v133 = vadd.f32 %v39, %v132
  %v134 = vpop.f32.mrf.mxu0
  %v135 = vadd.f32 %v39, %v134
  %136 = vmatmul.bf16.gmra.mxu0 %v101
  %v137 = vpop.f32.mrf.mxu0
  %v138 = vadd.f32 %v39, %v137
  %v139 = vpop.f32.mrf.mxu0
  %v140 = vadd.f32 %v39, %v139
  %141 = vmatmul.bf16.gmra.mxu0 %v104
  %v142 = vpop.f32.mrf.mxu0
  %v143 = vadd.f32 %v39, %v142
  %v144 = vpop.f32.mrf.mxu0
  %v145 = vadd.f32 %v39, %v144
  %146 = vmatmul.bf16.gmra.mxu0 %v107
  %v147 = vpop.f32.mrf.mxu0
  %v148 = vadd.f32 %v39, %v147
  %v149 = vpop.f32.mrf.mxu0
  %v150 = vadd.f32 %v39, %v149
  %151 = vmatmul.bf16.gmra.mxu0 %v110
  %v152 = vpop.f32.mrf.mxu0
  %v153 = vadd.f32 %v39, %v152
  %v154 = vpop.f32.mrf.mxu0
  %v155 = vadd.f32 %v39, %v154
  %156 = vmatmul.bf16.gmra.mxu0 %v113
  %v157 = vpop.f32.mrf.mxu0
  %v158 = vadd.f32 %v39, %v157
  %v159 = vpop.f32.mrf.mxu0
  %v160 = vadd.f32 %v39, %v159
  %161 = vmatmul.bf16.gmra.mxu0 %v116
  %v162 = vpop.f32.mrf.mxu0
  %v163 = vadd.f32 %v39, %v162
  %v164 = vpop.f32.mrf.mxu0
  %v165 = vadd.f32 %v39, %v164
  %166 = vdwg.mxu0
  %v167 = vpack.c.bf16 %v128, %v128
  %v168 = vpack.c.bf16 %v130, %v130
  %v169 = vpack.c.bf16 %v133, %v133
  %v170 = vpack.c.bf16 %v135, %v135
  %v171 = vpack.c.bf16 %v138, %v138
  %v172 = vpack.c.bf16 %v140, %v140
  %v173 = vpack.c.bf16 %v143, %v143
  %v174 = vpack.c.bf16 %v145, %v145
  %v175 = vpack.c.bf16 %v148, %v148
  %v176 = vpack.c.bf16 %v150, %v150
  %v177 = vpack.c.bf16 %v153, %v153
  %v178 = vpack.c.bf16 %v155, %v155
  %v179 = vpack.c.bf16 %v158, %v158
  %v180 = vpack.c.bf16 %v160, %v160
  %v181 = vpack.c.bf16 %v163, %v163
  %v182 = vpack.c.bf16 %v165, %v165
  %vm183 = vcmask 257024
  %184 = vst.msk [vmem:[%s3] sm:$0xf] %vm183, %v167
  %185 = vst.msk [vmem:[%s3 + $0x4] sm:$0xf] %vm183, %v168
  %186 = vst.msk [vmem:[%s3 + $0x8] sm:$0xf] %vm183, %v169
  %187 = vst.msk [vmem:[%s3 + $0xc] sm:$0xf] %vm183, %v170
  %188 = vst.msk [vmem:[%s3 + $0x10] sm:$0xf] %vm183, %v171
  %189 = vst.msk [vmem:[%s3 + $0x14] sm:$0xf] %vm183, %v172
  %190 = vst.msk [vmem:[%s3 + $0x18] sm:$0xf] %vm183, %v173
  %191 = vst.msk [vmem:[%s3 + $0x1c] sm:$0xf] %vm183, %v174
  %192 = vst.msk [vmem:[%s3 + $0x20] sm:$0xf] %vm183, %v175
  %193 = vst.msk [vmem:[%s3 + $0x24] sm:$0xf] %vm183, %v176
  %194 = vst.msk [vmem:[%s3 + $0x28] sm:$0xf] %vm183, %v177
  %195 = vst.msk [vmem:[%s3 + $0x2c] sm:$0xf] %vm183, %v178
  %196 = vst.msk [vmem:[%s3 + $0x30] sm:$0xf] %vm183, %v179
  %197 = vst.msk [vmem:[%s3 + $0x34] sm:$0xf] %vm183, %v180
  %198 = vst.msk [vmem:[%s3 + $0x38] sm:$0xf] %vm183, %v181
  %199 = vst.msk [vmem:[%s3 + $0x3c] sm:$0xf] %vm183, %v182
  %216 = vrot.lane.b32.xlu0 %v167, 96
  %v217 = vpop.permute.xlu0 %216
  %218 = vrot.lane.b32.xlu0 %v168, 96
  %v219 = vpop.permute.xlu0 %218
  %220 = vrot.lane.b32.xlu0 %v169, 96
  %v221 = vpop.permute.xlu0 %220
  %222 = vrot.lane.b32.xlu0 %v170, 96
  %v223 = vpop.permute.xlu0 %222
  %224 = vrot.lane.b32.xlu0 %v171, 96
  %v225 = vpop.permute.xlu0 %224
  %226 = vrot.lane.b32.xlu0 %v172, 96
  %v227 = vpop.permute.xlu0 %226
  %228 = vrot.lane.b32.xlu0 %v173, 96
  %v229 = vpop.permute.xlu0 %228
  %230 = vrot.lane.b32.xlu0 %v174, 96
  %v231 = vpop.permute.xlu0 %230
  %232 = vrot.lane.b32.xlu0 %v175, 96
  %v233 = vpop.permute.xlu0 %232
  %234 = vrot.lane.b32.xlu0 %v176, 96
  %v235 = vpop.permute.xlu0 %234
  %236 = vrot.lane.b32.xlu0 %v177, 96
  %v237 = vpop.permute.xlu0 %236
  %238 = vrot.lane.b32.xlu0 %v178, 96
  %v239 = vpop.permute.xlu0 %238
  %240 = vrot.lane.b32.xlu0 %v179, 96
  %v241 = vpop.permute.xlu0 %240
  %242 = vrot.lane.b32.xlu0 %v180, 96
  %v243 = vpop.permute.xlu0 %242
  %244 = vrot.lane.b32.xlu0 %v181, 96
  %v245 = vpop.permute.xlu0 %244
  %246 = vrot.lane.b32.xlu0 %v182, 96
  %v247 = vpop.permute.xlu0 %246
  %264 = vst.msk [vmem:[%s4] sm:$0xf] %vm183, %v217
  %265 = vst.msk [vmem:[%s4 + $0x4] sm:$0xf] %vm183, %v219
  %266 = vst.msk [vmem:[%s4 + $0x8] sm:$0xf] %vm183, %v221
  %267 = vst.msk [vmem:[%s4 + $0xc] sm:$0xf] %vm183, %v223
  %268 = vst.msk [vmem:[%s4 + $0x10] sm:$0xf] %vm183, %v225
  %269 = vst.msk [vmem:[%s4 + $0x14] sm:$0xf] %vm183, %v227
  %270 = vst.msk [vmem:[%s4 + $0x18] sm:$0xf] %vm183, %v229
  %271 = vst.msk [vmem:[%s4 + $0x1c] sm:$0xf] %vm183, %v231
  %272 = vst.msk [vmem:[%s4 + $0x20] sm:$0xf] %vm183, %v233
  %273 = vst.msk [vmem:[%s4 + $0x24] sm:$0xf] %vm183, %v235
  %274 = vst.msk [vmem:[%s4 + $0x28] sm:$0xf] %vm183, %v237
  %275 = vst.msk [vmem:[%s4 + $0x2c] sm:$0xf] %vm183, %v239
  %276 = vst.msk [vmem:[%s4 + $0x30] sm:$0xf] %vm183, %v241
  %277 = vst.msk [vmem:[%s4 + $0x34] sm:$0xf] %vm183, %v243
  %278 = vst.msk [vmem:[%s4 + $0x38] sm:$0xf] %vm183, %v245
  %279 = vst.msk [vmem:[%s4 + $0x3c] sm:$0xf] %vm183, %v247
  // Predicated region
  $region14: #{_lambda_.9} parent=0 // pred_check
    _
  $region15: #{_lambda_.9} parent=0 // pred_check_branch
    %281 = sbr.rel (0) target = $region17
  $region16: #{_lambda_.9} parent=0 // pred_region
    _
  $region17: #{_lambda_.9} parent=0 // pred_fallthru
    _
  // Predicated region
  $region18: #{_lambda_.9} parent=0 // pred_check
    _
  $region19: #{_lambda_.9} parent=0 // pred_check_branch
    %283 = sbr.rel (0) target = $region21
  $region20: #{_lambda_.9} parent=0 // pred_region
    _
  $region21: #{_lambda_.9} parent=0 // pred_fallthru
    _
  // Predicated region
  $region22: #{_lambda_.9} parent=0 // pred_check
    _
  $region23: #{_lambda_.9} parent=0 // pred_check_branch
    %285 = sbr.rel (0) target = $region25
  $region24: #{_lambda_.9} parent=0 // pred_region
    _
  $region25: #{_lambda_.9} parent=0 // pred_fallthru
    _
  // Predicated region
  $region26: #{_lambda_.9} parent=0 // pred_check
    _
  $region27: #{_lambda_.9} parent=0 // pred_check_branch
    %287 = sbr.rel (0) target = $region29
  $region28: #{_lambda_.9} parent=0 // pred_region
    _
  $region29: #{_lambda_.9} parent=0 // pred_fallthru
    _

// kernel: _lambda_.8
$region0: #{_lambda_.8}
  #allocation0 [shape = 'u32[]', space=smem, size = 0x4, offset = 0x4, fixed_abs, tag = 'smem constant byte address 0x4 - core index']
  #allocation1 [shape = 'u32[72,128]{1,0:T(1,128)}', space=vmem, size = 0x9000, scoped, tag = 'internal scratch']
  %s0 = inlined_call_operand.vmem [shape: f32[16,32], index: 0, kind: input, shape index: {}]
  %s1 = inlined_call_operand.vmem [shape: bf16[32,96], index: 1, kind: input, shape index: {}]
  %s2 = inlined_call_operand.vmem [shape: f32[1,96], index: 2, kind: input, shape index: {}]
  %s3 = inlined_call_operand.vmem [shape: bf16[16,32], index: 3, kind: output, shape index: {0}]
  %s4 = inlined_call_operand.vmem [shape: bf16[16,32], index: 4, kind: output, shape index: {1}]
  %s5 = inlined_call_operand.vmem [shape: bf16[16,32], index: 5, kind: output, shape index: {2}]
  %6 = xla_tuple %s3, %s4, %s5
  %s7 = sld [smem:[#allocation0]]
  $region38: #{_lambda_.8} parent=0
    _
  %s9 = ssub.s32 1, %s7
  %s10 = scalar_select 0, %s9, %s7
  // Predicated region
  $region2: #{_lambda_.8} parent=0 // pred_check
    _
  $region3: #{_lambda_.8} parent=0 // pred_check_branch
    %12 = sbr.rel (0) target = $region5
  $region4: #{_lambda_.8} parent=0 // pred_region
    _
  $region5: #{_lambda_.8} parent=0 // pred_fallthru
    _
  // Predicated region
  $region6: #{_lambda_.8} parent=0 // pred_check
    _
  $region7: #{_lambda_.8} parent=0 // pred_check_branch
    %14 = sbr.rel (0) target = $region9
  $region8: #{_lambda_.8} parent=0 // pred_region
    _
  $region9: #{_lambda_.8} parent=0 // pred_fallthru
    _
  // Predicated region
  $region10: #{_lambda_.8} parent=0 // pred_check
    _
  $region11: #{_lambda_.8} parent=0 // pred_check_branch
    %16 = sbr.rel (0) target = $region13
  $region12: #{_lambda_.8} parent=0 // pred_region
    _
  $region13: #{_lambda_.8} parent=0 // pred_fallthru
    _
  %v18 = vld [vmem:[%s0] sm:$0xff]
  %v19 = vld [vmem:[%s0 + $0x8] sm:$0xff]
  %v20 = vpack.c.bf16 %v19, %v18
  %v21 = vld [vmem:[%s1] sm:$0xf]
  %v22 = vld [vmem:[%s1 + $0x4] sm:$0xf]
  %v23 = vld [vmem:[%s1 + $0x8] sm:$0xf]
  %v24 = vld [vmem:[%s1 + $0xc] sm:$0xf]
  %v25 = vld [vmem:[%s2] sm:$0x1]
  %v27 = vperm.slane %v25, 0
  %v33 = vunpack.c.l.b16 %v21
  %v34 = vunpack.c.l.b16 %v22
  %v35 = vunpack.c.l.b16 %v23
  %v36 = vunpack.c.l.b16 %v24
  %v37 = vpack.c.b16 %v34, %v33
  %v38 = vpack.c.b16 %v36, %v35
  %vm41 = vcmask 261120
  %v43 = vsel %vm41, %v20, 0
  %45 = vmatpush.bf16.msra.mxu0 0
  %46 = vmatpush.bf16.msra.mxu0 0
  %47 = vmatpush.bf16.msra.mxu0 0
  %48 = vmatpush.bf16.msra.mxu0 0
  %49 = vmatpush.bf16.msra.mxu0 0
  %50 = vmatpush.bf16.msra.mxu0 0
  %51 = vmatpush.bf16.msra.mxu0 %v38
  %52 = vmatpush.bf16.msra.mxu0 %v37
  %53 = vmatmul.bf16.gmra.mxu0 %v43
  %v54 = vpop.f32.mrf.mxu0
  %v55 = vadd.f32 %v27, %v54
  %v56 = vpop.f32.mrf.mxu0
  %v57 = vadd.f32 %v27, %v56
  %58 = vdwg.mxu0
  %v59 = vpack.c.bf16 %v55, %v55
  %v60 = vpack.c.bf16 %v57, %v57
  %vm61 = vcmask 257024
  %62 = vst.msk [vmem:[%s3] sm:$0xf] %vm61, %v59
  %63 = vst.msk [vmem:[%s3 + $0x4] sm:$0xf] %vm61, %v60
  %66 = vrot.lane.b32.xlu0 %v59, 96
  %v67 = vpop.permute.xlu0 %66
  %68 = vrot.lane.b32.xlu0 %v60, 96
  %v69 = vpop.permute.xlu0 %68
  %72 = vst.msk [vmem:[%s4] sm:$0xf] %vm61, %v67
  %73 = vst.msk [vmem:[%s4 + $0x4] sm:$0xf] %vm61, %v69
  %74 = vrot.lane.b32.xlu0 %v59, 64
  %v75 = vpop.permute.xlu0 %74
  %76 = vrot.lane.b32.xlu0 %v60, 64
  %v77 = vpop.permute.xlu0 %76
  %80 = vst.msk [vmem:[%s5] sm:$0xf] %vm61, %v75
  %81 = vst.msk [vmem:[%s5 + $0x4] sm:$0xf] %vm61, %v77
  // Predicated region
  $region14: #{_lambda_.8} parent=0 // pred_check
    _
  $region15: #{_lambda_.8} parent=0 // pred_check_branch
    %83 = sbr.rel (0) target = $region17
  $region16: #{_lambda_.8} parent=0 // pred_region
    _
  $region17: #{_lambda_.8} parent=0 // pred_fallthru
    _
  // Predicated region
  $region18: #{_lambda_.8} parent=0 // pred_check
    _
  $region19: #{_lambda_.8} parent=0 // pred_check_branch
    %85 = sbr.rel (0) target = $region21
  $region20: #{_lambda_.8} parent=0 // pred_region
    _
  $region21: #{_lambda_.8} parent=0 // pred_fallthru
    _
  // Predicated region
  $region22: #{_lambda_.8} parent=0 // pred_check
    _
  $region23: #{_lambda_.8} parent=0 // pred_check_branch
    %87 = sbr.rel (0) target = $region25
  $region24: #{_lambda_.8} parent=0 // pred_region
    _
  $region25: #{_lambda_.8} parent=0 // pred_fallthru
    _
  // Predicated region
  $region26: #{_lambda_.8} parent=0 // pred_check
    _
  $region27: #{_lambda_.8} parent=0 // pred_check_branch
    %89 = sbr.rel (0) target = $region29
  $region28: #{_lambda_.8} parent=0 // pred_region
    _
  $region29: #{_lambda_.8} parent=0 // pred_fallthru
    _
  // Predicated region
  $region30: #{_lambda_.8} parent=0 // pred_check
    _
  $region31: #{_lambda_.8} parent=0 // pred_check_branch
    %91 = sbr.rel (0) target = $region33
  $region32: #{_lambda_.8} parent=0 // pred_region
    _
  $region33: #{_lambda_.8} parent=0 // pred_fallthru
    _
  // Predicated region
  $region34: #{_lambda_.8} parent=0 // pred_check
    _
  $region35: #{_lambda_.8} parent=0 // pred_check_branch
    %93 = sbr.rel (0) target = $region37
  $region36: #{_lambda_.8} parent=0 // pred_region
    _
  $region37: #{_lambda_.8} parent=0 // pred_fallthru
    _

// kernel: _lambda_.11
$region0: #{_lambda_.11}
  #allocation0 [shape = 'u32[]', space=smem, size = 0x4, offset = 0x4, fixed_abs, tag = 'smem constant byte address 0x4 - core index']
  #allocation1 [shape = 'u32[72,128]{1,0:T(1,128)}', space=vmem, size = 0x9000, scoped, tag = 'internal scratch']
  %s0 = inlined_call_operand.vmem [shape: f32[16,32], index: 0, kind: input, shape index: {}]
  %s1 = inlined_call_operand.vmem [shape: f32[16,32], index: 1, kind: input, shape index: {}]
  %s2 = inlined_call_operand.vmem [shape: bf16[32,32], index: 2, kind: input, shape index: {}]
  %s3 = inlined_call_operand.vmem [shape: f32[1,32], index: 3, kind: input, shape index: {}]
  %s4 = inlined_call_operand.vmem [shape: f32[1,32], index: 4, kind: input, shape index: {}]
  %s5 = inlined_call_operand.vmem [shape: f32[1,32], index: 5, kind: input, shape index: {}]
  %s6 = inlined_call_operand.vmem [shape: bf16[32,64], index: 6, kind: input, shape index: {}]
  %s7 = inlined_call_operand.vmem [shape: f32[1,64], index: 7, kind: input, shape index: {}]
  %s8 = inlined_call_operand.vmem [shape: bf16[64,32], index: 8, kind: input, shape index: {}]
  %s9 = inlined_call_operand.vmem [shape: f32[1,32], index: 9, kind: input, shape index: {}]
  %s10 = inlined_call_operand.vmem [shape: f32[1,32], index: 10, kind: input, shape index: {}]
  %s11 = inlined_call_operand.vmem [shape: f32[1,32], index: 11, kind: input, shape index: {}]
  %s12 = inlined_call_operand.vmem [shape: f32[16,32], index: 12, kind: output, shape index: {}]
  %s13 = sld [smem:[#allocation0]]
  $region58: #{_lambda_.11} parent=0
    _
  %s15 = ssub.s32 1, %s13
  %s16 = scalar_select 0, %s15, %s13
  // Predicated region
  $region2: #{_lambda_.11} parent=0 // pred_check
    _
  $region3: #{_lambda_.11} parent=0 // pred_check_branch
    %18 = sbr.rel (0) target = $region5
  $region4: #{_lambda_.11} parent=0 // pred_region
    _
  $region5: #{_lambda_.11} parent=0 // pred_fallthru
    _
  // Predicated region
  $region6: #{_lambda_.11} parent=0 // pred_check
    _
  $region7: #{_lambda_.11} parent=0 // pred_check_branch
    %20 = sbr.rel (0) target = $region9
  $region8: #{_lambda_.11} parent=0 // pred_region
    _
  $region9: #{_lambda_.11} parent=0 // pred_fallthru
    _
  // Predicated region
  $region10: #{_lambda_.11} parent=0 // pred_check
    _
  $region11: #{_lambda_.11} parent=0 // pred_check_branch
    %22 = sbr.rel (0) target = $region13
  $region12: #{_lambda_.11} parent=0 // pred_region
    _
  $region13: #{_lambda_.11} parent=0 // pred_fallthru
    _
  // Predicated region
  $region14: #{_lambda_.11} parent=0 // pred_check
    _
  $region15: #{_lambda_.11} parent=0 // pred_check_branch
    %24 = sbr.rel (0) target = $region17
  $region16: #{_lambda_.11} parent=0 // pred_region
    _
  $region17: #{_lambda_.11} parent=0 // pred_fallthru
    _
  // Predicated region
  $region18: #{_lambda_.11} parent=0 // pred_check
    _
  $region19: #{_lambda_.11} parent=0 // pred_check_branch
    %26 = sbr.rel (0) target = $region21
  $region20: #{_lambda_.11} parent=0 // pred_region
    _
  $region21: #{_lambda_.11} parent=0 // pred_fallthru
    _
  // Predicated region
  $region22: #{_lambda_.11} parent=0 // pred_check
    _
  $region23: #{_lambda_.11} parent=0 // pred_check_branch
    %28 = sbr.rel (0) target = $region25
  $region24: #{_lambda_.11} parent=0 // pred_region
    _
  $region25: #{_lambda_.11} parent=0 // pred_fallthru
    _
  // Predicated region
  $region26: #{_lambda_.11} parent=0 // pred_check
    _
  $region27: #{_lambda_.11} parent=0 // pred_check_branch
    %30 = sbr.rel (0) target = $region29
  $region28: #{_lambda_.11} parent=0 // pred_region
    _
  $region29: #{_lambda_.11} parent=0 // pred_fallthru
    _
  // Predicated region
  $region30: #{_lambda_.11} parent=0 // pred_check
    _
  $region31: #{_lambda_.11} parent=0 // pred_check_branch
    %32 = sbr.rel (0) target = $region33
  $region32: #{_lambda_.11} parent=0 // pred_region
    _
  $region33: #{_lambda_.11} parent=0 // pred_fallthru
    _
  // Predicated region
  $region34: #{_lambda_.11} parent=0 // pred_check
    _
  $region35: #{_lambda_.11} parent=0 // pred_check_branch
    %34 = sbr.rel (0) target = $region37
  $region36: #{_lambda_.11} parent=0 // pred_region
    _
  $region37: #{_lambda_.11} parent=0 // pred_fallthru
    _
  // Predicated region
  $region38: #{_lambda_.11} parent=0 // pred_check
    _
  $region39: #{_lambda_.11} parent=0 // pred_check_branch
    %36 = sbr.rel (0) target = $region41
  $region40: #{_lambda_.11} parent=0 // pred_region
    _
  $region41: #{_lambda_.11} parent=0 // pred_fallthru
    _
  // Predicated region
  $region42: #{_lambda_.11} parent=0 // pred_check
    _
  $region43: #{_lambda_.11} parent=0 // pred_check_branch
    %38 = sbr.rel (0) target = $region45
  $region44: #{_lambda_.11} parent=0 // pred_region
    _
  $region45: #{_lambda_.11} parent=0 // pred_fallthru
    _
  // Predicated region
  $region46: #{_lambda_.11} parent=0 // pred_check
    _
  $region47: #{_lambda_.11} parent=0 // pred_check_branch
    %40 = sbr.rel (0) target = $region49
  $region48: #{_lambda_.11} parent=0 // pred_region
    _
  $region49: #{_lambda_.11} parent=0 // pred_fallthru
    _
  %v42 = vld [vmem:[%s0] sm:$0xff]
  %v43 = vld [vmem:[%s0 + $0x8] sm:$0xff]
  %v44 = vpack.c.bf16 %v43, %v42
  %v45 = vld [vmem:[%s2] sm:$0xf]
  %v46 = vld [vmem:[%s2 + $0x4] sm:$0xf]
  %v47 = vld [vmem:[%s2 + $0x8] sm:$0xf]
  %v48 = vld [vmem:[%s2 + $0xc] sm:$0xf]
  %v49 = vld [vmem:[%s3] sm:$0x1]
  %v51 = vperm.slane %v49, 0
  %v57 = vunpack.c.l.b16 %v45
  %v58 = vunpack.c.l.b16 %v46
  %v59 = vunpack.c.l.b16 %v47
  %v60 = vunpack.c.l.b16 %v48
  %v61 = vpack.c.b16 %v58, %v57
  %v62 = vpack.c.b16 %v60, %v59
  %vm65 = vcmask 261120
  %v67 = vsel %vm65, %v44, 0
  %69 = vmatpush.bf16.msra.mxu0 0
  %70 = vmatpush.bf16.msra.mxu0 0
  %71 = vmatpush.bf16.msra.mxu0 0
  %72 = vmatpush.bf16.msra.mxu0 0
  %73 = vmatpush.bf16.msra.mxu0 0
  %74 = vmatpush.bf16.msra.mxu0 0
  %75 = vmatpush.bf16.msra.mxu0 %v62
  %76 = vmatpush.bf16.msra.mxu0 %v61
  %77 = vmatmul.bf16.gmra.mxu0 %v67
  %v78 = vpop.f32.mrf.mxu0
  %v79 = vadd.f32 %v51, %v78
  %v80 = vpop.f32.mrf.mxu0
  %v81 = vadd.f32 %v51, %v80
  %82 = vdwg.mxu0
  %v83 = vld [vmem:[%s1] sm:$0xff]
  %v84 = vld [vmem:[%s1 + $0x8] sm:$0xff]
  %v85 = vadd.f32 %v83, %v79
  %v86 = vadd.f32 %v84, %v81
  %v87 = vld [vmem:[%s4] sm:$0x1]
  %v88 = vld [vmem:[%s5] sm:$0x1]
  %v89 = vsel %vm65, %v85, 0.0
  %90 = vadd.xlane.f32.xlu0 %v89
  %v91 = vpop.xlane.xlu0 %90
  %v92 = vsel %vm65, %v86, 0.0
  %93 = vadd.xlane.f32.xlu0 %v92
  %v94 = vpop.xlane.xlu0 %93
  %v95 = vrcp.pop 32.0
  %v96 = vmul.f32 32.0, %v95
  %v97 = vsub.f32 1.0, %v96
  %v98 = vmul.f32 %v95, %v97
  %v99 = vadd.f32 %v95, %v98
  %vm100 = vweird.f32 %v95
  %v101 = vsel %vm100, %v95, %v99
  %v102 = vmul.f32 %v91, %v101
  %v103 = vmul.f32 %v94, %v101
  %v104 = vsub.f32 %v85, %v102
  %v105 = vsub.f32 %v86, %v103
  %v106 = vmul.f32 %v104, %v104
  %v107 = vmul.f32 %v105, %v105
  %v108 = vsel %vm65, %v106, 0.0
  %109 = vadd.xlane.f32.xlu0 %v108
  %v110 = vpop.xlane.xlu0 %109
  %v111 = vsel %vm65, %v107, 0.0
  %112 = vadd.xlane.f32.xlu0 %v111
  %v113 = vpop.xlane.xlu0 %112
  %v114 = vmul.f32 %v110, %v101
  %v115 = vmul.f32 %v113, %v101
  %v116 = vadd.f32 %v114, 1e-05
  %v117 = vadd.f32 %v115, 1e-05
  %v118 = vrsqrt.pop %v116
  %v119 = vmul.f32 %v118, %v116
  %v120 = vmul.f32 %v119, %v118
  %v121 = vmul.f32 0.5, %v120
  %v122 = vsub.f32 1.5, %v121
  %v123 = vmul.f32 %v118, %v122
  %vm124 = vweird.f32 %v116
  %vm125 = vweird.f32 %v118
  %vm126 = vmor %vm124, %vm125
  %v127 = vsel %vm126, %v118, %v123
  %v128 = vrsqrt.pop %v117
  %v129 = vmul.f32 %v128, %v117
  %v130 = vmul.f32 %v129, %v128
  %v131 = vmul.f32 0.5, %v130
  %v132 = vsub.f32 1.5, %v131
  %v133 = vmul.f32 %v128, %v132
  %vm134 = vweird.f32 %v117
  %vm135 = vweird.f32 %v128
  %vm136 = vmor %vm134, %vm135
  %v137 = vsel %vm136, %v128, %v133
  %v138 = vmul.f32 %v104, %v127
  %v139 = vmul.f32 %v105, %v137
  %v141 = vperm.slane %v87, 0
  %v143 = vmul.f32 %v138, %v141
  %v144 = vmul.f32 %v139, %v141
  %v146 = vperm.slane %v88, 0
  %v148 = vadd.f32 %v143, %v146
  %v149 = vadd.f32 %v144, %v146
  %v150 = vpack.c.bf16 %v149, %v148
  %v151 = vld [vmem:[%s6] sm:$0xf]
  %v152 = vld [vmem:[%s6 + $0x4] sm:$0xf]
  %v153 = vld [vmem:[%s6 + $0x8] sm:$0xf]
  %v154 = vld [vmem:[%s6 + $0xc] sm:$0xf]
  %v155 = vld [vmem:[%s7] sm:$0x1]
  %v157 = vperm.slane %v155, 0
  %v163 = vunpack.c.l.b16 %v151
  %v164 = vunpack.c.l.b16 %v152
  %v165 = vunpack.c.l.b16 %v153
  %v166 = vunpack.c.l.b16 %v154
  %v167 = vpack.c.b16 %v164, %v163
  %v168 = vpack.c.b16 %v166, %v165
  %v172 = vsel %vm65, %v150, 0
  %174 = vmatpush.bf16.msra.mxu0 0
  %175 = vmatpush.bf16.msra.mxu0 0
  %176 = vmatpush.bf16.msra.mxu0 0
  %177 = vmatpush.bf16.msra.mxu0 0
  %178 = vmatpush.bf16.msra.mxu0 0
  %179 = vmatpush.bf16.msra.mxu0 0
  %180 = vmatpush.bf16.msra.mxu0 %v168
  %181 = vmatpush.bf16.msra.mxu0 %v167
  %182 = vmatmul.bf16.gmra.mxu0 %v172
  %v183 = vpop.f32.mrf.mxu0
  %v184 = vadd.f32 %v157, %v183
  %v185 = vpop.f32.mrf.mxu0
  %v186 = vadd.f32 %v157, %v185
  %187 = vdwg.mxu0
  %v188 = vmax.f32 %v184, 0.0
  %v189 = vmax.f32 %v186, 0.0
  %v190 = vpack.c.bf16 %v189, %v188
  %v191 = vld [vmem:[%s8] sm:$0xf]
  %v192 = vld [vmem:[%s8 + $0x4] sm:$0xf]
  %v193 = vld [vmem:[%s8 + $0x8] sm:$0xf]
  %v194 = vld [vmem:[%s8 + $0xc] sm:$0xf]
  %v195 = vld [vmem:[%s8 + $0x10] sm:$0xf]
  %v196 = vld [vmem:[%s8 + $0x14] sm:$0xf]
  %v197 = vld [vmem:[%s8 + $0x18] sm:$0xf]
  %v198 = vld [vmem:[%s8 + $0x1c] sm:$0xf]
  %v199 = vld [vmem:[%s9] sm:$0x1]
  %v201 = vperm.slane %v199, 0
  %v211 = vunpack.c.l.b16 %v191
  %v212 = vunpack.c.l.b16 %v192
  %v213 = vunpack.c.l.b16 %v193
  %v214 = vunpack.c.l.b16 %v194
  %v215 = vunpack.c.l.b16 %v195
  %v216 = vunpack.c.l.b16 %v196
  %v217 = vunpack.c.l.b16 %v197
  %v218 = vunpack.c.l.b16 %v198
  %v219 = vpack.c.b16 %v212, %v211
  %v220 = vpack.c.b16 %v214, %v213
  %v221 = vpack.c.b16 %v216, %v215
  %v222 = vpack.c.b16 %v218, %v217
  %vm227 = vcmask 523264
  %v229 = vsel %vm227, %v190, 0
  %231 = vmatpush.bf16.msra.mxu0 0
  %232 = vmatpush.bf16.msra.mxu0 0
  %233 = vmatpush.bf16.msra.mxu0 0
  %234 = vmatpush.bf16.msra.mxu0 0
  %235 = vmatpush.bf16.msra.mxu0 %v222
  %236 = vmatpush.bf16.msra.mxu0 %v221
  %237 = vmatpush.bf16.msra.mxu0 %v220
  %238 = vmatpush.bf16.msra.mxu0 %v219
  %239 = vmatmul.bf16.gmra.mxu0 %v229
  %v240 = vpop.f32.mrf.mxu0
  %v241 = vadd.f32 %v201, %v240
  %v242 = vpop.f32.mrf.mxu0
  %v243 = vadd.f32 %v201, %v242
  %244 = vdwg.mxu0
  %v245 = vadd.f32 %v148, %v241
  %v246 = vadd.f32 %v149, %v243
  %v247 = vld [vmem:[%s10] sm:$0x1]
  %v248 = vld [vmem:[%s11] sm:$0x1]
  %v249 = vsel %vm65, %v245, 0.0
  %250 = vadd.xlane.f32.xlu0 %v249
  %v251 = vpop.xlane.xlu0 %250
  %v252 = vsel %vm65, %v246, 0.0
  %253 = vadd.xlane.f32.xlu0 %v252
  %v254 = vpop.xlane.xlu0 %253
  %v255 = vmul.f32 %v251, %v101
  %v256 = vmul.f32 %v254, %v101
  %v257 = vsub.f32 %v245, %v255
  %v258 = vsub.f32 %v246, %v256
  %v259 = vmul.f32 %v257, %v257
  %v260 = vmul.f32 %v258, %v258
  %v261 = vsel %vm65, %v259, 0.0
  %262 = vadd.xlane.f32.xlu0 %v261
  %v263 = vpop.xlane.xlu0 %262
  %v264 = vsel %vm65, %v260, 0.0
  %265 = vadd.xlane.f32.xlu0 %v264
  %v266 = vpop.xlane.xlu0 %265
  %v267 = vmul.f32 %v263, %v101
  %v268 = vmul.f32 %v266, %v101
  %v269 = vadd.f32 %v267, 1e-05
  %v270 = vadd.f32 %v268, 1e-05
  %v271 = vrsqrt.pop %v269
  %v272 = vmul.f32 %v271, %v269
  %v273 = vmul.f32 %v272, %v271
  %v274 = vmul.f32 0.5, %v273
  %v275 = vsub.f32 1.5, %v274
  %v276 = vmul.f32 %v271, %v275
  %vm277 = vweird.f32 %v269
  %vm278 = vweird.f32 %v271
  %vm279 = vmor %vm277, %vm278
  %v280 = vsel %vm279, %v271, %v276
  %v281 = vrsqrt.pop %v270
  %v282 = vmul.f32 %v281, %v270
  %v283 = vmul.f32 %v282, %v281
  %v284 = vmul.f32 0.5, %v283
  %v285 = vsub.f32 1.5, %v284
  %v286 = vmul.f32 %v281, %v285
  %vm287 = vweird.f32 %v270
  %vm288 = vweird.f32 %v281
  %vm289 = vmor %vm287, %vm288
  %v290 = vsel %vm289, %v281, %v286
  %v291 = vmul.f32 %v257, %v280
  %v292 = vmul.f32 %v258, %v290
  %v294 = vperm.slane %v247, 0
  %v296 = vmul.f32 %v291, %v294
  %v297 = vmul.f32 %v292, %v294
  %v299 = vperm.slane %v248, 0
  %v301 = vadd.f32 %v296, %v299
  %v302 = vadd.f32 %v297, %v299
  %303 = vst.msk [vmem:[%s12] sm:$0xff] %vm65, %v301
  %304 = vst.msk [vmem:[%s12 + $0x8] sm:$0xff] %vm65, %v302
  // Predicated region
  $region50: #{_lambda_.11} parent=0 // pred_check
    _
  $region51: #{_lambda_.11} parent=0 // pred_check_branch
    %306 = sbr.rel (0) target = $region53
  $region52: #{_lambda_.11} parent=0 // pred_region
    _
  $region53: #{_lambda_.11} parent=0 // pred_fallthru
    _
  // Predicated region
  $region54: #{_lambda_.11} parent=0 // pred_check
    _
  $region55: #{_lambda_.11} parent=0 // pred_check_branch
    %308 = sbr.rel (0) target = $region57
  $region56: #{_lambda_.11} parent=0 // pred_region
    _
  $region57: #{_lambda_.11} parent=0 // pred_fallthru
    _

// kernel: _lambda_.10
$region0: #{_lambda_.10}
  #allocation0 [shape = 'u32[]', space=smem, size = 0x4, offset = 0x4, fixed_abs, tag = 'smem constant byte address 0x4 - core index']
  #allocation1 [shape = 'u32[72,128]{1,0:T(1,128)}', space=vmem, size = 0x9000, scoped, tag = 'internal scratch']
  #allocation2 [shape = 'f32[4,8,1]{2,1,0:T(8,128)}', space=vmem, size = 0x4000, scoped, tag = 'scratch operand']
  #allocation3 [shape = 'f32[4,8,1]{2,1,0:T(8,128)}', space=vmem, size = 0x4000, scoped, tag = 'scratch operand']
  #allocation4 [shape = 'f32[8,32]{1,0:T(8,128)}', space=vmem, size = 0x1000, scoped, tag = 'scratch operand']
  %s0 = inlined_call_operand.vmem [shape: bf16[2,8,32], index: 0, kind: input, shape index: {}]
  %s1 = inlined_call_operand.vmem [shape: bf16[2,8,32], index: 1, kind: input, shape index: {}]
  %s2 = inlined_call_operand.vmem [shape: bf16[2,8,32], index: 2, kind: input, shape index: {}]
  %s3 = inlined_call_operand.vmem [shape: bf16[2,8,8,32], index: 3, kind: input, shape index: {}]
  %s4 = inlined_call_operand.vmem [shape: bf16[2,8,8,32], index: 4, kind: input, shape index: {}]
  %s5 = inlined_call_operand.vmem [shape: f32[2,8,8], index: 5, kind: input, shape index: {}]
  %s6 = inlined_call_operand.vmem [shape: f32[2,8,32], index: 6, kind: output, shape index: {}]
  %s7 = sld [smem:[#allocation0]]
  $region65: #{_lambda_.10} parent=0
    _
  %s9 = ssub.s32 1, %s7
  %s10 = scalar_select 0, %s9, %s7
  loop: start=0, step=1, limit=4
  $region2: #{_lambda_.10} parent=0 // loop_pre_header
    _
  $region3: #{_lambda_.10} parent=0 // loop_header
    %s12 = sphi 0, %s16
    %p13 = scmp.ge.s32.totalorder %s12, 4
    %s19 = sphi 0, %s38
    %s20 = sphi 0, %s34
    %s21 = sphi 0, %s30
    %s22 = sphi 0, %s19
    %s23 = sphi 0, %s20
    %s24 = sphi 0, %s21
    %s25 = sphi 0, %s22
    %s26 = sphi 0, %s23
    %s27 = sphi 0, %s24
    %s43 = sphi 0, %s45
    %s46 = sphi 0, %s43
    %s47 = sphi 0, %s46
    %s63 = sphi 0, %s47
    %s71 = sphi 0, %s73
    %s74 = sphi 0, %s71
    %s75 = sphi 0, %s74
    %s91 = sphi 0, %s75
    %s99 = sphi 0, %s101
    %s102 = sphi 0, %s99
    %s103 = sphi 0, %s102
    %s119 = sphi 0, %s103
    %s129 = sphi 0, %s131
    %s132 = sphi 0, %s129
    %s133 = sphi 0, %s132
    %s149 = sphi 0, %s133
    %s159 = sphi 0, %s161
    %s162 = sphi 0, %s159
    %s163 = sphi 0, %s162
    %s179 = sphi 0, %s163
    %s189 = sphi 0, %s191
    %s192 = sphi 0, %s189
    %s193 = sphi 0, %s192
    %s209 = sphi 0, %s193
    %s217 = sphi 0, %s219
    %s220 = sphi 0, %s217
    %s221 = sphi 0, %s220
    %s237 = sphi 0, %s221
  $region4: #{_lambda_.10} parent=0 // loop_header_branch
    %15 = sbr.rel (%p13) target = $region8
  $region5: #{_lambda_.10} parent=0 // loop_body
    %s17 = ssub.s32 %s12, 1
    %s18 = ssub.s32 %s12, 2
    %s28 = sadd.s32 1, %s21
    %p29 = scmp.ge.s32.totalorder %s28, 1
    %s30 = scalar_select %p29, 0, %s28
    %s31 = sadd.s32 1, %s20
    %s32 = scalar_select %p29, %s31, %s20
    %p33 = scmp.ge.s32.totalorder %s32, 1
    %s34 = scalar_select %p33, 0, %s32
    %s35 = sadd.s32 1, %s19
    %s36 = scalar_select %p33, %s35, %s19
    %p37 = scmp.ge.s32.totalorder %s36, 2
    %s38 = scalar_select %p37, 0, %s36
    %s39 = ssub.s32 %s19, %s38
    %s40 = ssub.s32 %s20, %s34
    %s41 = sor.u32 %s39, %s40
    %p42 = scmp.eq.s32.totalorder %s41, 0
    %s44 = sadd.s32 %s43, 1
    %s45 = scalar_select %p42, %s43, %s44
    %p48 = pneg %p42
    %p49 = scmp.eq.s32.totalorder %s12, 1
    %p50 = por %p48, %p49
    %p51 = scmp.ne.s32.totalorder %s43, %s46
    %p52 = scmp.eq.s32.totalorder %s12, 0
    %p53 = por %p51, %p52
    %p54 = scmp.ne.s32.totalorder %s43, %s46
    %p55 = scmp.eq.s32.totalorder %s17, 1
    %p56 = por %p54, %p55
    %p57 = scmp.ne.s32.totalorder %s46, %s47
    %p58 = scmp.eq.s32.totalorder %s17, 0
    %p59 = por %p57, %p58
    %p60 = scmp.ne.s32.totalorder %s46, %s47
    %p61 = scmp.eq.s32.totalorder %s18, 1
    %p62 = por %p60, %p61
    %p64 = scmp.ne.s32.totalorder %s47, %s63
    %p65 = scmp.eq.s32.totalorder %s18, 0
    %p66 = por %p64, %p65
    %s67 = ssub.s32 %s19, %s38
    %s68 = ssub.s32 %s21, %s30
    %s69 = sor.u32 %s67, %s68
    %p70 = scmp.eq.s32.totalorder %s69, 0
    %s72 = sadd.s32 %s71, 1
    %s73 = scalar_select %p70, %s71, %s72
    %p76 = pneg %p70
    %p77 = scmp.eq.s32.totalorder %s12, 1
    %p78 = por %p76, %p77
    %p79 = scmp.ne.s32.totalorder %s71, %s74
    %p80 = scmp.eq.s32.totalorder %s12, 0
    %p81 = por %p79, %p80
    %p82 = scmp.ne.s32.totalorder %s71, %s74
    %p83 = scmp.eq.s32.totalorder %s17, 1
    %p84 = por %p82, %p83
    %p85 = scmp.ne.s32.totalorder %s74, %s75
    %p86 = scmp.eq.s32.totalorder %s17, 0
    %p87 = por %p85, %p86
    %p88 = scmp.ne.s32.totalorder %s74, %s75
    %p89 = scmp.eq.s32.totalorder %s18, 1
    %p90 = por %p88, %p89
    %p92 = scmp.ne.s32.totalorder %s75, %s91
    %p93 = scmp.eq.s32.totalorder %s18, 0
    %p94 = por %p92, %p93
    %s95 = ssub.s32 %s19, %s38
    %s96 = ssub.s32 %s21, %s30
    %s97 = sor.u32 %s95, %s96
    %p98 = scmp.eq.s32.totalorder %s97, 0
    %s100 = sadd.s32 %s99, 1
    %s101 = scalar_select %p98, %s99, %s100
    %p104 = pneg %p98
    %p105 = scmp.eq.s32.totalorder %s12, 1
    %p106 = por %p104, %p105
    %p107 = scmp.ne.s32.totalorder %s99, %s102
    %p108 = scmp.eq.s32.totalorder %s12, 0
    %p109 = por %p107, %p108
    %p110 = scmp.ne.s32.totalorder %s99, %s102
    %p111 = scmp.eq.s32.totalorder %s17, 1
    %p112 = por %p110, %p111
    %p113 = scmp.ne.s32.totalorder %s102, %s103
    %p114 = scmp.eq.s32.totalorder %s17, 0
    %p115 = por %p113, %p114
    %p116 = scmp.ne.s32.totalorder %s102, %s103
    %p117 = scmp.eq.s32.totalorder %s18, 1
    %p118 = por %p116, %p117
    %p120 = scmp.ne.s32.totalorder %s103, %s119
    %p121 = scmp.eq.s32.totalorder %s18, 0
    %p122 = por %p120, %p121
    %s123 = ssub.s32 %s19, %s38
    %s124 = ssub.s32 %s20, %s34
    %s125 = sor.u32 %s123, %s124
    %s126 = ssub.s32 %s21, %s30
    %s127 = sor.u32 %s125, %s126
    %p128 = scmp.eq.s32.totalorder %s127, 0
    %s130 = sadd.s32 %s129, 1
    %s131 = scalar_select %p128, %s129, %s130
    %p134 = pneg %p128
    %p135 = scmp.eq.s32.totalorder %s12, 1
    %p136 = por %p134, %p135
    %p137 = scmp.ne.s32.totalorder %s129, %s132
    %p138 = scmp.eq.s32.totalorder %s12, 0
    %p139 = por %p137, %p138
    %p140 = scmp.ne.s32.totalorder %s129, %s132
    %p141 = scmp.eq.s32.totalorder %s17, 1
    %p142 = por %p140, %p141
    %p143 = scmp.ne.s32.totalorder %s132, %s133
    %p144 = scmp.eq.s32.totalorder %s17, 0
    %p145 = por %p143, %p144
    %p146 = scmp.ne.s32.totalorder %s132, %s133
    %p147 = scmp.eq.s32.totalorder %s18, 1
    %p148 = por %p146, %p147
    %p150 = scmp.ne.s32.totalorder %s133, %s149
    %p151 = scmp.eq.s32.totalorder %s18, 0
    %p152 = por %p150, %p151
    %s153 = ssub.s32 %s19, %s38
    %s154 = ssub.s32 %s20, %s34
    %s155 = sor.u32 %s153, %s154
    %s156 = ssub.s32 %s21, %s30
    %s157 = sor.u32 %s155, %s156
    %p158 = scmp.eq.s32.totalorder %s157, 0
    %s160 = sadd.s32 %s159, 1
    %s161 = scalar_select %p158, %s159, %s160
    %p164 = pneg %p158
    %p165 = scmp.eq.s32.totalorder %s12, 1
    %p166 = por %p164, %p165
    %p167 = scmp.ne.s32.totalorder %s159, %s162
    %p168 = scmp.eq.s32.totalorder %s12, 0
    %p169 = por %p167, %p168
    %p170 = scmp.ne.s32.totalorder %s159, %s162
    %p171 = scmp.eq.s32.totalorder %s17, 1
    %p172 = por %p170, %p171
    %p173 = scmp.ne.s32.totalorder %s162, %s163
    %p174 = scmp.eq.s32.totalorder %s17, 0
    %p175 = por %p173, %p174
    %p176 = scmp.ne.s32.totalorder %s162, %s163
    %p177 = scmp.eq.s32.totalorder %s18, 1
    %p178 = por %p176, %p177
    %p180 = scmp.ne.s32.totalorder %s163, %s179
    %p181 = scmp.eq.s32.totalorder %s18, 0
    %p182 = por %p180, %p181
    %s183 = ssub.s32 %s19, %s38
    %s184 = ssub.s32 %s20, %s34
    %s185 = sor.u32 %s183, %s184
    %s186 = ssub.s32 %s21, %s30
    %s187 = sor.u32 %s185, %s186
    %p188 = scmp.eq.s32.totalorder %s187, 0
    %s190 = sadd.s32 %s189, 1
    %s191 = scalar_select %p188, %s189, %s190
    %p194 = pneg %p188
    %p195 = scmp.eq.s32.totalorder %s12, 1
    %p196 = por %p194, %p195
    %p197 = scmp.ne.s32.totalorder %s189, %s192
    %p198 = scmp.eq.s32.totalorder %s12, 0
    %p199 = por %p197, %p198
    %p200 = scmp.ne.s32.totalorder %s189, %s192
    %p201 = scmp.eq.s32.totalorder %s17, 1
    %p202 = por %p200, %p201
    %p203 = scmp.ne.s32.totalorder %s192, %s193
    %p204 = scmp.eq.s32.totalorder %s17, 0
    %p205 = por %p203, %p204
    %p206 = scmp.ne.s32.totalorder %s192, %s193
    %p207 = scmp.eq.s32.totalorder %s18, 1
    %p208 = por %p206, %p207
    %p210 = scmp.ne.s32.totalorder %s193, %s209
    %p211 = scmp.eq.s32.totalorder %s18, 0
    %p212 = por %p210, %p211
    %s213 = ssub.s32 %s19, %s38
    %s214 = ssub.s32 %s20, %s34
    %s215 = sor.u32 %s213, %s214
    %p216 = scmp.eq.s32.totalorder %s215, 0
    %s218 = sadd.s32 %s217, 1
    %s219 = scalar_select %p216, %s217, %s218
    %p222 = pneg %p216
    %p223 = scmp.eq.s32.totalorder %s12, 1
    %p224 = por %p222, %p223
    %p225 = scmp.ne.s32.totalorder %s217, %s220
    %p226 = scmp.eq.s32.totalorder %s12, 0
    %p227 = por %p225, %p226
    %p228 = scmp.ne.s32.totalorder %s217, %s220
    %p229 = scmp.eq.s32.totalorder %s17, 1
    %p230 = por %p228, %p229
    %p231 = scmp.ne.s32.totalorder %s220, %s221
    %p232 = scmp.eq.s32.totalorder %s17, 0
    %p233 = por %p231, %p232
    %p234 = scmp.ne.s32.totalorder %s220, %s221
    %p235 = scmp.eq.s32.totalorder %s18, 1
    %p236 = por %p234, %p235
    %p238 = scmp.ne.s32.totalorder %s221, %s237
    %p239 = scmp.eq.s32.totalorder %s18, 0
    %p240 = por %p238, %p239
    %p241 = scmp.le.s32.totalorder 1, %s12
    %p242 = scmp.lt.s32.totalorder %s12, 3
    %p243 = pnand %p241, %p242
    %p244 = pneg %p243
    // Predicated region
    $region9: #{_lambda_.10} parent=5 // pred_check
      _
    $region10: #{_lambda_.10} parent=5 // pred_check_branch
      %246 = sbr.rel (%p243) target = $region12
    $region11: #{_lambda_.10} parent=5 // pred_region
      %s247 = ssub.s32 %s12, 1
    $region12: #{_lambda_.10} parent=5 // pred_fallthru
      _
    %p248 = scmp.lt.s32.totalorder %s12, 2
    // Predicated region
    $region13: #{_lambda_.10} parent=5 // pred_check
      %p249 = pneg %p248
    $region14: #{_lambda_.10} parent=5 // pred_check_branch
      %251 = sbr.rel (%p249) target = $region16
    $region15: #{_lambda_.10} parent=5 // pred_region
      // Predicated region
      $region17: #{_lambda_.10} parent=15 // pred_check
        %p252 = pneg %p53
      $region18: #{_lambda_.10} parent=15 // pred_check_branch
        %254 = sbr.rel (%p252) target = $region20
      $region19: #{_lambda_.10} parent=15 // pred_region
        %p255 = scmp.lt.s32.totalorder %s19, 1
        %s256 = scalar_select %p255, %s19, 1
        %p257 = scmp.lt.s32.totalorder %s20, 0
        %s258 = scalar_select %p257, %s20, 0
        %s259 = sadd.s32 %s258, %s256
        %s260 = smul.addr %s259, 4
        %s261 = scalar_lea.vmem %s0, %s260
      $region20: #{_lambda_.10} parent=15 // pred_fallthru
        _
      // Predicated region
      $region21: #{_lambda_.10} parent=15 // pred_check
        %p262 = pneg %p81
      $region22: #{_lambda_.10} parent=15 // pred_check_branch
        %264 = sbr.rel (%p262) target = $region24
      $region23: #{_lambda_.10} parent=15 // pred_region
        %p265 = scmp.lt.s32.totalorder %s19, 1
        %s266 = scalar_select %p265, %s19, 1
        %p267 = scmp.lt.s32.totalorder %s21, 0
        %s268 = scalar_select %p267, %s21, 0
        %s269 = sadd.s32 %s268, %s266
        %s270 = smul.addr %s269, 4
        %s271 = scalar_lea.vmem %s1, %s270
      $region24: #{_lambda_.10} parent=15 // pred_fallthru
        _
      // Predicated region
      $region25: #{_lambda_.10} parent=15 // pred_check
        %p272 = pneg %p109
      $region26: #{_lambda_.10} parent=15 // pred_check_branch
        %274 = sbr.rel (%p272) target = $region28
      $region27: #{_lambda_.10} parent=15 // pred_region
        %p275 = scmp.lt.s32.totalorder %s19, 1
        %s276 = scalar_select %p275, %s19, 1
        %p277 = scmp.lt.s32.totalorder %s21, 0
        %s278 = scalar_select %p277, %s21, 0
        %s279 = sadd.s32 %s278, %s276
        %s280 = smul.addr %s279, 4
        %s281 = scalar_lea.vmem %s2, %s280
      $region28: #{_lambda_.10} parent=15 // pred_fallthru
        _
      // Predicated region
      $region29: #{_lambda_.10} parent=15 // pred_check
        %p282 = pneg %p139
      $region30: #{_lambda_.10} parent=15 // pred_check_branch
        %284 = sbr.rel (%p282) target = $region32
      $region31: #{_lambda_.10} parent=15 // pred_region
        %s285 = smul.u32 8, %s20
        %p286 = scmp.lt.s32.totalorder %s19, 1
        %s287 = scalar_select %p286, %s19, 1
        %p288 = scmp.lt.s32.totalorder %s285, 7
        %s289 = scalar_select %p288, %s285, 7
        %p290 = scmp.lt.s32.totalorder %s21, 0
        %s291 = scalar_select %p290, %s21, 0
        %s292 = sadd.s32 %s291, %s289
        %s293 = smul.addr %s287, 8
        %s294 = sadd.s32 %s292, %s293
        %s295 = smul.addr %s294, 4
        %s296 = scalar_lea.vmem %s3, %s295
        %s297 = smul.u32 8, %s20
      $region32: #{_lambda_.10} parent=15 // pred_fallthru
        _
      // Predicated region
      $region33: #{_lambda_.10} parent=15 // pred_check
        %p298 = pneg %p169
      $region34: #{_lambda_.10} parent=15 // pred_check_branch
        %300 = sbr.rel (%p298) target = $region36
      $region35: #{_lambda_.10} parent=15 // pred_region
        %s301 = smul.u32 8, %s20
        %p302 = scmp.lt.s32.totalorder %s19, 1
        %s303 = scalar_select %p302, %s19, 1
        %p304 = scmp.lt.s32.totalorder %s301, 7
        %s305 = scalar_select %p304, %s301, 7
        %p306 = scmp.lt.s32.totalorder %s21, 0
        %s307 = scalar_select %p306, %s21, 0
        %s308 = sadd.s32 %s307, %s305
        %s309 = smul.addr %s303, 8
        %s310 = sadd.s32 %s308, %s309
        %s311 = smul.addr %s310, 4
        %s312 = scalar_lea.vmem %s4, %s311
        %s313 = smul.u32 8, %s20
      $region36: #{_lambda_.10} parent=15 // pred_fallthru
        _
      // Predicated region
      $region37: #{_lambda_.10} parent=15 // pred_check
        %p314 = pneg %p199
      $region38: #{_lambda_.10} parent=15 // pred_check_branch
        %316 = sbr.rel (%p314) target = $region40
      $region39: #{_lambda_.10} parent=15 // pred_region
        %p317 = scmp.lt.s32.totalorder %s19, 1
        %s318 = scalar_select %p317, %s19, 1
        %p319 = scmp.lt.s32.totalorder %s20, 0
        %s320 = scalar_select %p319, %s20, 0
        %p321 = scmp.lt.s32.totalorder %s21, 0
        %s322 = scalar_select %p321, %s21, 0
        %s323 = sadd.s32 %s322, %s320
        %s324 = sadd.s32 %s323, %s318
        %s325 = smul.addr %s324, 8
        %s326 = scalar_lea.vmem %s5, %s325
      $region40: #{_lambda_.10} parent=15 // pred_fallthru
        _
    $region16: #{_lambda_.10} parent=5 // pred_fallthru
      _
    %p327 = scmp.le.s32.totalorder 1, %s12
    %p328 = scmp.lt.s32.totalorder %s12, 3
    %p329 = pnand %p327, %p328
    %p330 = pneg %p329
    // Predicated region
    $region41: #{_lambda_.10} parent=5 // pred_check
      _
    $region42: #{_lambda_.10} parent=5 // pred_check_branch
      %332 = sbr.rel (%p329) target = $region44
    $region43: #{_lambda_.10} parent=5 // pred_region
      %s333 = ssub.s32 %s12, 1
      %p334 = scmp.lt.s32.totalorder %s22, 1
      %s335 = scalar_select %p334, %s22, 1
      %p336 = scmp.lt.s32.totalorder %s23, 0
      %s337 = scalar_select %p336, %s23, 0
      %s338 = sadd.s32 %s337, %s335
      %s339 = smul.addr %s338, 4
      %s340 = scalar_lea.vmem %s0, %s339
      %p341 = pneg %p59
      %p342 = pneg %p56
      %p343 = scmp.lt.s32.totalorder %s22, 1
      %s344 = scalar_select %p343, %s22, 1
      %p345 = scmp.lt.s32.totalorder %s24, 0
      %s346 = scalar_select %p345, %s24, 0
      %s347 = sadd.s32 %s346, %s344
      %s348 = smul.addr %s347, 4
      %s349 = scalar_lea.vmem %s1, %s348
      %p350 = pneg %p87
      %p351 = pneg %p84
      %p352 = scmp.lt.s32.totalorder %s22, 1
      %s353 = scalar_select %p352, %s22, 1
      %p354 = scmp.lt.s32.totalorder %s24, 0
      %s355 = scalar_select %p354, %s24, 0
      %s356 = sadd.s32 %s355, %s353
      %s357 = smul.addr %s356, 4
      %s358 = scalar_lea.vmem %s2, %s357
      %p359 = pneg %p115
      %p360 = pneg %p112
      %s361 = smul.u32 8, %s23
      %p362 = scmp.lt.s32.totalorder %s22, 1
      %s363 = scalar_select %p362, %s22, 1
      %p364 = scmp.lt.s32.totalorder %s361, 7
      %s365 = scalar_select %p364, %s361, 7
      %p366 = scmp.lt.s32.totalorder %s24, 0
      %s367 = scalar_select %p366, %s24, 0
      %s368 = sadd.s32 %s367, %s365
      %s369 = smul.addr %s363, 8
      %s370 = sadd.s32 %s368, %s369
      %s371 = smul.addr %s370, 4
      %s372 = scalar_lea.vmem %s3, %s371
      %p373 = pneg %p145
      %p374 = pneg %p142
      %s375 = smul.u32 8, %s23
      %p376 = scmp.lt.s32.totalorder %s22, 1
      %s377 = scalar_select %p376, %s22, 1
      %p378 = scmp.lt.s32.totalorder %s375, 7
      %s379 = scalar_select %p378, %s375, 7
      %p380 = scmp.lt.s32.totalorder %s24, 0
      %s381 = scalar_select %p380, %s24, 0
      %s382 = sadd.s32 %s381, %s379
      %s383 = smul.addr %s377, 8
      %s384 = sadd.s32 %s382, %s383
      %s385 = smul.addr %s384, 4
      %s386 = scalar_lea.vmem %s4, %s385
      %p387 = pneg %p175
      %p388 = pneg %p172
      %p389 = scmp.lt.s32.totalorder %s22, 1
      %s390 = scalar_select %p389, %s22, 1
      %p391 = scmp.lt.s32.totalorder %s23, 0
      %s392 = scalar_select %p391, %s23, 0
      %p393 = scmp.lt.s32.totalorder %s24, 0
      %s394 = scalar_select %p393, %s24, 0
      %s395 = sadd.s32 %s394, %s392
      %s396 = sadd.s32 %s395, %s390
      %s397 = smul.addr %s396, 8
      %s398 = scalar_lea.vmem %s5, %s397
      %p399 = pneg %p205
      %p400 = pneg %p202
      %p401 = pneg %p233
      %p402 = pneg %p230
      %p403 = scmp.lt.s32.totalorder %s22, 1
      %s404 = scalar_select %p403, %s22, 1
      %p405 = scmp.lt.s32.totalorder %s23, 0
      %s406 = scalar_select %p405, %s23, 0
      %s407 = sadd.s32 %s406, %s404
      %s408 = smul.addr %s407, 8
      %s409 = scalar_lea.vmem %s6, %s408
      %p410 = scmp.lt.s32.totalorder %s22, 1
      %s411 = scalar_select %p410, %s22, 1
      %p412 = scmp.lt.s32.totalorder %s23, 0
      %s413 = scalar_select %p412, %s23, 0
      %s414 = sadd.s32 %s413, %s411
      %s415 = smul.addr %s414, 4
      %s416 = scalar_lea.vmem %s0, %s415
      %p417 = scmp.lt.s32.totalorder %s22, 1
      %s418 = scalar_select %p417, %s22, 1
      %p419 = scmp.lt.s32.totalorder %s24, 0
      %s420 = scalar_select %p419, %s24, 0
      %s421 = sadd.s32 %s420, %s418
      %s422 = smul.addr %s421, 4
      %s423 = scalar_lea.vmem %s1, %s422
      %p424 = scmp.lt.s32.totalorder %s22, 1
      %s425 = scalar_select %p424, %s22, 1
      %p426 = scmp.lt.s32.totalorder %s24, 0
      %s427 = scalar_select %p426, %s24, 0
      %s428 = sadd.s32 %s427, %s425
      %s429 = smul.addr %s428, 4
      %s430 = scalar_lea.vmem %s2, %s429
      %s431 = smul.u32 8, %s23
      %p432 = scmp.lt.s32.totalorder %s22, 1
      %s433 = scalar_select %p432, %s22, 1
      %p434 = scmp.lt.s32.totalorder %s431, 7
      %s435 = scalar_select %p434, %s431, 7
      %p436 = scmp.lt.s32.totalorder %s24, 0
      %s437 = scalar_select %p436, %s24, 0
      %s438 = sadd.s32 %s437, %s435
      %s439 = smul.addr %s433, 8
      %s440 = sadd.s32 %s438, %s439
      %s441 = smul.addr %s440, 4
      %s442 = scalar_lea.vmem %s3, %s441
      %s443 = smul.u32 8, %s23
      %s444 = smul.u32 8, %s23
      %p445 = scmp.lt.s32.totalorder %s22, 1
      %s446 = scalar_select %p445, %s22, 1
      %p447 = scmp.lt.s32.totalorder %s444, 7
      %s448 = scalar_select %p447, %s444, 7
      %p449 = scmp.lt.s32.totalorder %s24, 0
      %s450 = scalar_select %p449, %s24, 0
      %s451 = sadd.s32 %s450, %s448
      %s452 = smul.addr %s446, 8
      %s453 = sadd.s32 %s451, %s452
      %s454 = smul.addr %s453, 4
      %s455 = scalar_lea.vmem %s4, %s454
      %s456 = smul.u32 8, %s23
      %p457 = scmp.lt.s32.totalorder %s22, 1
      %s458 = scalar_select %p457, %s22, 1
      %p459 = scmp.lt.s32.totalorder %s23, 0
      %s460 = scalar_select %p459, %s23, 0
      %p461 = scmp.lt.s32.totalorder %s24, 0
      %s462 = scalar_select %p461, %s24, 0
      %s463 = sadd.s32 %s462, %s460
      %s464 = sadd.s32 %s463, %s458
      %s465 = smul.addr %s464, 8
      %s466 = scalar_lea.vmem %s5, %s465
      %p467 = scmp.lt.s32.totalorder %s22, 1
      %s468 = scalar_select %p467, %s22, 1
      %p469 = scmp.lt.s32.totalorder %s23, 0
      %s470 = scalar_select %p469, %s23, 0
      %s471 = sadd.s32 %s470, %s468
      %s472 = smul.addr %s471, 8
      %s473 = scalar_lea.vmem %s6, %s472
      %p475 = scmp.eq.s32.totalorder %s24, 0
      // Predicated region
      $region45: #{_lambda_.10} parent=43 // pred_check
        %p476 = pneg %p475
      $region46: #{_lambda_.10} parent=43 // pred_check_branch
        %478 = sbr.rel (%p476) target = $region48
      $region47: #{_lambda_.10} parent=43 // pred_region
        %vm479 = vcmask 7168
        %480 = vst.msk [vmem:[#allocation2] sm:$0xff] %vm479, -1e+30
        %481 = vst.msk [vmem:[#allocation2 + $0x8] sm:$0xff] %vm479, -1e+30
        %482 = vst.msk [vmem:[#allocation2 + $0x10] sm:$0xff] %vm479, -1e+30
        %483 = vst.msk [vmem:[#allocation2 + $0x18] sm:$0xff] %vm479, -1e+30
        %484 = vst.msk [vmem:[#allocation3] sm:$0xff] %vm479, 0.0
        %485 = vst.msk [vmem:[#allocation3 + $0x8] sm:$0xff] %vm479, 0.0
        %486 = vst.msk [vmem:[#allocation3 + $0x10] sm:$0xff] %vm479, 0.0
        %487 = vst.msk [vmem:[#allocation3 + $0x18] sm:$0xff] %vm479, 0.0
        %vm488 = vcmask 261120
        %489 = vst.msk [vmem:[#allocation4] sm:$0xff] %vm488, 0.0
      $region48: #{_lambda_.10} parent=43 // pred_fallthru
        _
      %v490 = vld [vmem:[%s416] sm:$0xf]
      %v491 = vld [vmem:[%s423] sm:$0xf]
      %v492 = vld [vmem:[%s430] sm:$0xf]
      %v493 = vld [vmem:[%s442] sm:$0xf]
      %v494 = vld [vmem:[%s442 + $0x4] sm:$0xf]
      %v495 = vld [vmem:[%s442 + $0x8] sm:$0xf]
      %v496 = vld [vmem:[%s442 + $0xc] sm:$0xf]
      %v497 = vld [vmem:[%s442 + $0x10] sm:$0xf]
      %v498 = vld [vmem:[%s442 + $0x14] sm:$0xf]
      %v499 = vld [vmem:[%s442 + $0x18] sm:$0xf]
      %v500 = vld [vmem:[%s442 + $0x1c] sm:$0xf]
      %v501 = vld [vmem:[%s455] sm:$0xf]
      %v502 = vld [vmem:[%s455 + $0x4] sm:$0xf]
      %v503 = vld [vmem:[%s455 + $0x8] sm:$0xf]
      %v504 = vld [vmem:[%s455 + $0xc] sm:$0xf]
      %v505 = vld [vmem:[%s455 + $0x10] sm:$0xf]
      %v506 = vld [vmem:[%s455 + $0x14] sm:$0xf]
      %v507 = vld [vmem:[%s455 + $0x18] sm:$0xf]
      %v508 = vld [vmem:[%s455 + $0x1c] sm:$0xf]
      %v509 = vld [vmem:[%s466] sm:$0xff]
      %v510 = vunpack.c.l.bf16 %v490
      %v511 = vunpack.c.l.bf16 %v491
      %v512 = vunpack.c.l.bf16 %v493
      %v513 = vunpack.c.l.bf16 %v494
      %v514 = vunpack.c.l.bf16 %v495
      %v515 = vunpack.c.l.bf16 %v496
      %v516 = vunpack.c.l.bf16 %v497
      %v517 = vunpack.c.l.bf16 %v498
      %v518 = vunpack.c.l.bf16 %v499
      %v519 = vunpack.c.l.bf16 %v500
      %v520 = vunpack.c.l.bf16 %v501
      %v521 = vunpack.c.l.bf16 %v502
      %v522 = vunpack.c.l.bf16 %v503
      %v523 = vunpack.c.l.bf16 %v504
      %v524 = vunpack.c.l.bf16 %v505
      %v525 = vunpack.c.l.bf16 %v506
      %v526 = vunpack.c.l.bf16 %v507
      %v527 = vunpack.c.l.bf16 %v508
      %v528 = vadd.f32 %v511, %v520
      %v529 = vadd.f32 %v511, %v521
      %v530 = vadd.f32 %v511, %v522
      %v531 = vadd.f32 %v511, %v523
      %v532 = vadd.f32 %v511, %v524
      %v533 = vadd.f32 %v511, %v525
      %v534 = vadd.f32 %v511, %v526
      %v535 = vadd.f32 %v511, %v527
      %v536 = vmul.f32 %v512, %v528
      %v537 = vmul.f32 %v513, %v529
      %v538 = vmul.f32 %v514, %v530
      %v539 = vmul.f32 %v515, %v531
      %v540 = vmul.f32 %v516, %v532
      %v541 = vmul.f32 %v517, %v533
      %v542 = vmul.f32 %v518, %v534
      %v543 = vmul.f32 %v519, %v535
      %v545 = vrot.slane %v510, 1
      %v546 = vrot.slane %v510, 2
      %v547 = vrot.slane %v510, 3
      %v548 = vrot.slane %v510, 4
      %v549 = vrot.slane %v510, 5
      %v550 = vrot.slane %v510, 6
      %v551 = vrot.slane %v510, 7
      %v552 = vperm.slane %v510, 0
      %v553 = vperm.slane %v545, 0
      %v554 = vperm.slane %v546, 0
      %v555 = vperm.slane %v547, 0
      %v556 = vperm.slane %v548, 0
      %v557 = vperm.slane %v549, 0
      %v558 = vperm.slane %v550, 0
      %v559 = vperm.slane %v551, 0
      %v568 = vmul.f32 %v552, %v520
      %v569 = vmul.f32 %v553, %v521
      %v570 = vmul.f32 %v554, %v522
      %v571 = vmul.f32 %v555, %v523
      %v572 = vmul.f32 %v556, %v524
      %v573 = vmul.f32 %v557, %v525
      %v574 = vmul.f32 %v558, %v526
      %v575 = vmul.f32 %v559, %v527
      %v576 = vadd.f32 %v536, %v568
      %v577 = vadd.f32 %v537, %v569
      %v578 = vadd.f32 %v538, %v570
      %v579 = vadd.f32 %v539, %v571
      %v580 = vadd.f32 %v540, %v572
      %v581 = vadd.f32 %v541, %v573
      %v582 = vadd.f32 %v542, %v574
      %v583 = vadd.f32 %v543, %v575
      %vm584 = vcmask 64512
      %v585 = vsel %vm584, %v576, 0.0
      %586 = vadd.xlane.f32.xlu0 %v585
      %v587 = vpop.xlane.xlu0 %586
      %v588 = vsel %vm584, %v577, 0.0
      %589 = vadd.xlane.f32.xlu0 %v588
      %v590 = vpop.xlane.xlu0 %589
      %v591 = vsel %vm584, %v578, 0.0
      %592 = vadd.xlane.f32.xlu0 %v591
      %v593 = vpop.xlane.xlu0 %592
      %v594 = vsel %vm584, %v579, 0.0
      %595 = vadd.xlane.f32.xlu0 %v594
      %v596 = vpop.xlane.xlu0 %595
      %v597 = vsel %vm584, %v580, 0.0
      %598 = vadd.xlane.f32.xlu0 %v597
      %v599 = vpop.xlane.xlu0 %598
      %v600 = vsel %vm584, %v581, 0.0
      %601 = vadd.xlane.f32.xlu0 %v600
      %v602 = vpop.xlane.xlu0 %601
      %v603 = vsel %vm584, %v582, 0.0
      %604 = vadd.xlane.f32.xlu0 %v603
      %v605 = vpop.xlane.xlu0 %604
      %v606 = vsel %vm584, %v583, 0.0
      %607 = vadd.xlane.f32.xlu0 %v606
      %v608 = vpop.xlane.xlu0 %607
      %v617 = vlaneseq
      %v618 = vand.u32 %v617, 127
      %v619 = vperm.slane %v587, %v618
      %v620 = vperm.slane %v590, %v618
      %v621 = vperm.slane %v593, %v618
      %v622 = vperm.slane %v596, %v618
      %v623 = vperm.slane %v599, %v618
      %v624 = vperm.slane %v602, %v618
      %v625 = vperm.slane %v605, %v618
      %v626 = vperm.slane %v608, %v618
      %vm627 = vcmask 1041409
      %v628 = vsel %vm627, %v620, %v619
      %vm629 = vcmask 1042434
      %v630 = vsel %vm629, %v621, %v628
      %vm631 = vcmask 1043459
      %v632 = vsel %vm631, %v622, %v630
      %vm633 = vcmask 1044484
      %v634 = vsel %vm633, %v623, %v632
      %vm635 = vcmask 1045509
      %v636 = vsel %vm635, %v624, %v634
      %vm637 = vcmask 1046534
      %v638 = vsel %vm637, %v625, %v636
      %vm639 = vcmask 1047559
      %v640 = vsel %vm639, %v626, %v638
      %v643 = vsel %vm584, %v490, 0
      %v646 = vsel %vm584, %v491, 0
      %648 = vmatpush.bf16.xpose.msra.mxu0 0
      %649 = vmatpush.bf16.xpose.msra.mxu0 0
      %650 = vmatpush.bf16.xpose.msra.mxu0 0
      %651 = vmatpush.bf16.xpose.msra.mxu0 0
      %652 = vmatpush.bf16.xpose.msra.mxu0 0
      %653 = vmatpush.bf16.xpose.msra.mxu0 0
      %654 = vmatpush.bf16.xpose.msra.mxu0 0
      %655 = vmatpush.bf16.xpose.msra.mxu0 %v646
      %656 = vmatmul.bf16.gmra.mxu0 %v643
      %v657 = vpop.f32.mrf.mxu0
      %v658 = vadd.f32 %v640, %v657
      %v659 = vpop.f32.mrf.mxu0
      %660 = vdwg.mxu0
      %v661 = vmul.f32 %v658, 0.35355338
      %v662 = vadd.f32 %v661, %v509
      %v663 = vld [vmem:[#allocation2] sm:$0xff]
      %v664 = vsel %vm584, %v662, -inf
      %665 = vmax.xlane.f32.xlu0 %v664
      %v666 = vpop.xlane.xlu0 %665
      %v667 = vmax.f32 %v663, %v666
      %v668 = vsub.f32 %v663, %v667
      %v669 = vmul.f32 %v668, 1.442695
      %v670 = vpow.pop %v669
      %672 = vset.pattern.permute.xlu0 0
      %673 = vperm.xlu0 %672, %v667
      %v674 = vpop.permute.xlu0 %673
      %v676 = vsub.f32 %v662, %v674
      %v677 = vmul.f32 %v676, 1.442695
      %v678 = vpow.pop %v677
      %v679 = vld [vmem:[#allocation3] sm:$0xff]
      %v680 = vmul.f32 %v670, %v679
      %v681 = vsel %vm584, %v678, 0.0
      %682 = vadd.xlane.f32.xlu0 %v681
      %v683 = vpop.xlane.xlu0 %682
      %v684 = vadd.f32 %v680, %v683
      %vm685 = vcmask 7168
      %686 = vst.msk [vmem:[#allocation3] sm:$0xff] %vm685, %v684
      %v687 = vld [vmem:[#allocation4] sm:$0xff]
      %689 = vset.pattern.permute.xlu0 0
      %690 = vperm.xlu0 %689, %v670
      %v691 = vpop.permute.xlu0 %690
      %v693 = vmul.f32 %v691, %v687
      %v694 = vpack.c.bf16 %v678, %v678
      %v696 = vsel %vm584, %v694, 0
      %vm698 = vcmask 1043456
      %v700 = vsel %vm698, %v492, 0
      %702 = vmatpush.bf16.msra.mxu0 0
      %703 = vmatpush.bf16.msra.mxu0 0
      %704 = vmatpush.bf16.msra.mxu0 0
      %705 = vmatpush.bf16.msra.mxu0 0
      %706 = vmatpush.bf16.msra.mxu0 0
      %707 = vmatpush.bf16.msra.mxu0 0
      %708 = vmatpush.bf16.msra.mxu0 0
      %709 = vmatpush.bf16.msra.mxu0 %v700
      %710 = vmatmul.bf16.gmra.mxu0 %v696
      %v711 = vpop.f32.mrf.mxu0
      %v712 = vadd.f32 0.0, %v711
      %v713 = vpop.f32.mrf.mxu0
      %714 = vdwg.mxu0
      %v715 = vadd.f32 %v693, %v712
      %716 = vst.msk [vmem:[#allocation4] sm:$0xff] %vm584, %v715
      %717 = vst.msk [vmem:[#allocation2] sm:$0xff] %vm685, %v667
      %726 = vrot.lane.b32.xlu0 %v576, 120
      %v727 = vpop.permute.xlu0 %726
      %728 = vrot.lane.b32.xlu0 %v577, 120
      %v729 = vpop.permute.xlu0 %728
      %730 = vrot.lane.b32.xlu0 %v578, 120
      %v731 = vpop.permute.xlu0 %730
      %732 = vrot.lane.b32.xlu0 %v579, 120
      %v733 = vpop.permute.xlu0 %732
      %734 = vrot.lane.b32.xlu0 %v580, 120
      %v735 = vpop.permute.xlu0 %734
      %736 = vrot.lane.b32.xlu0 %v581, 120
      %v737 = vpop.permute.xlu0 %736
      %738 = vrot.lane.b32.xlu0 %v582, 120
      %v739 = vpop.permute.xlu0 %738
      %740 = vrot.lane.b32.xlu0 %v583, 120
      %v741 = vpop.permute.xlu0 %740
      %v750 = vsel %vm584, %v727, 0.0
      %751 = vadd.xlane.f32.xlu0 %v750
      %v752 = vpop.xlane.xlu0 %751
      %v753 = vsel %vm584, %v729, 0.0
      %754 = vadd.xlane.f32.xlu0 %v753
      %v755 = vpop.xlane.xlu0 %754
      %v756 = vsel %vm584, %v731, 0.0
      %757 = vadd.xlane.f32.xlu0 %v756
      %v758 = vpop.xlane.xlu0 %757
      %v759 = vsel %vm584, %v733, 0.0
      %760 = vadd.xlane.f32.xlu0 %v759
      %v761 = vpop.xlane.xlu0 %760
      %v762 = vsel %vm584, %v735, 0.0
      %763 = vadd.xlane.f32.xlu0 %v762
      %v764 = vpop.xlane.xlu0 %763
      %v765 = vsel %vm584, %v737, 0.0
      %766 = vadd.xlane.f32.xlu0 %v765
      %v767 = vpop.xlane.xlu0 %766
      %v768 = vsel %vm584, %v739, 0.0
      %769 = vadd.xlane.f32.xlu0 %v768
      %v770 = vpop.xlane.xlu0 %769
      %v771 = vsel %vm584, %v741, 0.0
      %772 = vadd.xlane.f32.xlu0 %v771
      %v773 = vpop.xlane.xlu0 %772
      %v775 = vunpack.c.l.b16 %v490
      %v776 = vpack.c.b16 %v775, %v775
      %777 = vrot.lane.b32.xlu0 %v776, 120
      %v778 = vpop.permute.xlu0 %777
      %v780 = vunpack.c.l.b16 %v491
      %v781 = vpack.c.b16 %v780, %v780
      %782 = vrot.lane.b32.xlu0 %v781, 120
      %v783 = vpop.permute.xlu0 %782
      %v792 = vperm.slane %v752, %v618
      %v793 = vperm.slane %v755, %v618
      %v794 = vperm.slane %v758, %v618
      %v795 = vperm.slane %v761, %v618
      %v796 = vperm.slane %v764, %v618
      %v797 = vperm.slane %v767, %v618
      %v798 = vperm.slane %v770, %v618
      %v799 = vperm.slane %v773, %v618
      %v800 = vsel %vm627, %v793, %v792
      %v801 = vsel %vm629, %v794, %v800
      %v802 = vsel %vm631, %v795, %v801
      %v803 = vsel %vm633, %v796, %v802
      %v804 = vsel %vm635, %v797, %v803
      %v805 = vsel %vm637, %v798, %v804
      %v806 = vsel %vm639, %v799, %v805
      %v809 = vsel %vm584, %v778, 0
      %v812 = vsel %vm584, %v783, 0
      %814 = vmatpush.bf16.xpose.msra.mxu0 0
      %815 = vmatpush.bf16.xpose.msra.mxu0 0
      %816 = vmatpush.bf16.xpose.msra.mxu0 0
      %817 = vmatpush.bf16.xpose.msra.mxu0 0
      %818 = vmatpush.bf16.xpose.msra.mxu0 0
      %819 = vmatpush.bf16.xpose.msra.mxu0 0
      %820 = vmatpush.bf16.xpose.msra.mxu0 0
      %821 = vmatpush.bf16.xpose.msra.mxu0 %v812
      %822 = vmatmul.bf16.gmra.mxu0 %v809
      %v823 = vpop.f32.mrf.mxu0
      %v824 = vadd.f32 %v806, %v823
      %v825 = vpop.f32.mrf.mxu0
      %826 = vdwg.mxu0
      %v827 = vmul.f32 %v824, 0.35355338
      %v828 = vadd.f32 %v827, %v509
      %s829 = scalar_lea.vmem [#allocation2], 8
      %v830 = vld [vmem:[%s829] sm:$0xff]
      %v831 = vsel %vm584, %v828, -inf
      %832 = vmax.xlane.f32.xlu0 %v831
      %v833 = vpop.xlane.xlu0 %832
      %v834 = vmax.f32 %v830, %v833
      %v835 = vsub.f32 %v830, %v834
      %v836 = vmul.f32 %v835, 1.442695
      %v837 = vpow.pop %v836
      %839 = vset.pattern.permute.xlu0 0
      %840 = vperm.xlu0 %839, %v834
      %v841 = vpop.permute.xlu0 %840
      %v843 = vsub.f32 %v828, %v841
      %v844 = vmul.f32 %v843, 1.442695
      %v845 = vpow.pop %v844
      %s846 = scalar_lea.vmem [#allocation3], 8
      %v847 = vld [vmem:[%s846] sm:$0xff]
      %v848 = vmul.f32 %v837, %v847
      %v849 = vsel %vm584, %v845, 0.0
      %850 = vadd.xlane.f32.xlu0 %v849
      %v851 = vpop.xlane.xlu0 %850
      %v852 = vadd.f32 %v848, %v851
      %853 = vst.msk [vmem:[%s846] sm:$0xff] %vm685, %v852
      %v854 = vld [vmem:[#allocation4] sm:$0xff]
      %856 = vset.pattern.permute.xlu0 0
      %857 = vperm.xlu0 %856, %v837
      %v858 = vpop.permute.xlu0 %857
      %v860 = vmul.f32 %v858, %v854
      %v861 = vpack.c.bf16 %v845, %v845
      %v863 = vunpack.c.l.b16 %v492
      %v864 = vpack.c.b16 %v863, %v863
      %865 = vrot.lane.b32.xlu0 %v864, 120
      %v866 = vpop.permute.xlu0 %865
      %v868 = vsel %vm584, %v861, 0
      %v871 = vsel %vm698, %v866, 0
      %873 = vmatpush.bf16.msra.mxu0 0
      %874 = vmatpush.bf16.msra.mxu0 0
      %875 = vmatpush.bf16.msra.mxu0 0
      %876 = vmatpush.bf16.msra.mxu0 0
      %877 = vmatpush.bf16.msra.mxu0 0
      %878 = vmatpush.bf16.msra.mxu0 0
      %879 = vmatpush.bf16.msra.mxu0 0
      %880 = vmatpush.bf16.msra.mxu0 %v871
      %881 = vmatmul.bf16.gmra.mxu0 %v868
      %v882 = vpop.f32.mrf.mxu0
      %v883 = vadd.f32 0.0, %v882
      %v884 = vpop.f32.mrf.mxu0
      %885 = vdwg.mxu0
      %887 = vrot.lane.b32.xlu0 %v883, 8
      %v888 = vpop.permute.xlu0 %887
      %v890 = vadd.f32 %v860, %v888
      %vm891 = vcmask 130112
      %892 = vst.msk [vmem:[#allocation4] sm:$0xff] %vm891, %v890
      %893 = vst.msk [vmem:[%s829] sm:$0xff] %vm685, %v834
      %894 = vrot.lane.b32.xlu0 %v576, 112
      %v895 = vpop.permute.xlu0 %894
      %896 = vrot.lane.b32.xlu0 %v577, 112
      %v897 = vpop.permute.xlu0 %896
      %898 = vrot.lane.b32.xlu0 %v578, 112
      %v899 = vpop.permute.xlu0 %898
      %900 = vrot.lane.b32.xlu0 %v579, 112
      %v901 = vpop.permute.xlu0 %900
      %902 = vrot.lane.b32.xlu0 %v580, 112
      %v903 = vpop.permute.xlu0 %902
      %904 = vrot.lane.b32.xlu0 %v581, 112
      %v905 = vpop.permute.xlu0 %904
      %906 = vrot.lane.b32.xlu0 %v582, 112
      %v907 = vpop.permute.xlu0 %906
      %908 = vrot.lane.b32.xlu0 %v583, 112
      %v909 = vpop.permute.xlu0 %908
      %v918 = vsel %vm584, %v895, 0.0
      %919 = vadd.xlane.f32.xlu0 %v918
      %v920 = vpop.xlane.xlu0 %919
      %v921 = vsel %vm584, %v897, 0.0
      %922 = vadd.xlane.f32.xlu0 %v921
      %v923 = vpop.xlane.xlu0 %922
      %v924 = vsel %vm584, %v899, 0.0
      %925 = vadd.xlane.f32.xlu0 %v924
      %v926 = vpop.xlane.xlu0 %925
      %v927 = vsel %vm584, %v901, 0.0
      %928 = vadd.xlane.f32.xlu0 %v927
      %v929 = vpop.xlane.xlu0 %928
      %v930 = vsel %vm584, %v903, 0.0
      %931 = vadd.xlane.f32.xlu0 %v930
      %v932 = vpop.xlane.xlu0 %931
      %v933 = vsel %vm584, %v905, 0.0
      %934 = vadd.xlane.f32.xlu0 %v933
      %v935 = vpop.xlane.xlu0 %934
      %v936 = vsel %vm584, %v907, 0.0
      %937 = vadd.xlane.f32.xlu0 %v936
      %v938 = vpop.xlane.xlu0 %937
      %v939 = vsel %vm584, %v909, 0.0
      %940 = vadd.xlane.f32.xlu0 %v939
      %v941 = vpop.xlane.xlu0 %940
      %942 = vrot.lane.b32.xlu0 %v776, 112
      %v943 = vpop.permute.xlu0 %942
      %944 = vrot.lane.b32.xlu0 %v781, 112
      %v945 = vpop.permute.xlu0 %944
      %v954 = vperm.slane %v920, %v618
      %v955 = vperm.slane %v923, %v618
      %v956 = vperm.slane %v926, %v618
      %v957 = vperm.slane %v929, %v618
      %v958 = vperm.slane %v932, %v618
      %v959 = vperm.slane %v935, %v618
      %v960 = vperm.slane %v938, %v618
      %v961 = vperm.slane %v941, %v618
      %v962 = vsel %vm627, %v955, %v954
      %v963 = vsel %vm629, %v956, %v962
      %v964 = vsel %vm631, %v957, %v963
      %v965 = vsel %vm633, %v958, %v964
      %v966 = vsel %vm635, %v959, %v965
      %v967 = vsel %vm637, %v960, %v966
      %v968 = vsel %vm639, %v961, %v967
      %v971 = vsel %vm584, %v943, 0
      %v974 = vsel %vm584, %v945, 0
      %976 = vmatpush.bf16.xpose.msra.mxu0 0
      %977 = vmatpush.bf16.xpose.msra.mxu0 0
      %978 = vmatpush.bf16.xpose.msra.mxu0 0
      %979 = vmatpush.bf16.xpose.msra.mxu0 0
      %980 = vmatpush.bf16.xpose.msra.mxu0 0
      %981 = vmatpush.bf16.xpose.msra.mxu0 0
      %982 = vmatpush.bf16.xpose.msra.mxu0 0
      %983 = vmatpush.bf16.xpose.msra.mxu0 %v974
      %984 = vmatmul.bf16.gmra.mxu0 %v971
      %v985 = vpop.f32.mrf.mxu0
      %v986 = vadd.f32 %v968, %v985
      %v987 = vpop.f32.mrf.mxu0
      %988 = vdwg.mxu0
      %v989 = vmul.f32 %v986, 0.35355338
      %v990 = vadd.f32 %v989, %v509
      %s991 = scalar_lea.vmem [#allocation2], 16
      %v992 = vld [vmem:[%s991] sm:$0xff]
      %v993 = vsel %vm584, %v990, -inf
      %994 = vmax.xlane.f32.xlu0 %v993
      %v995 = vpop.xlane.xlu0 %994
      %v996 = vmax.f32 %v992, %v995
      %v997 = vsub.f32 %v992, %v996
      %v998 = vmul.f32 %v997, 1.442695
      %v999 = vpow.pop %v998
      %1001 = vset.pattern.permute.xlu0 0
      %1002 = vperm.xlu0 %1001, %v996
      %v1003 = vpop.permute.xlu0 %1002
      %v1005 = vsub.f32 %v990, %v1003
      %v1006 = vmul.f32 %v1005, 1.442695
      %v1007 = vpow.pop %v1006
      %s1008 = scalar_lea.vmem [#allocation3], 16
      %v1009 = vld [vmem:[%s1008] sm:$0xff]
      %v1010 = vmul.f32 %v999, %v1009
      %v1011 = vsel %vm584, %v1007, 0.0
      %1012 = vadd.xlane.f32.xlu0 %v1011
      %v1013 = vpop.xlane.xlu0 %1012
      %v1014 = vadd.f32 %v1010, %v1013
      %1015 = vst.msk [vmem:[%s1008] sm:$0xff] %vm685, %v1014
      %v1016 = vld [vmem:[#allocation4] sm:$0xff]
      %1018 = vset.pattern.permute.xlu0 0
      %1019 = vperm.xlu0 %1018, %v999
      %v1020 = vpop.permute.xlu0 %1019
      %v1022 = vmul.f32 %v1020, %v1016
      %v1023 = vpack.c.bf16 %v1007, %v1007
      %1024 = vrot.lane.b32.xlu0 %v864, 112
      %v1025 = vpop.permute.xlu0 %1024
      %v1027 = vsel %vm584, %v1023, 0
      %v1030 = vsel %vm698, %v1025, 0
      %1032 = vmatpush.bf16.msra.mxu0 0
      %1033 = vmatpush.bf16.msra.mxu0 0
      %1034 = vmatpush.bf16.msra.mxu0 0
      %1035 = vmatpush.bf16.msra.mxu0 0
      %1036 = vmatpush.bf16.msra.mxu0 0
      %1037 = vmatpush.bf16.msra.mxu0 0
      %1038 = vmatpush.bf16.msra.mxu0 0
      %1039 = vmatpush.bf16.msra.mxu0 %v1030
      %1040 = vmatmul.bf16.gmra.mxu0 %v1027
      %v1041 = vpop.f32.mrf.mxu0
      %v1042 = vadd.f32 0.0, %v1041
      %v1043 = vpop.f32.mrf.mxu0
      %1044 = vdwg.mxu0
      %1046 = vrot.lane.b32.xlu0 %v1042, 16
      %v1047 = vpop.permute.xlu0 %1046
      %v1049 = vadd.f32 %v1022, %v1047
      %vm1050 = vcmask 195712
      %1051 = vst.msk [vmem:[#allocation4] sm:$0xff] %vm1050, %v1049
      %1052 = vst.msk [vmem:[%s991] sm:$0xff] %vm685, %v996
      %1053 = vrot.lane.b32.xlu0 %v576, 104
      %v1054 = vpop.permute.xlu0 %1053
      %1055 = vrot.lane.b32.xlu0 %v577, 104
      %v1056 = vpop.permute.xlu0 %1055
      %1057 = vrot.lane.b32.xlu0 %v578, 104
      %v1058 = vpop.permute.xlu0 %1057
      %1059 = vrot.lane.b32.xlu0 %v579, 104
      %v1060 = vpop.permute.xlu0 %1059
      %1061 = vrot.lane.b32.xlu0 %v580, 104
      %v1062 = vpop.permute.xlu0 %1061
      %1063 = vrot.lane.b32.xlu0 %v581, 104
      %v1064 = vpop.permute.xlu0 %1063
      %1065 = vrot.lane.b32.xlu0 %v582, 104
      %v1066 = vpop.permute.xlu0 %1065
      %1067 = vrot.lane.b32.xlu0 %v583, 104
      %v1068 = vpop.permute.xlu0 %1067
      %v1077 = vsel %vm584, %v1054, 0.0
      %1078 = vadd.xlane.f32.xlu0 %v1077
      %v1079 = vpop.xlane.xlu0 %1078
      %v1080 = vsel %vm584, %v1056, 0.0
      %1081 = vadd.xlane.f32.xlu0 %v1080
      %v1082 = vpop.xlane.xlu0 %1081
      %v1083 = vsel %vm584, %v1058, 0.0
      %1084 = vadd.xlane.f32.xlu0 %v1083
      %v1085 = vpop.xlane.xlu0 %1084
      %v1086 = vsel %vm584, %v1060, 0.0
      %1087 = vadd.xlane.f32.xlu0 %v1086
      %v1088 = vpop.xlane.xlu0 %1087
      %v1089 = vsel %vm584, %v1062, 0.0
      %1090 = vadd.xlane.f32.xlu0 %v1089
      %v1091 = vpop.xlane.xlu0 %1090
      %v1092 = vsel %vm584, %v1064, 0.0
      %1093 = vadd.xlane.f32.xlu0 %v1092
      %v1094 = vpop.xlane.xlu0 %1093
      %v1095 = vsel %vm584, %v1066, 0.0
      %1096 = vadd.xlane.f32.xlu0 %v1095
      %v1097 = vpop.xlane.xlu0 %1096
      %v1098 = vsel %vm584, %v1068, 0.0
      %1099 = vadd.xlane.f32.xlu0 %v1098
      %v1100 = vpop.xlane.xlu0 %1099
      %1101 = vrot.lane.b32.xlu0 %v776, 104
      %v1102 = vpop.permute.xlu0 %1101
      %1103 = vrot.lane.b32.xlu0 %v781, 104
      %v1104 = vpop.permute.xlu0 %1103
      %v1113 = vperm.slane %v1079, %v618
      %v1114 = vperm.slane %v1082, %v618
      %v1115 = vperm.slane %v1085, %v618
      %v1116 = vperm.slane %v1088, %v618
      %v1117 = vperm.slane %v1091, %v618
      %v1118 = vperm.slane %v1094, %v618
      %v1119 = vperm.slane %v1097, %v618
      %v1120 = vperm.slane %v1100, %v618
      %v1121 = vsel %vm627, %v1114, %v1113
      %v1122 = vsel %vm629, %v1115, %v1121
      %v1123 = vsel %vm631, %v1116, %v1122
      %v1124 = vsel %vm633, %v1117, %v1123
      %v1125 = vsel %vm635, %v1118, %v1124
      %v1126 = vsel %vm637, %v1119, %v1125
      %v1127 = vsel %vm639, %v1120, %v1126
      %v1130 = vsel %vm584, %v1102, 0
      %v1133 = vsel %vm584, %v1104, 0
      %1135 = vmatpush.bf16.xpose.msra.mxu0 0
      %1136 = vmatpush.bf16.xpose.msra.mxu0 0
      %1137 = vmatpush.bf16.xpose.msra.mxu0 0
      %1138 = vmatpush.bf16.xpose.msra.mxu0 0
      %1139 = vmatpush.bf16.xpose.msra.mxu0 0
      %1140 = vmatpush.bf16.xpose.msra.mxu0 0
      %1141 = vmatpush.bf16.xpose.msra.mxu0 0
      %1142 = vmatpush.bf16.xpose.msra.mxu0 %v1133
      %1143 = vmatmul.bf16.gmra.mxu0 %v1130
      %v1144 = vpop.f32.mrf.mxu0
      %v1145 = vadd.f32 %v1127, %v1144
      %v1146 = vpop.f32.mrf.mxu0
      %1147 = vdwg.mxu0
      %v1148 = vmul.f32 %v1145, 0.35355338
      %v1149 = vadd.f32 %v1148, %v509
      %s1150 = scalar_lea.vmem [#allocation2], 24
      %v1151 = vld [vmem:[%s1150] sm:$0xff]
      %v1152 = vsel %vm584, %v1149, -inf
      %1153 = vmax.xlane.f32.xlu0 %v1152
      %v1154 = vpop.xlane.xlu0 %1153
      %v1155 = vmax.f32 %v1151, %v1154
      %v1156 = vsub.f32 %v1151, %v1155
      %v1157 = vmul.f32 %v1156, 1.442695
      %v1158 = vpow.pop %v1157
      %1160 = vset.pattern.permute.xlu0 0
      %1161 = vperm.xlu0 %1160, %v1155
      %v1162 = vpop.permute.xlu0 %1161
      %v1164 = vsub.f32 %v1149, %v1162
      %v1165 = vmul.f32 %v1164, 1.442695
      %v1166 = vpow.pop %v1165
      %s1167 = scalar_lea.vmem [#allocation3], 24
      %v1168 = vld [vmem:[%s1167] sm:$0xff]
      %v1169 = vmul.f32 %v1158, %v1168
      %v1170 = vsel %vm584, %v1166, 0.0
      %1171 = vadd.xlane.f32.xlu0 %v1170
      %v1172 = vpop.xlane.xlu0 %1171
      %v1173 = vadd.f32 %v1169, %v1172
      %1174 = vst.msk [vmem:[%s1167] sm:$0xff] %vm685, %v1173
      %v1175 = vld [vmem:[#allocation4] sm:$0xff]
      %1177 = vset.pattern.permute.xlu0 0
      %1178 = vperm.xlu0 %1177, %v1158
      %v1179 = vpop.permute.xlu0 %1178
      %v1181 = vmul.f32 %v1179, %v1175
      %v1182 = vpack.c.bf16 %v1166, %v1166
      %1183 = vrot.lane.b32.xlu0 %v864, 104
      %v1184 = vpop.permute.xlu0 %1183
      %v1186 = vsel %vm584, %v1182, 0
      %v1189 = vsel %vm698, %v1184, 0
      %1191 = vmatpush.bf16.msra.mxu0 0
      %1192 = vmatpush.bf16.msra.mxu0 0
      %1193 = vmatpush.bf16.msra.mxu0 0
      %1194 = vmatpush.bf16.msra.mxu0 0
      %1195 = vmatpush.bf16.msra.mxu0 0
      %1196 = vmatpush.bf16.msra.mxu0 0
      %1197 = vmatpush.bf16.msra.mxu0 0
      %1198 = vmatpush.bf16.msra.mxu0 %v1189
      %1199 = vmatmul.bf16.gmra.mxu0 %v1186
      %v1200 = vpop.f32.mrf.mxu0
      %v1201 = vadd.f32 0.0, %v1200
      %v1202 = vpop.f32.mrf.mxu0
      %1203 = vdwg.mxu0
      %1205 = vrot.lane.b32.xlu0 %v1201, 24
      %v1206 = vpop.permute.xlu0 %1205
      %v1208 = vadd.f32 %v1181, %v1206
      %vm1209 = vcmask 261312
      %1210 = vst.msk [vmem:[#allocation4] sm:$0xff] %vm1209, %v1208
      %1211 = vst.msk [vmem:[%s1150] sm:$0xff] %vm685, %v1155
      // Predicated region
      $region49: #{_lambda_.10} parent=43 // pred_check
        %p1212 = pneg %p475
      $region50: #{_lambda_.10} parent=43 // pred_check_branch
        %1214 = sbr.rel (%p1212) target = $region52
      $region51: #{_lambda_.10} parent=43 // pred_region
        %v1215 = vld [vmem:[#allocation3] sm:$0xff]
        %v1216 = vrcp.pop %v1215
        %v1217 = vld [vmem:[#allocation4] sm:$0xff]
        %1219 = vset.pattern.permute.xlu0 0
        %1220 = vperm.xlu0 %1219, %v1216
        %v1221 = vpop.permute.xlu0 %1220
        %v1223 = vmul.f32 %v1217, %v1221
        %1224 = vst.msk [vmem:[%s473] sm:$0xff] %vm584, %v1223
        %v1225 = vld [vmem:[%s846] sm:$0xff]
        %v1226 = vrcp.pop %v1225
        %v1227 = vld [vmem:[#allocation4] sm:$0xff]
        %1229 = vset.pattern.permute.xlu0 0
        %1230 = vperm.xlu0 %1229, %v1226
        %v1231 = vpop.permute.xlu0 %1230
        %v1233 = vmul.f32 %v1227, %v1231
        %1234 = vst.msk [vmem:[%s473] sm:$0xff] %vm891, %v1233
        %v1235 = vld [vmem:[%s1008] sm:$0xff]
        %v1236 = vrcp.pop %v1235
        %v1237 = vld [vmem:[#allocation4] sm:$0xff]
        %1239 = vset.pattern.permute.xlu0 0
        %1240 = vperm.xlu0 %1239, %v1236
        %v1241 = vpop.permute.xlu0 %1240
        %v1243 = vmul.f32 %v1237, %v1241
        %1244 = vst.msk [vmem:[%s473] sm:$0xff] %vm1050, %v1243
        %v1245 = vld [vmem:[%s1167] sm:$0xff]
        %v1246 = vrcp.pop %v1245
        %v1247 = vld [vmem:[#allocation4] sm:$0xff]
        %1249 = vset.pattern.permute.xlu0 0
        %1250 = vperm.xlu0 %1249, %v1246
        %v1251 = vpop.permute.xlu0 %1250
        %v1253 = vmul.f32 %v1247, %v1251
        %1254 = vst.msk [vmem:[%s473] sm:$0xff] %vm1209, %v1253
      $region52: #{_lambda_.10} parent=43 // pred_fallthru
        _
      %p1255 = scmp.lt.s32.totalorder %s22, 1
      %s1256 = scalar_select %p1255, %s22, 1
      %p1257 = scmp.lt.s32.totalorder %s23, 0
      %s1258 = scalar_select %p1257, %s23, 0
      %s1259 = sadd.s32 %s1258, %s1256
      %s1260 = smul.addr %s1259, 8
      %s1261 = scalar_lea.vmem %s6, %s1260
      // Predicated region
      $region53: #{_lambda_.10} parent=43 // pred_check
        %p1262 = pneg %p230
      $region54: #{_lambda_.10} parent=43 // pred_check_branch
        %1264 = sbr.rel (%p1262) target = $region56
      $region55: #{_lambda_.10} parent=43 // pred_region
        _
      $region56: #{_lambda_.10} parent=43 // pred_fallthru
        _
    $region44: #{_lambda_.10} parent=5 // pred_fallthru
      _
    %p1265 = scmp.le.s32.totalorder 2, %s12
    // Predicated region
    $region57: #{_lambda_.10} parent=5 // pred_check
      %p1266 = pneg %p1265
    $region58: #{_lambda_.10} parent=5 // pred_check_branch
      %1268 = sbr.rel (%p1266) target = $region60
    $region59: #{_lambda_.10} parent=5 // pred_region
      %s1269 = ssub.s32 %s12, 2
      // Predicated region
      $region61: #{_lambda_.10} parent=59 // pred_check
        %p1270 = pneg %p236
      $region62: #{_lambda_.10} parent=59 // pred_check_branch
        %1272 = sbr.rel (%p1270) target = $region64
      $region63: #{_lambda_.10} parent=59 // pred_region
        %p1273 = scmp.lt.s32.totalorder %s25, 1
        %s1274 = scalar_select %p1273, %s25, 1
        %p1275 = scmp.lt.s32.totalorder %s26, 0
        %s1276 = scalar_select %p1275, %s26, 0
        %s1277 = sadd.s32 %s1276, %s1274
        %s1278 = smul.addr %s1277, 8
        %s1279 = scalar_lea.vmem %s6, %s1278
      $region64: #{_lambda_.10} parent=59 // pred_fallthru
        _
    $region60: #{_lambda_.10} parent=5 // pred_fallthru
      _
  $region6: #{_lambda_.10} parent=0 // loop_footer
    %s16 = sadd.s32 1, %s12
  $region7: #{_lambda_.10} parent=0 // loop_footer_branch
    %11 = sbr.rel target = $region3
  $region8: #{_lambda_.10} parent=0 // loop_exit
    _

</llo_original>
